<compile_context>
chip_gen: v7x
topology: tpu7x:2x2x1
jax: 0.10.0
libtpu: 0.0.40
codegen_flags: <defaults>
</compile_context>

<pallas_src>
import functools

import jax
import jax.numpy as jnp
import numpy as np
from jax.experimental import pallas as pl
from jax.experimental.pallas import tpu as pltpu


# --------------------------- fused Seq2Seq kernel ----------------------------


def _seq2seq_kernel(src_ids_ref, tgt_ids_ref, enc_emb_ref, dec_emb_ref,
                    w_ih_ref, w_hh_ref, b_lstm_ref, w_fc_ref, b_fc_ref,
                    out_ref, h_dec_ref, *, batch, src_len, tgt_len, hidden):
    B, S, T, H = batch, src_len, tgt_len, hidden
    f32, bf16 = jnp.float32, jnp.bfloat16

    # -------- prologue (off the recurrence critical path) --------------------
    # Fold embedding-table @ W_ih once per table and add the combined LSTM bias.
    w_ih = w_ih_ref[...]                                     # (E, 4H)  bf16
    b_lstm = b_lstm_ref[...]                                 # (1, 4H)  f32
    enc_proj = jnp.dot(enc_emb_ref[...], w_ih, preferred_element_type=f32) + b_lstm
    dec_proj = jnp.dot(dec_emb_ref[...], w_ih, preferred_element_type=f32) + b_lstm

    def onehot_select(ids_ref, table_f32):
        # Embedding "gather" as a one-hot MXU matmul; rows time-major (t*B+b).
        n, v = ids_ref.shape[0], table_f32.shape[0]
        ids = ids_ref[...]                                   # (n, 1) int32
        iota = jax.lax.broadcasted_iota(jnp.int32, (n, v), 1)
        onehot = jnp.where(ids == iota, 1.0, 0.0).astype(bf16)
        return jnp.dot(onehot, table_f32.astype(bf16), preferred_element_type=f32)

    xp_src = onehot_select(src_ids_ref, enc_proj)            # (S*B, 4H) f32
    xp_tgt = onehot_select(tgt_ids_ref, dec_proj)            # (T*B, 4H) f32

    # Per-gate split done ONCE here (not per step); PyTorch order [i, f, g, o].
    xs_src = [xp_src[:, k * H:(k + 1) * H] for k in range(4)]
    xs_tgt = [xp_tgt[:, k * H:(k + 1) * H] for k in range(4)]
    w_hh = [w_hh_ref[k] for k in range(4)]                   # 4 x (H, H) bf16

    # ----------------------------- recurrence --------------------------------
    def lstm_step(xg, h, c):
        hb = h.astype(bf16)
        i_g = jax.nn.sigmoid(xg[0] + jnp.dot(hb, w_hh[0], preferred_element_type=f32))
        f_g = jax.nn.sigmoid(xg[1] + jnp.dot(hb, w_hh[1], preferred_element_type=f32))
        g_g = jnp.tanh(      xg[2] + jnp.dot(hb, w_hh[2], preferred_element_type=f32))
        o_g = jax.nn.sigmoid(xg[3] + jnp.dot(hb, w_hh[3], preferred_element_type=f32))
        c_new = f_g * c + i_g * g_g
        h_new = o_g * jnp.tanh(c_new)
        return h_new, c_new

    h = jnp.zeros((B, H), f32)
    c = jnp.zeros((B, H), f32)

    # Encoder: only the final (h, c) is kept; nothing written to HBM.
    for t in range(S):                       # S/T static & small -> full unroll
        h, c = lstm_step([g[t * B:(t + 1) * B, :] for g in xs_src], h, c)

    # Decoder (shared LSTM weights) continues straight from the encoder state.
    # h_t goes to VMEM scratch; fc is deferred off the serial chain.
    for t in range(T):
        h, c = lstm_step([g[t * B:(t + 1) * B, :] for g in xs_tgt], h, c)
        h_dec_ref[t * B:(t + 1) * B, :] = h

    # -------- epilogue: one deferred fc matmul, lane-dense batch-major store --
    preds = (jnp.dot(h_dec_ref[...].astype(bf16), w_fc_ref[...],
                     preferred_element_type=f32) + b_fc_ref[...])  # (T*B, OPAD)
    for t in range(T):
        out_ref[:, t, :] = preds[t * B:(t + 1) * B, :]


def seq2seq_forward(params, source, target):
    """source: (B, S) int32, target: (B, T) int32 -> (B, T, output_dim) f32."""
    B, S = source.shape
    T = target.shape[1]
    H = params["w_hh"].shape[0]
    O = params["w_fc"].shape[1]
    o_pad = ((O + 127) // 128) * 128

    # Time-major flattened token ids (row n = t*B + b) for the in-kernel
    # one-hot gather (no standalone XLA gathers / embedding HBM intermediates).
    src_ids = source.T.reshape(S * B, 1).astype(jnp.int32)
    tgt_ids = target.T.reshape(T * B, 1).astype(jnp.int32)

    # Kernel-format params: bf16 operands, per-gate blocked W_hh, lane-padded
    # fc.  TODO(synk): precompute once at init instead of per forward call.
    enc_emb = params["enc_emb"].astype(jnp.bfloat16)
    dec_emb = params["dec_emb"].astype(jnp.bfloat16)
    w_ih = params["w_ih"].astype(jnp.bfloat16)
    w_hh = params["w_hh"]
    w_hh_g = jnp.stack([w_hh[:, k * H:(k + 1) * H] for k in range(4)],
                       axis=0).astype(jnp.bfloat16)               # (4, H, H)
    w_fc_pad = jnp.zeros((H, o_pad), jnp.bfloat16).at[:, :O].set(
        params["w_fc"].astype(jnp.bfloat16))
    b_fc_pad = jnp.zeros((1, o_pad), jnp.float32).at[:, :O].set(params["b_fc"])

    kernel = functools.partial(_seq2seq_kernel, batch=B, src_len=S,
                               tgt_len=T, hidden=H)
    vmem = pl.BlockSpec(memory_space=pltpu.MemorySpace.VMEM)
    out = pl.pallas_call(
        kernel,
        out_shape=jax.ShapeDtypeStruct((B, T, o_pad), jnp.float32),
        in_specs=[vmem] * 9,
        out_specs=vmem,
        scratch_shapes=[pltpu.VMEM((T * B, H), jnp.float32)],
    )(src_ids, tgt_ids, enc_emb, dec_emb, w_ih, w_hh_g, params["b_lstm"],
      w_fc_pad, b_fc_pad)
    return out[:, :, :O]                     # slice away the lane padding


# ----------------------------- Pure-JAX reference ----------------------------


def _lstm_ref(x_bse, w_ih, w_hh, b, h0, c0):
    H = h0.shape[-1]

    def step(carry, x_t):
        h, c = carry
        gates = (jnp.dot(x_t, w_ih, precision=jax.lax.Precision.HIGHEST)
                 + jnp.dot(h, w_hh, precision=jax.lax.Precision.HIGHEST)
                 + b)
        i = jax.nn.sigmoid(gates[:, 0 * H:1 * H])
        f = jax.nn.sigmoid(gates[:, 1 * H:2 * H])
        g = jnp.tanh(gates[:, 2 * H:3 * H])
        o = jax.nn.sigmoid(gates[:, 3 * H:4 * H])
        c_new = f * c + i * g
        h_new = o * jnp.tanh(c_new)
        return (h_new, c_new), h_new

    (hN, cN), ys = jax.lax.scan(step, (h0, c0), jnp.transpose(x_bse, (1, 0, 2)))
    return jnp.transpose(ys, (1, 0, 2)), hN, cN


def seq2seq_ref(params, source, target):
    emb_src = params["enc_emb"][source]
    emb_tgt = params["dec_emb"][target]
    B = source.shape[0]
    H = params["w_hh"].shape[0]
    z = jnp.zeros((B, H), jnp.float32)
    _, hN, cN = _lstm_ref(emb_src, params["w_ih"], params["w_hh"],
                          params["b_lstm"], z, z)
    outs, _, _ = _lstm_ref(emb_tgt, params["w_ih"], params["w_hh"],
                           params["b_lstm"], hN, cN)
    return (jnp.einsum("bth,ho->bto", outs, params["w_fc"],
                       precision=jax.lax.Precision.HIGHEST)
            + params["b_fc"][0])


# ----------------------------- Main ------------------------------------------


def init_params(key, input_dim, output_dim, embedding_dim, hidden_dim):
    ks = jax.random.split(key, 8)
    s = 1.0 / np.sqrt(hidden_dim)
    return {
        # nn.Embedding default init: N(0, 1)
        "enc_emb": jax.random.normal(ks[0], (input_dim, embedding_dim), jnp.float32),
        "dec_emb": jax.random.normal(ks[1], (output_dim, embedding_dim), jnp.float32),
        # nn.LSTM params (stored transposed: (E,4H)/(H,4H)); gate order [i,f,g,o]
        "w_ih": jax.random.uniform(ks[2], (embedding_dim, 4 * hidden_dim),
                                   jnp.float32, -s, s),
        "w_hh": jax.random.uniform(ks[3], (hidden_dim, 4 * hidden_dim),
                                   jnp.float32, -s, s),
        "b_lstm": (jax.random.uniform(ks[4], (1, 4 * hidden_dim), jnp.float32, -s, s)
                   + jax.random.uniform(ks[5], (1, 4 * hidden_dim), jnp.float32, -s, s)),
        # nn.Linear(hidden_dim, output_dim), stored transposed (H, O)
        "w_fc": jax.random.uniform(ks[6], (hidden_dim, output_dim),
                                   jnp.float32, -s, s),
        "b_fc": jax.random.uniform(ks[7], (1, output_dim), jnp.float32, -s, s),
    }


if __name__ == "__main__":
    input_dim, output_dim = 20, 24
    embedding_dim, hidden_dim = 16, 32
    batch, src_len, tgt_len = 2, 8, 6

    key = jax.random.PRNGKey(0)
    pkey, skey, tkey = jax.random.split(key, 3)
    params = init_params(pkey, input_dim, output_dim, embedding_dim, hidden_dim)

    source = jax.random.randint(skey, (batch, src_len), 0, input_dim, jnp.int32)
    target = jax.random.randint(tkey, (batch, tgt_len), 0, output_dim, jnp.int32)

    preds = jax.jit(seq2seq_forward)(params, source, target)
    preds = jax.block_until_ready(preds)
    assert preds.shape == (batch, tgt_len, output_dim), preds.shape

    # Reference uses f32 HIGHEST matmuls; the kernel uses single-pass bf16 MXU
    # matmuls with f32 accumulation (operands + folded table projection are
    # bf16-rounded), so the tolerance covers ~1e-3-level rounding per matmul.
    ref = jax.block_until_ready(seq2seq_ref(params, source, target))
    np.testing.assert_allclose(np.asarray(preds), np.asarray(ref),
                               rtol=2e-2, atol=2e-2)

    print("KERNEL_OK")
</pallas_src>

<mosaic_0001>
module attributes {stable_mosaic.version = 11 : i64} {
  func.func @_seq2seq_kernel(%arg0: memref<16x1xi32, #tpu.memory_space<vmem>>, %arg1: memref<12x1xi32, #tpu.memory_space<vmem>>, %arg2: memref<20x16xbf16, #tpu.memory_space<vmem>>, %arg3: memref<24x16xbf16, #tpu.memory_space<vmem>>, %arg4: memref<16x128xbf16, #tpu.memory_space<vmem>>, %arg5: memref<4x32x32xbf16, #tpu.memory_space<vmem>>, %arg6: memref<1x128xf32, #tpu.memory_space<vmem>>, %arg7: memref<32x128xbf16, #tpu.memory_space<vmem>>, %arg8: memref<1x128xf32, #tpu.memory_space<vmem>>, %arg9: memref<2x6x128xf32, #tpu.memory_space<vmem>>, %arg10: memref<12x32xf32, #tpu.memory_space<vmem>>) attributes {dimension_semantics = [], scalar_prefetch = 0 : i64, scratch_operands = 1 : i64, tpu.core_type = #tpu.core_type<tc>} {
    %c0 = arith.constant 0 : index
    %c0_0 = arith.constant 0 : index
    %0 = vector.load %arg4[%c0, %c0_0] : memref<16x128xbf16, #tpu.memory_space<vmem>>, vector<16x128xbf16>
    %c0_1 = arith.constant 0 : index
    %c0_2 = arith.constant 0 : index
    %1 = vector.load %arg6[%c0_1, %c0_2] : memref<1x128xf32, #tpu.memory_space<vmem>>, vector<1x128xf32>
    %c0_3 = arith.constant 0 : index
    %c0_4 = arith.constant 0 : index
    %2 = vector.load %arg2[%c0_3, %c0_4] : memref<20x16xbf16, #tpu.memory_space<vmem>>, vector<20x16xbf16>
    %cst = arith.constant dense<0.000000e+00> : vector<20x128xf32>
    %3 = tpu.matmul %2, %0, %cst {dimension_numbers = #tpu.dot_dimension_numbers<[1], [0], [0], [1], [0, 0, 1, 1], [], []>} : vector<20x16xbf16>, vector<16x128xbf16>, vector<20x128xf32> -> vector<20x128xf32>
    %4 = vector.broadcast %1 : vector<1x128xf32> to vector<20x128xf32>
    %5 = arith.addf %3, %4 : vector<20x128xf32>
    %c0_5 = arith.constant 0 : index
    %c0_6 = arith.constant 0 : index
    %6 = vector.load %arg3[%c0_5, %c0_6] : memref<24x16xbf16, #tpu.memory_space<vmem>>, vector<24x16xbf16>
    %cst_7 = arith.constant dense<0.000000e+00> : vector<24x128xf32>
    %7 = tpu.matmul %6, %0, %cst_7 {dimension_numbers = #tpu.dot_dimension_numbers<[1], [0], [0], [1], [0, 0, 1, 1], [], []>} : vector<24x16xbf16>, vector<16x128xbf16>, vector<24x128xf32> -> vector<24x128xf32>
    %8 = vector.broadcast %1 : vector<1x128xf32> to vector<24x128xf32>
    %9 = arith.addf %7, %8 : vector<24x128xf32>
    %c0_8 = arith.constant 0 : index
    %c0_9 = arith.constant 0 : index
    %10 = vector.load %arg0[%c0_8, %c0_9] : memref<16x1xi32, #tpu.memory_space<vmem>>, vector<16x1xi32>
    %11 = tpu.iota {dimensions = array<i32: 1>} : vector<16x20xi32>
    %12 = vector.broadcast %10 : vector<16x1xi32> to vector<16x20xi32>
    %13 = arith.cmpi eq, %12, %11 : vector<16x20xi32>
    %cst_10 = arith.constant 1.000000e+00 : f32
    %cst_11 = arith.constant 0.000000e+00 : f32
    %14 = vector.broadcast %cst_10 : f32 to vector<16x20xf32>
    %15 = vector.broadcast %cst_11 : f32 to vector<16x20xf32>
    %16 = arith.select %13, %14, %15 : vector<16x20xi1>, vector<16x20xf32>
    %17 = arith.truncf %16 : vector<16x20xf32> to vector<16x20xbf16>
    %18 = arith.truncf %5 : vector<20x128xf32> to vector<20x128xbf16>
    %cst_12 = arith.constant dense<0.000000e+00> : vector<16x128xf32>
    %19 = tpu.matmul %17, %18, %cst_12 {dimension_numbers = #tpu.dot_dimension_numbers<[1], [0], [0], [1], [0, 0, 1, 1], [], []>} : vector<16x20xbf16>, vector<20x128xbf16>, vector<16x128xf32> -> vector<16x128xf32>
    %c0_13 = arith.constant 0 : index
    %c0_14 = arith.constant 0 : index
    %20 = vector.load %arg1[%c0_13, %c0_14] : memref<12x1xi32, #tpu.memory_space<vmem>>, vector<12x1xi32>
    %21 = tpu.iota {dimensions = array<i32: 1>} : vector<12x24xi32>
    %22 = vector.broadcast %20 : vector<12x1xi32> to vector<12x24xi32>
    %23 = arith.cmpi eq, %22, %21 : vector<12x24xi32>
    %cst_15 = arith.constant 1.000000e+00 : f32
    %cst_16 = arith.constant 0.000000e+00 : f32
    %24 = vector.broadcast %cst_15 : f32 to vector<12x24xf32>
    %25 = vector.broadcast %cst_16 : f32 to vector<12x24xf32>
    %26 = arith.select %23, %24, %25 : vector<12x24xi1>, vector<12x24xf32>
    %27 = arith.truncf %26 : vector<12x24xf32> to vector<12x24xbf16>
    %28 = arith.truncf %9 : vector<24x128xf32> to vector<24x128xbf16>
    %cst_17 = arith.constant dense<0.000000e+00> : vector<12x128xf32>
    %29 = tpu.matmul %27, %28, %cst_17 {dimension_numbers = #tpu.dot_dimension_numbers<[1], [0], [0], [1], [0, 0, 1, 1], [], []>} : vector<12x24xbf16>, vector<24x128xbf16>, vector<12x128xf32> -> vector<12x128xf32>
    %30 = vector.extract_strided_slice %19 {offsets = [0, 0], sizes = [16, 32], strides = [1, 1]} : vector<16x128xf32> to vector<16x32xf32>
    %31 = vector.extract_strided_slice %19 {offsets = [0, 32], sizes = [16, 32], strides = [1, 1]} : vector<16x128xf32> to vector<16x32xf32>
    %32 = vector.extract_strided_slice %19 {offsets = [0, 64], sizes = [16, 32], strides = [1, 1]} : vector<16x128xf32> to vector<16x32xf32>
    %33 = vector.extract_strided_slice %19 {offsets = [0, 96], sizes = [16, 32], strides = [1, 1]} : vector<16x128xf32> to vector<16x32xf32>
    %34 = vector.extract_strided_slice %29 {offsets = [0, 0], sizes = [12, 32], strides = [1, 1]} : vector<12x128xf32> to vector<12x32xf32>
    %35 = vector.extract_strided_slice %29 {offsets = [0, 32], sizes = [12, 32], strides = [1, 1]} : vector<12x128xf32> to vector<12x32xf32>
    %36 = vector.extract_strided_slice %29 {offsets = [0, 64], sizes = [12, 32], strides = [1, 1]} : vector<12x128xf32> to vector<12x32xf32>
    %37 = vector.extract_strided_slice %29 {offsets = [0, 96], sizes = [12, 32], strides = [1, 1]} : vector<12x128xf32> to vector<12x32xf32>
    %c0_18 = arith.constant 0 : index
    %c0_19 = arith.constant 0 : index
    %c0_20 = arith.constant 0 : index
    %38 = vector.load %arg5[%c0_18, %c0_19, %c0_20] : memref<4x32x32xbf16, #tpu.memory_space<vmem>>, vector<1x32x32xbf16>
    %39 = vector.shape_cast %38 : vector<1x32x32xbf16> to vector<32x32xbf16>
    %c1 = arith.constant 1 : index
    %c0_21 = arith.constant 0 : index
    %c0_22 = arith.constant 0 : index
    %40 = vector.load %arg5[%c1, %c0_21, %c0_22] : memref<4x32x32xbf16, #tpu.memory_space<vmem>>, vector<1x32x32xbf16>
    %41 = vector.shape_cast %40 : vector<1x32x32xbf16> to vector<32x32xbf16>
    %c2 = arith.constant 2 : index
    %c0_23 = arith.constant 0 : index
    %c0_24 = arith.constant 0 : index
    %42 = vector.load %arg5[%c2, %c0_23, %c0_24] : memref<4x32x32xbf16, #tpu.memory_space<vmem>>, vector<1x32x32xbf16>
    %43 = vector.shape_cast %42 : vector<1x32x32xbf16> to vector<32x32xbf16>
    %c3 = arith.constant 3 : index
    %c0_25 = arith.constant 0 : index
    %c0_26 = arith.constant 0 : index
    %44 = vector.load %arg5[%c3, %c0_25, %c0_26] : memref<4x32x32xbf16, #tpu.memory_space<vmem>>, vector<1x32x32xbf16>
    %45 = vector.shape_cast %44 : vector<1x32x32xbf16> to vector<32x32xbf16>
    %cst_27 = arith.constant 0.000000e+00 : f32
    %46 = vector.broadcast %cst_27 : f32 to vector<2x32xf32>
    %cst_28 = arith.constant 0.000000e+00 : f32
    %47 = vector.broadcast %cst_28 : f32 to vector<2x32xf32>
    %48 = vector.extract_strided_slice %30 {offsets = [0, 0], sizes = [2, 32], strides = [1, 1]} : vector<16x32xf32> to vector<2x32xf32>
    %49 = vector.extract_strided_slice %31 {offsets = [0, 0], sizes = [2, 32], strides = [1, 1]} : vector<16x32xf32> to vector<2x32xf32>
    %50 = vector.extract_strided_slice %32 {offsets = [0, 0], sizes = [2, 32], strides = [1, 1]} : vector<16x32xf32> to vector<2x32xf32>
    %51 = vector.extract_strided_slice %33 {offsets = [0, 0], sizes = [2, 32], strides = [1, 1]} : vector<16x32xf32> to vector<2x32xf32>
    %52 = arith.truncf %46 : vector<2x32xf32> to vector<2x32xbf16>
    %cst_29 = arith.constant dense<0.000000e+00> : vector<2x32xf32>
    %53 = tpu.matmul %52, %39, %cst_29 {dimension_numbers = #tpu.dot_dimension_numbers<[1], [0], [0], [1], [0, 0, 1, 1], [], []>} : vector<2x32xbf16>, vector<32x32xbf16>, vector<2x32xf32> -> vector<2x32xf32>
    %54 = arith.addf %48, %53 : vector<2x32xf32>
    %55 = arith.negf %54 : vector<2x32xf32>
    %56 = math.exp %55 : vector<2x32xf32>
    %cst_30 = arith.constant 1.000000e+00 : f32
    %57 = vector.broadcast %cst_30 : f32 to vector<2x32xf32>
    %58 = arith.addf %57, %56 : vector<2x32xf32>
    %59 = arith.divf %57, %58 : vector<2x32xf32>
    %cst_31 = arith.constant dense<0.000000e+00> : vector<2x32xf32>
    %60 = tpu.matmul %52, %41, %cst_31 {dimension_numbers = #tpu.dot_dimension_numbers<[1], [0], [0], [1], [0, 0, 1, 1], [], []>} : vector<2x32xbf16>, vector<32x32xbf16>, vector<2x32xf32> -> vector<2x32xf32>
    %61 = arith.addf %49, %60 : vector<2x32xf32>
    %62 = arith.negf %61 : vector<2x32xf32>
    %63 = math.exp %62 : vector<2x32xf32>
    %cst_32 = arith.constant 1.000000e+00 : f32
    %64 = vector.broadcast %cst_32 : f32 to vector<2x32xf32>
    %65 = arith.addf %64, %63 : vector<2x32xf32>
    %66 = arith.divf %64, %65 : vector<2x32xf32>
    %cst_33 = arith.constant dense<0.000000e+00> : vector<2x32xf32>
    %67 = tpu.matmul %52, %43, %cst_33 {dimension_numbers = #tpu.dot_dimension_numbers<[1], [0], [0], [1], [0, 0, 1, 1], [], []>} : vector<2x32xbf16>, vector<32x32xbf16>, vector<2x32xf32> -> vector<2x32xf32>
    %68 = arith.addf %50, %67 : vector<2x32xf32>
    %69 = math.tanh %68 : vector<2x32xf32>
    %cst_34 = arith.constant dense<0.000000e+00> : vector<2x32xf32>
    %70 = tpu.matmul %52, %45, %cst_34 {dimension_numbers = #tpu.dot_dimension_numbers<[1], [0], [0], [1], [0, 0, 1, 1], [], []>} : vector<2x32xbf16>, vector<32x32xbf16>, vector<2x32xf32> -> vector<2x32xf32>
    %71 = arith.addf %51, %70 : vector<2x32xf32>
    %72 = arith.negf %71 : vector<2x32xf32>
    %73 = math.exp %72 : vector<2x32xf32>
    %cst_35 = arith.constant 1.000000e+00 : f32
    %74 = vector.broadcast %cst_35 : f32 to vector<2x32xf32>
    %75 = arith.addf %74, %73 : vector<2x32xf32>
    %76 = arith.divf %74, %75 : vector<2x32xf32>
    %77 = arith.mulf %66, %47 : vector<2x32xf32>
    %78 = arith.mulf %59, %69 : vector<2x32xf32>
    %79 = arith.addf %77, %78 : vector<2x32xf32>
    %80 = math.tanh %79 : vector<2x32xf32>
    %81 = arith.mulf %76, %80 : vector<2x32xf32>
    %82 = vector.extract_strided_slice %30 {offsets = [2, 0], sizes = [2, 32], strides = [1, 1]} : vector<16x32xf32> to vector<2x32xf32>
    %83 = vector.extract_strided_slice %31 {offsets = [2, 0], sizes = [2, 32], strides = [1, 1]} : vector<16x32xf32> to vector<2x32xf32>
    %84 = vector.extract_strided_slice %32 {offsets = [2, 0], sizes = [2, 32], strides = [1, 1]} : vector<16x32xf32> to vector<2x32xf32>
    %85 = vector.extract_strided_slice %33 {offsets = [2, 0], sizes = [2, 32], strides = [1, 1]} : vector<16x32xf32> to vector<2x32xf32>
    %86 = arith.truncf %81 : vector<2x32xf32> to vector<2x32xbf16>
    %cst_36 = arith.constant dense<0.000000e+00> : vector<2x32xf32>
    %87 = tpu.matmul %86, %39, %cst_36 {dimension_numbers = #tpu.dot_dimension_numbers<[1], [0], [0], [1], [0, 0, 1, 1], [], []>} : vector<2x32xbf16>, vector<32x32xbf16>, vector<2x32xf32> -> vector<2x32xf32>
    %88 = arith.addf %82, %87 : vector<2x32xf32>
    %89 = arith.negf %88 : vector<2x32xf32>
    %90 = math.exp %89 : vector<2x32xf32>
    %cst_37 = arith.constant 1.000000e+00 : f32
    %91 = vector.broadcast %cst_37 : f32 to vector<2x32xf32>
    %92 = arith.addf %91, %90 : vector<2x32xf32>
    %93 = arith.divf %91, %92 : vector<2x32xf32>
    %cst_38 = arith.constant dense<0.000000e+00> : vector<2x32xf32>
    %94 = tpu.matmul %86, %41, %cst_38 {dimension_numbers = #tpu.dot_dimension_numbers<[1], [0], [0], [1], [0, 0, 1, 1], [], []>} : vector<2x32xbf16>, vector<32x32xbf16>, vector<2x32xf32> -> vector<2x32xf32>
    %95 = arith.addf %83, %94 : vector<2x32xf32>
    %96 = arith.negf %95 : vector<2x32xf32>
    %97 = math.exp %96 : vector<2x32xf32>
    %cst_39 = arith.constant 1.000000e+00 : f32
    %98 = vector.broadcast %cst_39 : f32 to vector<2x32xf32>
    %99 = arith.addf %98, %97 : vector<2x32xf32>
    %100 = arith.divf %98, %99 : vector<2x32xf32>
    %cst_40 = arith.constant dense<0.000000e+00> : vector<2x32xf32>
    %101 = tpu.matmul %86, %43, %cst_40 {dimension_numbers = #tpu.dot_dimension_numbers<[1], [0], [0], [1], [0, 0, 1, 1], [], []>} : vector<2x32xbf16>, vector<32x32xbf16>, vector<2x32xf32> -> vector<2x32xf32>
    %102 = arith.addf %84, %101 : vector<2x32xf32>
    %103 = math.tanh %102 : vector<2x32xf32>
    %cst_41 = arith.constant dense<0.000000e+00> : vector<2x32xf32>
    %104 = tpu.matmul %86, %45, %cst_41 {dimension_numbers = #tpu.dot_dimension_numbers<[1], [0], [0], [1], [0, 0, 1, 1], [], []>} : vector<2x32xbf16>, vector<32x32xbf16>, vector<2x32xf32> -> vector<2x32xf32>
    %105 = arith.addf %85, %104 : vector<2x32xf32>
    %106 = arith.negf %105 : vector<2x32xf32>
    %107 = math.exp %106 : vector<2x32xf32>
    %cst_42 = arith.constant 1.000000e+00 : f32
    %108 = vector.broadcast %cst_42 : f32 to vector<2x32xf32>
    %109 = arith.addf %108, %107 : vector<2x32xf32>
    %110 = arith.divf %108, %109 : vector<2x32xf32>
    %111 = arith.mulf %100, %79 : vector<2x32xf32>
    %112 = arith.mulf %93, %103 : vector<2x32xf32>
    %113 = arith.addf %111, %112 : vector<2x32xf32>
    %114 = math.tanh %113 : vector<2x32xf32>
    %115 = arith.mulf %110, %114 : vector<2x32xf32>
    %116 = vector.extract_strided_slice %30 {offsets = [4, 0], sizes = [2, 32], strides = [1, 1]} : vector<16x32xf32> to vector<2x32xf32>
    %117 = vector.extract_strided_slice %31 {offsets = [4, 0], sizes = [2, 32], strides = [1, 1]} : vector<16x32xf32> to vector<2x32xf32>
    %118 = vector.extract_strided_slice %32 {offsets = [4, 0], sizes = [2, 32], strides = [1, 1]} : vector<16x32xf32> to vector<2x32xf32>
    %119 = vector.extract_strided_slice %33 {offsets = [4, 0], sizes = [2, 32], strides = [1, 1]} : vector<16x32xf32> to vector<2x32xf32>
    %120 = arith.truncf %115 : vector<2x32xf32> to vector<2x32xbf16>
    %cst_43 = arith.constant dense<0.000000e+00> : vector<2x32xf32>
    %121 = tpu.matmul %120, %39, %cst_43 {dimension_numbers = #tpu.dot_dimension_numbers<[1], [0], [0], [1], [0, 0, 1, 1], [], []>} : vector<2x32xbf16>, vector<32x32xbf16>, vector<2x32xf32> -> vector<2x32xf32>
    %122 = arith.addf %116, %121 : vector<2x32xf32>
    %123 = arith.negf %122 : vector<2x32xf32>
    %124 = math.exp %123 : vector<2x32xf32>
    %cst_44 = arith.constant 1.000000e+00 : f32
    %125 = vector.broadcast %cst_44 : f32 to vector<2x32xf32>
    %126 = arith.addf %125, %124 : vector<2x32xf32>
    %127 = arith.divf %125, %126 : vector<2x32xf32>
    %cst_45 = arith.constant dense<0.000000e+00> : vector<2x32xf32>
    %128 = tpu.matmul %120, %41, %cst_45 {dimension_numbers = #tpu.dot_dimension_numbers<[1], [0], [0], [1], [0, 0, 1, 1], [], []>} : vector<2x32xbf16>, vector<32x32xbf16>, vector<2x32xf32> -> vector<2x32xf32>
    %129 = arith.addf %117, %128 : vector<2x32xf32>
    %130 = arith.negf %129 : vector<2x32xf32>
    %131 = math.exp %130 : vector<2x32xf32>
    %cst_46 = arith.constant 1.000000e+00 : f32
    %132 = vector.broadcast %cst_46 : f32 to vector<2x32xf32>
    %133 = arith.addf %132, %131 : vector<2x32xf32>
    %134 = arith.divf %132, %133 : vector<2x32xf32>
    %cst_47 = arith.constant dense<0.000000e+00> : vector<2x32xf32>
    %135 = tpu.matmul %120, %43, %cst_47 {dimension_numbers = #tpu.dot_dimension_numbers<[1], [0], [0], [1], [0, 0, 1, 1], [], []>} : vector<2x32xbf16>, vector<32x32xbf16>, vector<2x32xf32> -> vector<2x32xf32>
    %136 = arith.addf %118, %135 : vector<2x32xf32>
    %137 = math.tanh %136 : vector<2x32xf32>
    %cst_48 = arith.constant dense<0.000000e+00> : vector<2x32xf32>
    %138 = tpu.matmul %120, %45, %cst_48 {dimension_numbers = #tpu.dot_dimension_numbers<[1], [0], [0], [1], [0, 0, 1, 1], [], []>} : vector<2x32xbf16>, vector<32x32xbf16>, vector<2x32xf32> -> vector<2x32xf32>
    %139 = arith.addf %119, %138 : vector<2x32xf32>
    %140 = arith.negf %139 : vector<2x32xf32>
    %141 = math.exp %140 : vector<2x32xf32>
    %cst_49 = arith.constant 1.000000e+00 : f32
    %142 = vector.broadcast %cst_49 : f32 to vector<2x32xf32>
    %143 = arith.addf %142, %141 : vector<2x32xf32>
    %144 = arith.divf %142, %143 : vector<2x32xf32>
    %145 = arith.mulf %134, %113 : vector<2x32xf32>
    %146 = arith.mulf %127, %137 : vector<2x32xf32>
    %147 = arith.addf %145, %146 : vector<2x32xf32>
    %148 = math.tanh %147 : vector<2x32xf32>
    %149 = arith.mulf %144, %148 : vector<2x32xf32>
    %150 = vector.extract_strided_slice %30 {offsets = [6, 0], sizes = [2, 32], strides = [1, 1]} : vector<16x32xf32> to vector<2x32xf32>
    %151 = vector.extract_strided_slice %31 {offsets = [6, 0], sizes = [2, 32], strides = [1, 1]} : vector<16x32xf32> to vector<2x32xf32>
    %152 = vector.extract_strided_slice %32 {offsets = [6, 0], sizes = [2, 32], strides = [1, 1]} : vector<16x32xf32> to vector<2x32xf32>
    %153 = vector.extract_strided_slice %33 {offsets = [6, 0], sizes = [2, 32], strides = [1, 1]} : vector<16x32xf32> to vector<2x32xf32>
    %154 = arith.truncf %149 : vector<2x32xf32> to vector<2x32xbf16>
    %cst_50 = arith.constant dense<0.000000e+00> : vector<2x32xf32>
    %155 = tpu.matmul %154, %39, %cst_50 {dimension_numbers = #tpu.dot_dimension_numbers<[1], [0], [0], [1], [0, 0, 1, 1], [], []>} : vector<2x32xbf16>, vector<32x32xbf16>, vector<2x32xf32> -> vector<2x32xf32>
    %156 = arith.addf %150, %155 : vector<2x32xf32>
    %157 = arith.negf %156 : vector<2x32xf32>
    %158 = math.exp %157 : vector<2x32xf32>
    %cst_51 = arith.constant 1.000000e+00 : f32
    %159 = vector.broadcast %cst_51 : f32 to vector<2x32xf32>
    %160 = arith.addf %159, %158 : vector<2x32xf32>
    %161 = arith.divf %159, %160 : vector<2x32xf32>
    %cst_52 = arith.constant dense<0.000000e+00> : vector<2x32xf32>
    %162 = tpu.matmul %154, %41, %cst_52 {dimension_numbers = #tpu.dot_dimension_numbers<[1], [0], [0], [1], [0, 0, 1, 1], [], []>} : vector<2x32xbf16>, vector<32x32xbf16>, vector<2x32xf32> -> vector<2x32xf32>
    %163 = arith.addf %151, %162 : vector<2x32xf32>
    %164 = arith.negf %163 : vector<2x32xf32>
    %165 = math.exp %164 : vector<2x32xf32>
    %cst_53 = arith.constant 1.000000e+00 : f32
    %166 = vector.broadcast %cst_53 : f32 to vector<2x32xf32>
    %167 = arith.addf %166, %165 : vector<2x32xf32>
    %168 = arith.divf %166, %167 : vector<2x32xf32>
    %cst_54 = arith.constant dense<0.000000e+00> : vector<2x32xf32>
    %169 = tpu.matmul %154, %43, %cst_54 {dimension_numbers = #tpu.dot_dimension_numbers<[1], [0], [0], [1], [0, 0, 1, 1], [], []>} : vector<2x32xbf16>, vector<32x32xbf16>, vector<2x32xf32> -> vector<2x32xf32>
    %170 = arith.addf %152, %169 : vector<2x32xf32>
    %171 = math.tanh %170 : vector<2x32xf32>
    %cst_55 = arith.constant dense<0.000000e+00> : vector<2x32xf32>
    %172 = tpu.matmul %154, %45, %cst_55 {dimension_numbers = #tpu.dot_dimension_numbers<[1], [0], [0], [1], [0, 0, 1, 1], [], []>} : vector<2x32xbf16>, vector<32x32xbf16>, vector<2x32xf32> -> vector<2x32xf32>
    %173 = arith.addf %153, %172 : vector<2x32xf32>
    %174 = arith.negf %173 : vector<2x32xf32>
    %175 = math.exp %174 : vector<2x32xf32>
    %cst_56 = arith.constant 1.000000e+00 : f32
    %176 = vector.broadcast %cst_56 : f32 to vector<2x32xf32>
    %177 = arith.addf %176, %175 : vector<2x32xf32>
    %178 = arith.divf %176, %177 : vector<2x32xf32>
    %179 = arith.mulf %168, %147 : vector<2x32xf32>
    %180 = arith.mulf %161, %171 : vector<2x32xf32>
    %181 = arith.addf %179, %180 : vector<2x32xf32>
    %182 = math.tanh %181 : vector<2x32xf32>
    %183 = arith.mulf %178, %182 : vector<2x32xf32>
    %184 = vector.extract_strided_slice %30 {offsets = [8, 0], sizes = [2, 32], strides = [1, 1]} : vector<16x32xf32> to vector<2x32xf32>
    %185 = vector.extract_strided_slice %31 {offsets = [8, 0], sizes = [2, 32], strides = [1, 1]} : vector<16x32xf32> to vector<2x32xf32>
    %186 = vector.extract_strided_slice %32 {offsets = [8, 0], sizes = [2, 32], strides = [1, 1]} : vector<16x32xf32> to vector<2x32xf32>
    %187 = vector.extract_strided_slice %33 {offsets = [8, 0], sizes = [2, 32], strides = [1, 1]} : vector<16x32xf32> to vector<2x32xf32>
    %188 = arith.truncf %183 : vector<2x32xf32> to vector<2x32xbf16>
    %cst_57 = arith.constant dense<0.000000e+00> : vector<2x32xf32>
    %189 = tpu.matmul %188, %39, %cst_57 {dimension_numbers = #tpu.dot_dimension_numbers<[1], [0], [0], [1], [0, 0, 1, 1], [], []>} : vector<2x32xbf16>, vector<32x32xbf16>, vector<2x32xf32> -> vector<2x32xf32>
    %190 = arith.addf %184, %189 : vector<2x32xf32>
    %191 = arith.negf %190 : vector<2x32xf32>
    %192 = math.exp %191 : vector<2x32xf32>
    %cst_58 = arith.constant 1.000000e+00 : f32
    %193 = vector.broadcast %cst_58 : f32 to vector<2x32xf32>
    %194 = arith.addf %193, %192 : vector<2x32xf32>
    %195 = arith.divf %193, %194 : vector<2x32xf32>
    %cst_59 = arith.constant dense<0.000000e+00> : vector<2x32xf32>
    %196 = tpu.matmul %188, %41, %cst_59 {dimension_numbers = #tpu.dot_dimension_numbers<[1], [0], [0], [1], [0, 0, 1, 1], [], []>} : vector<2x32xbf16>, vector<32x32xbf16>, vector<2x32xf32> -> vector<2x32xf32>
    %197 = arith.addf %185, %196 : vector<2x32xf32>
    %198 = arith.negf %197 : vector<2x32xf32>
    %199 = math.exp %198 : vector<2x32xf32>
    %cst_60 = arith.constant 1.000000e+00 : f32
    %200 = vector.broadcast %cst_60 : f32 to vector<2x32xf32>
    %201 = arith.addf %200, %199 : vector<2x32xf32>
    %202 = arith.divf %200, %201 : vector<2x32xf32>
    %cst_61 = arith.constant dense<0.000000e+00> : vector<2x32xf32>
    %203 = tpu.matmul %188, %43, %cst_61 {dimension_numbers = #tpu.dot_dimension_numbers<[1], [0], [0], [1], [0, 0, 1, 1], [], []>} : vector<2x32xbf16>, vector<32x32xbf16>, vector<2x32xf32> -> vector<2x32xf32>
    %204 = arith.addf %186, %203 : vector<2x32xf32>
    %205 = math.tanh %204 : vector<2x32xf32>
    %cst_62 = arith.constant dense<0.000000e+00> : vector<2x32xf32>
    %206 = tpu.matmul %188, %45, %cst_62 {dimension_numbers = #tpu.dot_dimension_numbers<[1], [0], [0], [1], [0, 0, 1, 1], [], []>} : vector<2x32xbf16>, vector<32x32xbf16>, vector<2x32xf32> -> vector<2x32xf32>
    %207 = arith.addf %187, %206 : vector<2x32xf32>
    %208 = arith.negf %207 : vector<2x32xf32>
    %209 = math.exp %208 : vector<2x32xf32>
    %cst_63 = arith.constant 1.000000e+00 : f32
    %210 = vector.broadcast %cst_63 : f32 to vector<2x32xf32>
    %211 = arith.addf %210, %209 : vector<2x32xf32>
    %212 = arith.divf %210, %211 : vector<2x32xf32>
    %213 = arith.mulf %202, %181 : vector<2x32xf32>
    %214 = arith.mulf %195, %205 : vector<2x32xf32>
    %215 = arith.addf %213, %214 : vector<2x32xf32>
    %216 = math.tanh %215 : vector<2x32xf32>
    %217 = arith.mulf %212, %216 : vector<2x32xf32>
    %218 = vector.extract_strided_slice %30 {offsets = [10, 0], sizes = [2, 32], strides = [1, 1]} : vector<16x32xf32> to vector<2x32xf32>
    %219 = vector.extract_strided_slice %31 {offsets = [10, 0], sizes = [2, 32], strides = [1, 1]} : vector<16x32xf32> to vector<2x32xf32>
    %220 = vector.extract_strided_slice %32 {offsets = [10, 0], sizes = [2, 32], strides = [1, 1]} : vector<16x32xf32> to vector<2x32xf32>
    %221 = vector.extract_strided_slice %33 {offsets = [10, 0], sizes = [2, 32], strides = [1, 1]} : vector<16x32xf32> to vector<2x32xf32>
    %222 = arith.truncf %217 : vector<2x32xf32> to vector<2x32xbf16>
    %cst_64 = arith.constant dense<0.000000e+00> : vector<2x32xf32>
    %223 = tpu.matmul %222, %39, %cst_64 {dimension_numbers = #tpu.dot_dimension_numbers<[1], [0], [0], [1], [0, 0, 1, 1], [], []>} : vector<2x32xbf16>, vector<32x32xbf16>, vector<2x32xf32> -> vector<2x32xf32>
    %224 = arith.addf %218, %223 : vector<2x32xf32>
    %225 = arith.negf %224 : vector<2x32xf32>
    %226 = math.exp %225 : vector<2x32xf32>
    %cst_65 = arith.constant 1.000000e+00 : f32
    %227 = vector.broadcast %cst_65 : f32 to vector<2x32xf32>
    %228 = arith.addf %227, %226 : vector<2x32xf32>
    %229 = arith.divf %227, %228 : vector<2x32xf32>
    %cst_66 = arith.constant dense<0.000000e+00> : vector<2x32xf32>
    %230 = tpu.matmul %222, %41, %cst_66 {dimension_numbers = #tpu.dot_dimension_numbers<[1], [0], [0], [1], [0, 0, 1, 1], [], []>} : vector<2x32xbf16>, vector<32x32xbf16>, vector<2x32xf32> -> vector<2x32xf32>
    %231 = arith.addf %219, %230 : vector<2x32xf32>
    %232 = arith.negf %231 : vector<2x32xf32>
    %233 = math.exp %232 : vector<2x32xf32>
    %cst_67 = arith.constant 1.000000e+00 : f32
    %234 = vector.broadcast %cst_67 : f32 to vector<2x32xf32>
    %235 = arith.addf %234, %233 : vector<2x32xf32>
    %236 = arith.divf %234, %235 : vector<2x32xf32>
    %cst_68 = arith.constant dense<0.000000e+00> : vector<2x32xf32>
    %237 = tpu.matmul %222, %43, %cst_68 {dimension_numbers = #tpu.dot_dimension_numbers<[1], [0], [0], [1], [0, 0, 1, 1], [], []>} : vector<2x32xbf16>, vector<32x32xbf16>, vector<2x32xf32> -> vector<2x32xf32>
    %238 = arith.addf %220, %237 : vector<2x32xf32>
    %239 = math.tanh %238 : vector<2x32xf32>
    %cst_69 = arith.constant dense<0.000000e+00> : vector<2x32xf32>
    %240 = tpu.matmul %222, %45, %cst_69 {dimension_numbers = #tpu.dot_dimension_numbers<[1], [0], [0], [1], [0, 0, 1, 1], [], []>} : vector<2x32xbf16>, vector<32x32xbf16>, vector<2x32xf32> -> vector<2x32xf32>
    %241 = arith.addf %221, %240 : vector<2x32xf32>
    %242 = arith.negf %241 : vector<2x32xf32>
    %243 = math.exp %242 : vector<2x32xf32>
    %cst_70 = arith.constant 1.000000e+00 : f32
    %244 = vector.broadcast %cst_70 : f32 to vector<2x32xf32>
    %245 = arith.addf %244, %243 : vector<2x32xf32>
    %246 = arith.divf %244, %245 : vector<2x32xf32>
    %247 = arith.mulf %236, %215 : vector<2x32xf32>
    %248 = arith.mulf %229, %239 : vector<2x32xf32>
    %249 = arith.addf %247, %248 : vector<2x32xf32>
    %250 = math.tanh %249 : vector<2x32xf32>
    %251 = arith.mulf %246, %250 : vector<2x32xf32>
    %252 = vector.extract_strided_slice %30 {offsets = [12, 0], sizes = [2, 32], strides = [1, 1]} : vector<16x32xf32> to vector<2x32xf32>
    %253 = vector.extract_strided_slice %31 {offsets = [12, 0], sizes = [2, 32], strides = [1, 1]} : vector<16x32xf32> to vector<2x32xf32>
    %254 = vector.extract_strided_slice %32 {offsets = [12, 0], sizes = [2, 32], strides = [1, 1]} : vector<16x32xf32> to vector<2x32xf32>
    %255 = vector.extract_strided_slice %33 {offsets = [12, 0], sizes = [2, 32], strides = [1, 1]} : vector<16x32xf32> to vector<2x32xf32>
    %256 = arith.truncf %251 : vector<2x32xf32> to vector<2x32xbf16>
    %cst_71 = arith.constant dense<0.000000e+00> : vector<2x32xf32>
    %257 = tpu.matmul %256, %39, %cst_71 {dimension_numbers = #tpu.dot_dimension_numbers<[1], [0], [0], [1], [0, 0, 1, 1], [], []>} : vector<2x32xbf16>, vector<32x32xbf16>, vector<2x32xf32> -> vector<2x32xf32>
    %258 = arith.addf %252, %257 : vector<2x32xf32>
    %259 = arith.negf %258 : vector<2x32xf32>
    %260 = math.exp %259 : vector<2x32xf32>
    %cst_72 = arith.constant 1.000000e+00 : f32
    %261 = vector.broadcast %cst_72 : f32 to vector<2x32xf32>
    %262 = arith.addf %261, %260 : vector<2x32xf32>
    %263 = arith.divf %261, %262 : vector<2x32xf32>
    %cst_73 = arith.constant dense<0.000000e+00> : vector<2x32xf32>
    %264 = tpu.matmul %256, %41, %cst_73 {dimension_numbers = #tpu.dot_dimension_numbers<[1], [0], [0], [1], [0, 0, 1, 1], [], []>} : vector<2x32xbf16>, vector<32x32xbf16>, vector<2x32xf32> -> vector<2x32xf32>
    %265 = arith.addf %253, %264 : vector<2x32xf32>
    %266 = arith.negf %265 : vector<2x32xf32>
    %267 = math.exp %266 : vector<2x32xf32>
    %cst_74 = arith.constant 1.000000e+00 : f32
    %268 = vector.broadcast %cst_74 : f32 to vector<2x32xf32>
    %269 = arith.addf %268, %267 : vector<2x32xf32>
    %270 = arith.divf %268, %269 : vector<2x32xf32>
    %cst_75 = arith.constant dense<0.000000e+00> : vector<2x32xf32>
    %271 = tpu.matmul %256, %43, %cst_75 {dimension_numbers = #tpu.dot_dimension_numbers<[1], [0], [0], [1], [0, 0, 1, 1], [], []>} : vector<2x32xbf16>, vector<32x32xbf16>, vector<2x32xf32> -> vector<2x32xf32>
    %272 = arith.addf %254, %271 : vector<2x32xf32>
    %273 = math.tanh %272 : vector<2x32xf32>
    %cst_76 = arith.constant dense<0.000000e+00> : vector<2x32xf32>
    %274 = tpu.matmul %256, %45, %cst_76 {dimension_numbers = #tpu.dot_dimension_numbers<[1], [0], [0], [1], [0, 0, 1, 1], [], []>} : vector<2x32xbf16>, vector<32x32xbf16>, vector<2x32xf32> -> vector<2x32xf32>
    %275 = arith.addf %255, %274 : vector<2x32xf32>
    %276 = arith.negf %275 : vector<2x32xf32>
    %277 = math.exp %276 : vector<2x32xf32>
    %cst_77 = arith.constant 1.000000e+00 : f32
    %278 = vector.broadcast %cst_77 : f32 to vector<2x32xf32>
    %279 = arith.addf %278, %277 : vector<2x32xf32>
    %280 = arith.divf %278, %279 : vector<2x32xf32>
    %281 = arith.mulf %270, %249 : vector<2x32xf32>
    %282 = arith.mulf %263, %273 : vector<2x32xf32>
    %283 = arith.addf %281, %282 : vector<2x32xf32>
    %284 = math.tanh %283 : vector<2x32xf32>
    %285 = arith.mulf %280, %284 : vector<2x32xf32>
    %286 = vector.extract_strided_slice %30 {offsets = [14, 0], sizes = [2, 32], strides = [1, 1]} : vector<16x32xf32> to vector<2x32xf32>
    %287 = vector.extract_strided_slice %31 {offsets = [14, 0], sizes = [2, 32], strides = [1, 1]} : vector<16x32xf32> to vector<2x32xf32>
    %288 = vector.extract_strided_slice %32 {offsets = [14, 0], sizes = [2, 32], strides = [1, 1]} : vector<16x32xf32> to vector<2x32xf32>
    %289 = vector.extract_strided_slice %33 {offsets = [14, 0], sizes = [2, 32], strides = [1, 1]} : vector<16x32xf32> to vector<2x32xf32>
    %290 = arith.truncf %285 : vector<2x32xf32> to vector<2x32xbf16>
    %cst_78 = arith.constant dense<0.000000e+00> : vector<2x32xf32>
    %291 = tpu.matmul %290, %39, %cst_78 {dimension_numbers = #tpu.dot_dimension_numbers<[1], [0], [0], [1], [0, 0, 1, 1], [], []>} : vector<2x32xbf16>, vector<32x32xbf16>, vector<2x32xf32> -> vector<2x32xf32>
    %292 = arith.addf %286, %291 : vector<2x32xf32>
    %293 = arith.negf %292 : vector<2x32xf32>
    %294 = math.exp %293 : vector<2x32xf32>
    %cst_79 = arith.constant 1.000000e+00 : f32
    %295 = vector.broadcast %cst_79 : f32 to vector<2x32xf32>
    %296 = arith.addf %295, %294 : vector<2x32xf32>
    %297 = arith.divf %295, %296 : vector<2x32xf32>
    %cst_80 = arith.constant dense<0.000000e+00> : vector<2x32xf32>
    %298 = tpu.matmul %290, %41, %cst_80 {dimension_numbers = #tpu.dot_dimension_numbers<[1], [0], [0], [1], [0, 0, 1, 1], [], []>} : vector<2x32xbf16>, vector<32x32xbf16>, vector<2x32xf32> -> vector<2x32xf32>
    %299 = arith.addf %287, %298 : vector<2x32xf32>
    %300 = arith.negf %299 : vector<2x32xf32>
    %301 = math.exp %300 : vector<2x32xf32>
    %cst_81 = arith.constant 1.000000e+00 : f32
    %302 = vector.broadcast %cst_81 : f32 to vector<2x32xf32>
    %303 = arith.addf %302, %301 : vector<2x32xf32>
    %304 = arith.divf %302, %303 : vector<2x32xf32>
    %cst_82 = arith.constant dense<0.000000e+00> : vector<2x32xf32>
    %305 = tpu.matmul %290, %43, %cst_82 {dimension_numbers = #tpu.dot_dimension_numbers<[1], [0], [0], [1], [0, 0, 1, 1], [], []>} : vector<2x32xbf16>, vector<32x32xbf16>, vector<2x32xf32> -> vector<2x32xf32>
    %306 = arith.addf %288, %305 : vector<2x32xf32>
    %307 = math.tanh %306 : vector<2x32xf32>
    %cst_83 = arith.constant dense<0.000000e+00> : vector<2x32xf32>
    %308 = tpu.matmul %290, %45, %cst_83 {dimension_numbers = #tpu.dot_dimension_numbers<[1], [0], [0], [1], [0, 0, 1, 1], [], []>} : vector<2x32xbf16>, vector<32x32xbf16>, vector<2x32xf32> -> vector<2x32xf32>
    %309 = arith.addf %289, %308 : vector<2x32xf32>
    %310 = arith.negf %309 : vector<2x32xf32>
    %311 = math.exp %310 : vector<2x32xf32>
    %cst_84 = arith.constant 1.000000e+00 : f32
    %312 = vector.broadcast %cst_84 : f32 to vector<2x32xf32>
    %313 = arith.addf %312, %311 : vector<2x32xf32>
    %314 = arith.divf %312, %313 : vector<2x32xf32>
    %315 = arith.mulf %304, %283 : vector<2x32xf32>
    %316 = arith.mulf %297, %307 : vector<2x32xf32>
    %317 = arith.addf %315, %316 : vector<2x32xf32>
    %318 = math.tanh %317 : vector<2x32xf32>
    %319 = arith.mulf %314, %318 : vector<2x32xf32>
    %320 = vector.extract_strided_slice %34 {offsets = [0, 0], sizes = [2, 32], strides = [1, 1]} : vector<12x32xf32> to vector<2x32xf32>
    %321 = vector.extract_strided_slice %35 {offsets = [0, 0], sizes = [2, 32], strides = [1, 1]} : vector<12x32xf32> to vector<2x32xf32>
    %322 = vector.extract_strided_slice %36 {offsets = [0, 0], sizes = [2, 32], strides = [1, 1]} : vector<12x32xf32> to vector<2x32xf32>
    %323 = vector.extract_strided_slice %37 {offsets = [0, 0], sizes = [2, 32], strides = [1, 1]} : vector<12x32xf32> to vector<2x32xf32>
    %324 = arith.truncf %319 : vector<2x32xf32> to vector<2x32xbf16>
    %cst_85 = arith.constant dense<0.000000e+00> : vector<2x32xf32>
    %325 = tpu.matmul %324, %39, %cst_85 {dimension_numbers = #tpu.dot_dimension_numbers<[1], [0], [0], [1], [0, 0, 1, 1], [], []>} : vector<2x32xbf16>, vector<32x32xbf16>, vector<2x32xf32> -> vector<2x32xf32>
    %326 = arith.addf %320, %325 : vector<2x32xf32>
    %327 = arith.negf %326 : vector<2x32xf32>
    %328 = math.exp %327 : vector<2x32xf32>
    %cst_86 = arith.constant 1.000000e+00 : f32
    %329 = vector.broadcast %cst_86 : f32 to vector<2x32xf32>
    %330 = arith.addf %329, %328 : vector<2x32xf32>
    %331 = arith.divf %329, %330 : vector<2x32xf32>
    %cst_87 = arith.constant dense<0.000000e+00> : vector<2x32xf32>
    %332 = tpu.matmul %324, %41, %cst_87 {dimension_numbers = #tpu.dot_dimension_numbers<[1], [0], [0], [1], [0, 0, 1, 1], [], []>} : vector<2x32xbf16>, vector<32x32xbf16>, vector<2x32xf32> -> vector<2x32xf32>
    %333 = arith.addf %321, %332 : vector<2x32xf32>
    %334 = arith.negf %333 : vector<2x32xf32>
    %335 = math.exp %334 : vector<2x32xf32>
    %cst_88 = arith.constant 1.000000e+00 : f32
    %336 = vector.broadcast %cst_88 : f32 to vector<2x32xf32>
    %337 = arith.addf %336, %335 : vector<2x32xf32>
    %338 = arith.divf %336, %337 : vector<2x32xf32>
    %cst_89 = arith.constant dense<0.000000e+00> : vector<2x32xf32>
    %339 = tpu.matmul %324, %43, %cst_89 {dimension_numbers = #tpu.dot_dimension_numbers<[1], [0], [0], [1], [0, 0, 1, 1], [], []>} : vector<2x32xbf16>, vector<32x32xbf16>, vector<2x32xf32> -> vector<2x32xf32>
    %340 = arith.addf %322, %339 : vector<2x32xf32>
    %341 = math.tanh %340 : vector<2x32xf32>
    %cst_90 = arith.constant dense<0.000000e+00> : vector<2x32xf32>
    %342 = tpu.matmul %324, %45, %cst_90 {dimension_numbers = #tpu.dot_dimension_numbers<[1], [0], [0], [1], [0, 0, 1, 1], [], []>} : vector<2x32xbf16>, vector<32x32xbf16>, vector<2x32xf32> -> vector<2x32xf32>
    %343 = arith.addf %323, %342 : vector<2x32xf32>
    %344 = arith.negf %343 : vector<2x32xf32>
    %345 = math.exp %344 : vector<2x32xf32>
    %cst_91 = arith.constant 1.000000e+00 : f32
    %346 = vector.broadcast %cst_91 : f32 to vector<2x32xf32>
    %347 = arith.addf %346, %345 : vector<2x32xf32>
    %348 = arith.divf %346, %347 : vector<2x32xf32>
    %349 = arith.mulf %338, %317 : vector<2x32xf32>
    %350 = arith.mulf %331, %341 : vector<2x32xf32>
    %351 = arith.addf %349, %350 : vector<2x32xf32>
    %352 = math.tanh %351 : vector<2x32xf32>
    %353 = arith.mulf %348, %352 : vector<2x32xf32>
    %c0_92 = arith.constant 0 : index
    %c0_93 = arith.constant 0 : index
    %354 = vector.load %arg10[%c0_92, %c0_93] : memref<12x32xf32, #tpu.memory_space<vmem>>, vector<2x32xf32>
    tpu.vector_store %arg10[%c0_92, %c0_93], %353 {strides = array<i32>} : memref<12x32xf32, #tpu.memory_space<vmem>>, vector<2x32xf32>,
    %355 = vector.extract_strided_slice %34 {offsets = [2, 0], sizes = [2, 32], strides = [1, 1]} : vector<12x32xf32> to vector<2x32xf32>
    %356 = vector.extract_strided_slice %35 {offsets = [2, 0], sizes = [2, 32], strides = [1, 1]} : vector<12x32xf32> to vector<2x32xf32>
    %357 = vector.extract_strided_slice %36 {offsets = [2, 0], sizes = [2, 32], strides = [1, 1]} : vector<12x32xf32> to vector<2x32xf32>
    %358 = vector.extract_strided_slice %37 {offsets = [2, 0], sizes = [2, 32], strides = [1, 1]} : vector<12x32xf32> to vector<2x32xf32>
    %359 = arith.truncf %353 : vector<2x32xf32> to vector<2x32xbf16>
    %cst_94 = arith.constant dense<0.000000e+00> : vector<2x32xf32>
    %360 = tpu.matmul %359, %39, %cst_94 {dimension_numbers = #tpu.dot_dimension_numbers<[1], [0], [0], [1], [0, 0, 1, 1], [], []>} : vector<2x32xbf16>, vector<32x32xbf16>, vector<2x32xf32> -> vector<2x32xf32>
    %361 = arith.addf %355, %360 : vector<2x32xf32>
    %362 = arith.negf %361 : vector<2x32xf32>
    %363 = math.exp %362 : vector<2x32xf32>
    %cst_95 = arith.constant 1.000000e+00 : f32
    %364 = vector.broadcast %cst_95 : f32 to vector<2x32xf32>
    %365 = arith.addf %364, %363 : vector<2x32xf32>
    %366 = arith.divf %364, %365 : vector<2x32xf32>
    %cst_96 = arith.constant dense<0.000000e+00> : vector<2x32xf32>
    %367 = tpu.matmul %359, %41, %cst_96 {dimension_numbers = #tpu.dot_dimension_numbers<[1], [0], [0], [1], [0, 0, 1, 1], [], []>} : vector<2x32xbf16>, vector<32x32xbf16>, vector<2x32xf32> -> vector<2x32xf32>
    %368 = arith.addf %356, %367 : vector<2x32xf32>
    %369 = arith.negf %368 : vector<2x32xf32>
    %370 = math.exp %369 : vector<2x32xf32>
    %cst_97 = arith.constant 1.000000e+00 : f32
    %371 = vector.broadcast %cst_97 : f32 to vector<2x32xf32>
    %372 = arith.addf %371, %370 : vector<2x32xf32>
    %373 = arith.divf %371, %372 : vector<2x32xf32>
    %cst_98 = arith.constant dense<0.000000e+00> : vector<2x32xf32>
    %374 = tpu.matmul %359, %43, %cst_98 {dimension_numbers = #tpu.dot_dimension_numbers<[1], [0], [0], [1], [0, 0, 1, 1], [], []>} : vector<2x32xbf16>, vector<32x32xbf16>, vector<2x32xf32> -> vector<2x32xf32>
    %375 = arith.addf %357, %374 : vector<2x32xf32>
    %376 = math.tanh %375 : vector<2x32xf32>
    %cst_99 = arith.constant dense<0.000000e+00> : vector<2x32xf32>
    %377 = tpu.matmul %359, %45, %cst_99 {dimension_numbers = #tpu.dot_dimension_numbers<[1], [0], [0], [1], [0, 0, 1, 1], [], []>} : vector<2x32xbf16>, vector<32x32xbf16>, vector<2x32xf32> -> vector<2x32xf32>
    %378 = arith.addf %358, %377 : vector<2x32xf32>
    %379 = arith.negf %378 : vector<2x32xf32>
    %380 = math.exp %379 : vector<2x32xf32>
    %cst_100 = arith.constant 1.000000e+00 : f32
    %381 = vector.broadcast %cst_100 : f32 to vector<2x32xf32>
    %382 = arith.addf %381, %380 : vector<2x32xf32>
    %383 = arith.divf %381, %382 : vector<2x32xf32>
    %384 = arith.mulf %373, %351 : vector<2x32xf32>
    %385 = arith.mulf %366, %376 : vector<2x32xf32>
    %386 = arith.addf %384, %385 : vector<2x32xf32>
    %387 = math.tanh %386 : vector<2x32xf32>
    %388 = arith.mulf %383, %387 : vector<2x32xf32>
    %c2_101 = arith.constant 2 : index
    %c0_102 = arith.constant 0 : index
    %389 = vector.load %arg10[%c2_101, %c0_102] : memref<12x32xf32, #tpu.memory_space<vmem>>, vector<2x32xf32>
    tpu.vector_store %arg10[%c2_101, %c0_102], %388 {strides = array<i32>} : memref<12x32xf32, #tpu.memory_space<vmem>>, vector<2x32xf32>,
    %390 = vector.extract_strided_slice %34 {offsets = [4, 0], sizes = [2, 32], strides = [1, 1]} : vector<12x32xf32> to vector<2x32xf32>
    %391 = vector.extract_strided_slice %35 {offsets = [4, 0], sizes = [2, 32], strides = [1, 1]} : vector<12x32xf32> to vector<2x32xf32>
    %392 = vector.extract_strided_slice %36 {offsets = [4, 0], sizes = [2, 32], strides = [1, 1]} : vector<12x32xf32> to vector<2x32xf32>
    %393 = vector.extract_strided_slice %37 {offsets = [4, 0], sizes = [2, 32], strides = [1, 1]} : vector<12x32xf32> to vector<2x32xf32>
    %394 = arith.truncf %388 : vector<2x32xf32> to vector<2x32xbf16>
    %cst_103 = arith.constant dense<0.000000e+00> : vector<2x32xf32>
    %395 = tpu.matmul %394, %39, %cst_103 {dimension_numbers = #tpu.dot_dimension_numbers<[1], [0], [0], [1], [0, 0, 1, 1], [], []>} : vector<2x32xbf16>, vector<32x32xbf16>, vector<2x32xf32> -> vector<2x32xf32>
    %396 = arith.addf %390, %395 : vector<2x32xf32>
    %397 = arith.negf %396 : vector<2x32xf32>
    %398 = math.exp %397 : vector<2x32xf32>
    %cst_104 = arith.constant 1.000000e+00 : f32
    %399 = vector.broadcast %cst_104 : f32 to vector<2x32xf32>
    %400 = arith.addf %399, %398 : vector<2x32xf32>
    %401 = arith.divf %399, %400 : vector<2x32xf32>
    %cst_105 = arith.constant dense<0.000000e+00> : vector<2x32xf32>
    %402 = tpu.matmul %394, %41, %cst_105 {dimension_numbers = #tpu.dot_dimension_numbers<[1], [0], [0], [1], [0, 0, 1, 1], [], []>} : vector<2x32xbf16>, vector<32x32xbf16>, vector<2x32xf32> -> vector<2x32xf32>
    %403 = arith.addf %391, %402 : vector<2x32xf32>
    %404 = arith.negf %403 : vector<2x32xf32>
    %405 = math.exp %404 : vector<2x32xf32>
    %cst_106 = arith.constant 1.000000e+00 : f32
    %406 = vector.broadcast %cst_106 : f32 to vector<2x32xf32>
    %407 = arith.addf %406, %405 : vector<2x32xf32>
    %408 = arith.divf %406, %407 : vector<2x32xf32>
    %cst_107 = arith.constant dense<0.000000e+00> : vector<2x32xf32>
    %409 = tpu.matmul %394, %43, %cst_107 {dimension_numbers = #tpu.dot_dimension_numbers<[1], [0], [0], [1], [0, 0, 1, 1], [], []>} : vector<2x32xbf16>, vector<32x32xbf16>, vector<2x32xf32> -> vector<2x32xf32>
    %410 = arith.addf %392, %409 : vector<2x32xf32>
    %411 = math.tanh %410 : vector<2x32xf32>
    %cst_108 = arith.constant dense<0.000000e+00> : vector<2x32xf32>
    %412 = tpu.matmul %394, %45, %cst_108 {dimension_numbers = #tpu.dot_dimension_numbers<[1], [0], [0], [1], [0, 0, 1, 1], [], []>} : vector<2x32xbf16>, vector<32x32xbf16>, vector<2x32xf32> -> vector<2x32xf32>
    %413 = arith.addf %393, %412 : vector<2x32xf32>
    %414 = arith.negf %413 : vector<2x32xf32>
    %415 = math.exp %414 : vector<2x32xf32>
    %cst_109 = arith.constant 1.000000e+00 : f32
    %416 = vector.broadcast %cst_109 : f32 to vector<2x32xf32>
    %417 = arith.addf %416, %415 : vector<2x32xf32>
    %418 = arith.divf %416, %417 : vector<2x32xf32>
    %419 = arith.mulf %408, %386 : vector<2x32xf32>
    %420 = arith.mulf %401, %411 : vector<2x32xf32>
    %421 = arith.addf %419, %420 : vector<2x32xf32>
    %422 = math.tanh %421 : vector<2x32xf32>
    %423 = arith.mulf %418, %422 : vector<2x32xf32>
    %c4 = arith.constant 4 : index
    %c0_110 = arith.constant 0 : index
    %424 = vector.load %arg10[%c4, %c0_110] : memref<12x32xf32, #tpu.memory_space<vmem>>, vector<2x32xf32>
    tpu.vector_store %arg10[%c4, %c0_110], %423 {strides = array<i32>} : memref<12x32xf32, #tpu.memory_space<vmem>>, vector<2x32xf32>,
    %425 = vector.extract_strided_slice %34 {offsets = [6, 0], sizes = [2, 32], strides = [1, 1]} : vector<12x32xf32> to vector<2x32xf32>
    %426 = vector.extract_strided_slice %35 {offsets = [6, 0], sizes = [2, 32], strides = [1, 1]} : vector<12x32xf32> to vector<2x32xf32>
    %427 = vector.extract_strided_slice %36 {offsets = [6, 0], sizes = [2, 32], strides = [1, 1]} : vector<12x32xf32> to vector<2x32xf32>
    %428 = vector.extract_strided_slice %37 {offsets = [6, 0], sizes = [2, 32], strides = [1, 1]} : vector<12x32xf32> to vector<2x32xf32>
    %429 = arith.truncf %423 : vector<2x32xf32> to vector<2x32xbf16>
    %cst_111 = arith.constant dense<0.000000e+00> : vector<2x32xf32>
    %430 = tpu.matmul %429, %39, %cst_111 {dimension_numbers = #tpu.dot_dimension_numbers<[1], [0], [0], [1], [0, 0, 1, 1], [], []>} : vector<2x32xbf16>, vector<32x32xbf16>, vector<2x32xf32> -> vector<2x32xf32>
    %431 = arith.addf %425, %430 : vector<2x32xf32>
    %432 = arith.negf %431 : vector<2x32xf32>
    %433 = math.exp %432 : vector<2x32xf32>
    %cst_112 = arith.constant 1.000000e+00 : f32
    %434 = vector.broadcast %cst_112 : f32 to vector<2x32xf32>
    %435 = arith.addf %434, %433 : vector<2x32xf32>
    %436 = arith.divf %434, %435 : vector<2x32xf32>
    %cst_113 = arith.constant dense<0.000000e+00> : vector<2x32xf32>
    %437 = tpu.matmul %429, %41, %cst_113 {dimension_numbers = #tpu.dot_dimension_numbers<[1], [0], [0], [1], [0, 0, 1, 1], [], []>} : vector<2x32xbf16>, vector<32x32xbf16>, vector<2x32xf32> -> vector<2x32xf32>
    %438 = arith.addf %426, %437 : vector<2x32xf32>
    %439 = arith.negf %438 : vector<2x32xf32>
    %440 = math.exp %439 : vector<2x32xf32>
    %cst_114 = arith.constant 1.000000e+00 : f32
    %441 = vector.broadcast %cst_114 : f32 to vector<2x32xf32>
    %442 = arith.addf %441, %440 : vector<2x32xf32>
    %443 = arith.divf %441, %442 : vector<2x32xf32>
    %cst_115 = arith.constant dense<0.000000e+00> : vector<2x32xf32>
    %444 = tpu.matmul %429, %43, %cst_115 {dimension_numbers = #tpu.dot_dimension_numbers<[1], [0], [0], [1], [0, 0, 1, 1], [], []>} : vector<2x32xbf16>, vector<32x32xbf16>, vector<2x32xf32> -> vector<2x32xf32>
    %445 = arith.addf %427, %444 : vector<2x32xf32>
    %446 = math.tanh %445 : vector<2x32xf32>
    %cst_116 = arith.constant dense<0.000000e+00> : vector<2x32xf32>
    %447 = tpu.matmul %429, %45, %cst_116 {dimension_numbers = #tpu.dot_dimension_numbers<[1], [0], [0], [1], [0, 0, 1, 1], [], []>} : vector<2x32xbf16>, vector<32x32xbf16>, vector<2x32xf32> -> vector<2x32xf32>
    %448 = arith.addf %428, %447 : vector<2x32xf32>
    %449 = arith.negf %448 : vector<2x32xf32>
    %450 = math.exp %449 : vector<2x32xf32>
    %cst_117 = arith.constant 1.000000e+00 : f32
    %451 = vector.broadcast %cst_117 : f32 to vector<2x32xf32>
    %452 = arith.addf %451, %450 : vector<2x32xf32>
    %453 = arith.divf %451, %452 : vector<2x32xf32>
    %454 = arith.mulf %443, %421 : vector<2x32xf32>
    %455 = arith.mulf %436, %446 : vector<2x32xf32>
    %456 = arith.addf %454, %455 : vector<2x32xf32>
    %457 = math.tanh %456 : vector<2x32xf32>
    %458 = arith.mulf %453, %457 : vector<2x32xf32>
    %c6 = arith.constant 6 : index
    %c0_118 = arith.constant 0 : index
    %459 = vector.load %arg10[%c6, %c0_118] : memref<12x32xf32, #tpu.memory_space<vmem>>, vector<2x32xf32>
    tpu.vector_store %arg10[%c6, %c0_118], %458 {strides = array<i32>} : memref<12x32xf32, #tpu.memory_space<vmem>>, vector<2x32xf32>,
    %460 = vector.extract_strided_slice %34 {offsets = [8, 0], sizes = [2, 32], strides = [1, 1]} : vector<12x32xf32> to vector<2x32xf32>
    %461 = vector.extract_strided_slice %35 {offsets = [8, 0], sizes = [2, 32], strides = [1, 1]} : vector<12x32xf32> to vector<2x32xf32>
    %462 = vector.extract_strided_slice %36 {offsets = [8, 0], sizes = [2, 32], strides = [1, 1]} : vector<12x32xf32> to vector<2x32xf32>
    %463 = vector.extract_strided_slice %37 {offsets = [8, 0], sizes = [2, 32], strides = [1, 1]} : vector<12x32xf32> to vector<2x32xf32>
    %464 = arith.truncf %458 : vector<2x32xf32> to vector<2x32xbf16>
    %cst_119 = arith.constant dense<0.000000e+00> : vector<2x32xf32>
    %465 = tpu.matmul %464, %39, %cst_119 {dimension_numbers = #tpu.dot_dimension_numbers<[1], [0], [0], [1], [0, 0, 1, 1], [], []>} : vector<2x32xbf16>, vector<32x32xbf16>, vector<2x32xf32> -> vector<2x32xf32>
    %466 = arith.addf %460, %465 : vector<2x32xf32>
    %467 = arith.negf %466 : vector<2x32xf32>
    %468 = math.exp %467 : vector<2x32xf32>
    %cst_120 = arith.constant 1.000000e+00 : f32
    %469 = vector.broadcast %cst_120 : f32 to vector<2x32xf32>
    %470 = arith.addf %469, %468 : vector<2x32xf32>
    %471 = arith.divf %469, %470 : vector<2x32xf32>
    %cst_121 = arith.constant dense<0.000000e+00> : vector<2x32xf32>
    %472 = tpu.matmul %464, %41, %cst_121 {dimension_numbers = #tpu.dot_dimension_numbers<[1], [0], [0], [1], [0, 0, 1, 1], [], []>} : vector<2x32xbf16>, vector<32x32xbf16>, vector<2x32xf32> -> vector<2x32xf32>
    %473 = arith.addf %461, %472 : vector<2x32xf32>
    %474 = arith.negf %473 : vector<2x32xf32>
    %475 = math.exp %474 : vector<2x32xf32>
    %cst_122 = arith.constant 1.000000e+00 : f32
    %476 = vector.broadcast %cst_122 : f32 to vector<2x32xf32>
    %477 = arith.addf %476, %475 : vector<2x32xf32>
    %478 = arith.divf %476, %477 : vector<2x32xf32>
    %cst_123 = arith.constant dense<0.000000e+00> : vector<2x32xf32>
    %479 = tpu.matmul %464, %43, %cst_123 {dimension_numbers = #tpu.dot_dimension_numbers<[1], [0], [0], [1], [0, 0, 1, 1], [], []>} : vector<2x32xbf16>, vector<32x32xbf16>, vector<2x32xf32> -> vector<2x32xf32>
    %480 = arith.addf %462, %479 : vector<2x32xf32>
    %481 = math.tanh %480 : vector<2x32xf32>
    %cst_124 = arith.constant dense<0.000000e+00> : vector<2x32xf32>
    %482 = tpu.matmul %464, %45, %cst_124 {dimension_numbers = #tpu.dot_dimension_numbers<[1], [0], [0], [1], [0, 0, 1, 1], [], []>} : vector<2x32xbf16>, vector<32x32xbf16>, vector<2x32xf32> -> vector<2x32xf32>
    %483 = arith.addf %463, %482 : vector<2x32xf32>
    %484 = arith.negf %483 : vector<2x32xf32>
    %485 = math.exp %484 : vector<2x32xf32>
    %cst_125 = arith.constant 1.000000e+00 : f32
    %486 = vector.broadcast %cst_125 : f32 to vector<2x32xf32>
    %487 = arith.addf %486, %485 : vector<2x32xf32>
    %488 = arith.divf %486, %487 : vector<2x32xf32>
    %489 = arith.mulf %478, %456 : vector<2x32xf32>
    %490 = arith.mulf %471, %481 : vector<2x32xf32>
    %491 = arith.addf %489, %490 : vector<2x32xf32>
    %492 = math.tanh %491 : vector<2x32xf32>
    %493 = arith.mulf %488, %492 : vector<2x32xf32>
    %c8 = arith.constant 8 : index
    %c0_126 = arith.constant 0 : index
    %494 = vector.load %arg10[%c8, %c0_126] : memref<12x32xf32, #tpu.memory_space<vmem>>, vector<2x32xf32>
    tpu.vector_store %arg10[%c8, %c0_126], %493 {strides = array<i32>} : memref<12x32xf32, #tpu.memory_space<vmem>>, vector<2x32xf32>,
    %495 = vector.extract_strided_slice %34 {offsets = [10, 0], sizes = [2, 32], strides = [1, 1]} : vector<12x32xf32> to vector<2x32xf32>
    %496 = vector.extract_strided_slice %35 {offsets = [10, 0], sizes = [2, 32], strides = [1, 1]} : vector<12x32xf32> to vector<2x32xf32>
    %497 = vector.extract_strided_slice %36 {offsets = [10, 0], sizes = [2, 32], strides = [1, 1]} : vector<12x32xf32> to vector<2x32xf32>
    %498 = vector.extract_strided_slice %37 {offsets = [10, 0], sizes = [2, 32], strides = [1, 1]} : vector<12x32xf32> to vector<2x32xf32>
    %499 = arith.truncf %493 : vector<2x32xf32> to vector<2x32xbf16>
    %cst_127 = arith.constant dense<0.000000e+00> : vector<2x32xf32>
    %500 = tpu.matmul %499, %39, %cst_127 {dimension_numbers = #tpu.dot_dimension_numbers<[1], [0], [0], [1], [0, 0, 1, 1], [], []>} : vector<2x32xbf16>, vector<32x32xbf16>, vector<2x32xf32> -> vector<2x32xf32>
    %501 = arith.addf %495, %500 : vector<2x32xf32>
    %502 = arith.negf %501 : vector<2x32xf32>
    %503 = math.exp %502 : vector<2x32xf32>
    %cst_128 = arith.constant 1.000000e+00 : f32
    %504 = vector.broadcast %cst_128 : f32 to vector<2x32xf32>
    %505 = arith.addf %504, %503 : vector<2x32xf32>
    %506 = arith.divf %504, %505 : vector<2x32xf32>
    %cst_129 = arith.constant dense<0.000000e+00> : vector<2x32xf32>
    %507 = tpu.matmul %499, %41, %cst_129 {dimension_numbers = #tpu.dot_dimension_numbers<[1], [0], [0], [1], [0, 0, 1, 1], [], []>} : vector<2x32xbf16>, vector<32x32xbf16>, vector<2x32xf32> -> vector<2x32xf32>
    %508 = arith.addf %496, %507 : vector<2x32xf32>
    %509 = arith.negf %508 : vector<2x32xf32>
    %510 = math.exp %509 : vector<2x32xf32>
    %cst_130 = arith.constant 1.000000e+00 : f32
    %511 = vector.broadcast %cst_130 : f32 to vector<2x32xf32>
    %512 = arith.addf %511, %510 : vector<2x32xf32>
    %513 = arith.divf %511, %512 : vector<2x32xf32>
    %cst_131 = arith.constant dense<0.000000e+00> : vector<2x32xf32>
    %514 = tpu.matmul %499, %43, %cst_131 {dimension_numbers = #tpu.dot_dimension_numbers<[1], [0], [0], [1], [0, 0, 1, 1], [], []>} : vector<2x32xbf16>, vector<32x32xbf16>, vector<2x32xf32> -> vector<2x32xf32>
    %515 = arith.addf %497, %514 : vector<2x32xf32>
    %516 = math.tanh %515 : vector<2x32xf32>
    %cst_132 = arith.constant dense<0.000000e+00> : vector<2x32xf32>
    %517 = tpu.matmul %499, %45, %cst_132 {dimension_numbers = #tpu.dot_dimension_numbers<[1], [0], [0], [1], [0, 0, 1, 1], [], []>} : vector<2x32xbf16>, vector<32x32xbf16>, vector<2x32xf32> -> vector<2x32xf32>
    %518 = arith.addf %498, %517 : vector<2x32xf32>
    %519 = arith.negf %518 : vector<2x32xf32>
    %520 = math.exp %519 : vector<2x32xf32>
    %cst_133 = arith.constant 1.000000e+00 : f32
    %521 = vector.broadcast %cst_133 : f32 to vector<2x32xf32>
    %522 = arith.addf %521, %520 : vector<2x32xf32>
    %523 = arith.divf %521, %522 : vector<2x32xf32>
    %524 = arith.mulf %513, %491 : vector<2x32xf32>
    %525 = arith.mulf %506, %516 : vector<2x32xf32>
    %526 = arith.addf %524, %525 : vector<2x32xf32>
    %527 = math.tanh %526 : vector<2x32xf32>
    %528 = arith.mulf %523, %527 : vector<2x32xf32>
    %c10 = arith.constant 10 : index
    %c0_134 = arith.constant 0 : index
    %529 = vector.load %arg10[%c10, %c0_134] : memref<12x32xf32, #tpu.memory_space<vmem>>, vector<2x32xf32>
    tpu.vector_store %arg10[%c10, %c0_134], %528 {strides = array<i32>} : memref<12x32xf32, #tpu.memory_space<vmem>>, vector<2x32xf32>,
    %c0_135 = arith.constant 0 : index
    %c0_136 = arith.constant 0 : index
    %530 = vector.load %arg10[%c0_135, %c0_136] : memref<12x32xf32, #tpu.memory_space<vmem>>, vector<12x32xf32>
    %531 = arith.truncf %530 : vector<12x32xf32> to vector<12x32xbf16>
    %c0_137 = arith.constant 0 : index
    %c0_138 = arith.constant 0 : index
    %532 = vector.load %arg7[%c0_137, %c0_138] : memref<32x128xbf16, #tpu.memory_space<vmem>>, vector<32x128xbf16>
    %cst_139 = arith.constant dense<0.000000e+00> : vector<12x128xf32>
    %533 = tpu.matmul %531, %532, %cst_139 {dimension_numbers = #tpu.dot_dimension_numbers<[1], [0], [0], [1], [0, 0, 1, 1], [], []>} : vector<12x32xbf16>, vector<32x128xbf16>, vector<12x128xf32> -> vector<12x128xf32>
    %c0_140 = arith.constant 0 : index
    %c0_141 = arith.constant 0 : index
    %534 = vector.load %arg8[%c0_140, %c0_141] : memref<1x128xf32, #tpu.memory_space<vmem>>, vector<1x128xf32>
    %535 = vector.broadcast %534 : vector<1x128xf32> to vector<12x128xf32>
    %536 = arith.addf %533, %535 : vector<12x128xf32>
    %537 = vector.extract_strided_slice %536 {offsets = [0, 0], sizes = [2, 128], strides = [1, 1]} : vector<12x128xf32> to vector<2x128xf32>
    %c0_142 = arith.constant 0 : index
    %c0_143 = arith.constant 0 : index
    %c0_144 = arith.constant 0 : index
    %538 = vector.load %arg9[%c0_142, %c0_143, %c0_144] : memref<2x6x128xf32, #tpu.memory_space<vmem>>, vector<2x1x128xf32>
    %539 = vector.shape_cast %538 : vector<2x1x128xf32> to vector<2x128xf32>
    %540 = vector.shape_cast %537 : vector<2x128xf32> to vector<2x1x128xf32>
    tpu.vector_store %arg9[%c0_142, %c0_143, %c0_144], %540 {strides = array<i32>} : memref<2x6x128xf32, #tpu.memory_space<vmem>>, vector<2x1x128xf32>,
    %541 = vector.extract_strided_slice %536 {offsets = [2, 0], sizes = [2, 128], strides = [1, 1]} : vector<12x128xf32> to vector<2x128xf32>
    %c0_145 = arith.constant 0 : index
    %c1_146 = arith.constant 1 : index
    %c0_147 = arith.constant 0 : index
    %542 = vector.load %arg9[%c0_145, %c1_146, %c0_147] : memref<2x6x128xf32, #tpu.memory_space<vmem>>, vector<2x1x128xf32>
    %543 = vector.shape_cast %542 : vector<2x1x128xf32> to vector<2x128xf32>
    %544 = vector.shape_cast %541 : vector<2x128xf32> to vector<2x1x128xf32>
    tpu.vector_store %arg9[%c0_145, %c1_146, %c0_147], %544 {strides = array<i32>} : memref<2x6x128xf32, #tpu.memory_space<vmem>>, vector<2x1x128xf32>,
    %545 = vector.extract_strided_slice %536 {offsets = [4, 0], sizes = [2, 128], strides = [1, 1]} : vector<12x128xf32> to vector<2x128xf32>
    %c0_148 = arith.constant 0 : index
    %c2_149 = arith.constant 2 : index
    %c0_150 = arith.constant 0 : index
    %546 = vector.load %arg9[%c0_148, %c2_149, %c0_150] : memref<2x6x128xf32, #tpu.memory_space<vmem>>, vector<2x1x128xf32>
    %547 = vector.shape_cast %546 : vector<2x1x128xf32> to vector<2x128xf32>
    %548 = vector.shape_cast %545 : vector<2x128xf32> to vector<2x1x128xf32>
    tpu.vector_store %arg9[%c0_148, %c2_149, %c0_150], %548 {strides = array<i32>} : memref<2x6x128xf32, #tpu.memory_space<vmem>>, vector<2x1x128xf32>,
    %549 = vector.extract_strided_slice %536 {offsets = [6, 0], sizes = [2, 128], strides = [1, 1]} : vector<12x128xf32> to vector<2x128xf32>
    %c0_151 = arith.constant 0 : index
    %c3_152 = arith.constant 3 : index
    %c0_153 = arith.constant 0 : index
    %550 = vector.load %arg9[%c0_151, %c3_152, %c0_153] : memref<2x6x128xf32, #tpu.memory_space<vmem>>, vector<2x1x128xf32>
    %551 = vector.shape_cast %550 : vector<2x1x128xf32> to vector<2x128xf32>
    %552 = vector.shape_cast %549 : vector<2x128xf32> to vector<2x1x128xf32>
    tpu.vector_store %arg9[%c0_151, %c3_152, %c0_153], %552 {strides = array<i32>} : memref<2x6x128xf32, #tpu.memory_space<vmem>>, vector<2x1x128xf32>,
    %553 = vector.extract_strided_slice %536 {offsets = [8, 0], sizes = [2, 128], strides = [1, 1]} : vector<12x128xf32> to vector<2x128xf32>
    %c0_154 = arith.constant 0 : index
    %c4_155 = arith.constant 4 : index
    %c0_156 = arith.constant 0 : index
    %554 = vector.load %arg9[%c0_154, %c4_155, %c0_156] : memref<2x6x128xf32, #tpu.memory_space<vmem>>, vector<2x1x128xf32>
    %555 = vector.shape_cast %554 : vector<2x1x128xf32> to vector<2x128xf32>
    %556 = vector.shape_cast %553 : vector<2x128xf32> to vector<2x1x128xf32>
    tpu.vector_store %arg9[%c0_154, %c4_155, %c0_156], %556 {strides = array<i32>} : memref<2x6x128xf32, #tpu.memory_space<vmem>>, vector<2x1x128xf32>,
    %557 = vector.extract_strided_slice %536 {offsets = [10, 0], sizes = [2, 128], strides = [1, 1]} : vector<12x128xf32> to vector<2x128xf32>
    %c0_157 = arith.constant 0 : index
    %c5 = arith.constant 5 : index
    %c0_158 = arith.constant 0 : index
    %558 = vector.load %arg9[%c0_157, %c5, %c0_158] : memref<2x6x128xf32, #tpu.memory_space<vmem>>, vector<2x1x128xf32>
    %559 = vector.shape_cast %558 : vector<2x1x128xf32> to vector<2x128xf32>
    %560 = vector.shape_cast %557 : vector<2x128xf32> to vector<2x1x128xf32>
    tpu.vector_store %arg9[%c0_157, %c5, %c0_158], %560 {strides = array<i32>} : memref<2x6x128xf32, #tpu.memory_space<vmem>>, vector<2x1x128xf32>,
    return
  }
}

</mosaic_0001>

<llo_original>
// kernel: seq2seq_forward.1
$region0: #{seq2seq_forward.1}
  #allocation0 [shape = 'u32[]', space=smem, size = 0x4, offset = 0x4, fixed_abs, tag = 'smem constant byte address 0x4 - core index']
  #allocation1 [shape = 'u32[144,128]{1,0:T(1,128)}', space=vmem, size = 0x12000, scoped, tag = 'internal scratch']
  #allocation2 [shape = 'f32[12,32]{1,0:T(8,128)}', space=vmem, size = 0x2000, scoped, tag = 'scratch operand']
  %s0 = inlined_call_operand.vmem [shape: s32[16,1], index: 0, kind: input, shape index: {}]
  %s1 = inlined_call_operand.vmem [shape: s32[12,1], index: 1, kind: input, shape index: {}]
  %s2 = inlined_call_operand.vmem [shape: bf16[20,16], index: 2, kind: input, shape index: {}]
  %s3 = inlined_call_operand.vmem [shape: bf16[24,16], index: 3, kind: input, shape index: {}]
  %s4 = inlined_call_operand.vmem [shape: bf16[16,128], index: 4, kind: input, shape index: {}]
  %s5 = inlined_call_operand.vmem [shape: bf16[4,32,32], index: 5, kind: input, shape index: {}]
  %s6 = inlined_call_operand.vmem [shape: f32[1,128], index: 6, kind: input, shape index: {}]
  %s7 = inlined_call_operand.vmem [shape: bf16[32,128], index: 7, kind: input, shape index: {}]
  %s8 = inlined_call_operand.vmem [shape: f32[1,128], index: 8, kind: input, shape index: {}]
  %s9 = inlined_call_operand.vmem [shape: f32[2,6,128], index: 9, kind: output, shape index: {}]
  %s10 = sld [smem:[#allocation0]]
  $region46: #{seq2seq_forward.1} parent=0
    _
  %s12 = ssub.s32 1, %s10
  %s13 = scalar_select 0, %s12, %s10
  // Predicated region
  $region2: #{seq2seq_forward.1} parent=0 // pred_check
    _
  $region3: #{seq2seq_forward.1} parent=0 // pred_check_branch
    %15 = sbr.rel (0) target = $region5
  $region4: #{seq2seq_forward.1} parent=0 // pred_region
    _
  $region5: #{seq2seq_forward.1} parent=0 // pred_fallthru
    _
  // Predicated region
  $region6: #{seq2seq_forward.1} parent=0 // pred_check
    _
  $region7: #{seq2seq_forward.1} parent=0 // pred_check_branch
    %17 = sbr.rel (0) target = $region9
  $region8: #{seq2seq_forward.1} parent=0 // pred_region
    _
  $region9: #{seq2seq_forward.1} parent=0 // pred_fallthru
    _
  // Predicated region
  $region10: #{seq2seq_forward.1} parent=0 // pred_check
    _
  $region11: #{seq2seq_forward.1} parent=0 // pred_check_branch
    %19 = sbr.rel (0) target = $region13
  $region12: #{seq2seq_forward.1} parent=0 // pred_region
    _
  $region13: #{seq2seq_forward.1} parent=0 // pred_fallthru
    _
  // Predicated region
  $region14: #{seq2seq_forward.1} parent=0 // pred_check
    _
  $region15: #{seq2seq_forward.1} parent=0 // pred_check_branch
    %21 = sbr.rel (0) target = $region17
  $region16: #{seq2seq_forward.1} parent=0 // pred_region
    _
  $region17: #{seq2seq_forward.1} parent=0 // pred_fallthru
    _
  // Predicated region
  $region18: #{seq2seq_forward.1} parent=0 // pred_check
    _
  $region19: #{seq2seq_forward.1} parent=0 // pred_check_branch
    %23 = sbr.rel (0) target = $region21
  $region20: #{seq2seq_forward.1} parent=0 // pred_region
    _
  $region21: #{seq2seq_forward.1} parent=0 // pred_fallthru
    _
  // Predicated region
  $region22: #{seq2seq_forward.1} parent=0 // pred_check
    _
  $region23: #{seq2seq_forward.1} parent=0 // pred_check_branch
    %25 = sbr.rel (0) target = $region25
  $region24: #{seq2seq_forward.1} parent=0 // pred_region
    _
  $region25: #{seq2seq_forward.1} parent=0 // pred_fallthru
    _
  // Predicated region
  $region26: #{seq2seq_forward.1} parent=0 // pred_check
    _
  $region27: #{seq2seq_forward.1} parent=0 // pred_check_branch
    %27 = sbr.rel (0) target = $region29
  $region28: #{seq2seq_forward.1} parent=0 // pred_region
    _
  $region29: #{seq2seq_forward.1} parent=0 // pred_fallthru
    _
  // Predicated region
  $region30: #{seq2seq_forward.1} parent=0 // pred_check
    _
  $region31: #{seq2seq_forward.1} parent=0 // pred_check_branch
    %29 = sbr.rel (0) target = $region33
  $region32: #{seq2seq_forward.1} parent=0 // pred_region
    _
  $region33: #{seq2seq_forward.1} parent=0 // pred_fallthru
    _
  // Predicated region
  $region34: #{seq2seq_forward.1} parent=0 // pred_check
    _
  $region35: #{seq2seq_forward.1} parent=0 // pred_check_branch
    %31 = sbr.rel (0) target = $region37
  $region36: #{seq2seq_forward.1} parent=0 // pred_region
    _
  $region37: #{seq2seq_forward.1} parent=0 // pred_fallthru
    _
  %v33 = vld [vmem:[%s4] sm:$0xf]
  %v34 = vld [vmem:[%s4 + $0x4] sm:$0xf]
  %v35 = vld [vmem:[%s6] sm:$0x1]
  %v36 = vld [vmem:[%s2] sm:$0xf]
  %v37 = vld [vmem:[%s2 + $0x4] sm:$0xf]
  %v38 = vld [vmem:[%s2 + $0x8] sm:$0x3]
  %v40 = vlaneseq
  %v41 = vshrl.u32 %v40, 7
  %v42 = vsub.s32 0, %v41
  %v43 = vrot.slane %v35, %v42
  %v48 = vunpack.c.l.b16 %v36
  %v49 = vunpack.c.l.b16 %v37
  %v50 = vunpack.c.l.b16 %v38
  %v51 = vpack.c.b16 %v49, %v48
  %v52 = vpack.c.b16 %v50, %v50
  %v55 = vunpack.c.l.b16 %v33
  %v56 = vunpack.c.l.b16 %v34
  %v57 = vpack.c.b16 %v56, %v55
  %vm59 = vcmask 130048
  %v61 = vsel %vm59, %v51, 0
  %v64 = vsel %vm59, %v52, 0
  %66 = vmatprep.subr.bf16.mxu0 0
  %67 = vmatpush1.bf16.msra.mxu0 %v57
  %68 = vmatprep.subr.bf16.mxu0 0
  %69 = vmatpush1.bf16.msra.mxu0 0
  %70 = vmatprep.subr.bf16.mxu0 0
  %71 = vmatpush1.bf16.msra.mxu0 0
  %72 = vmatprep.subr.bf16.mxu0 0
  %73 = vmatpush1.bf16.msra.mxu0 0
  %74 = vmatprep.subr.bf16.mxu0 0
  %75 = vmatpush1.bf16.msra.mxu0 0
  %76 = vmatprep.subr.bf16.mxu0 0
  %77 = vmatpush1.bf16.msra.mxu0 0
  %78 = vmatprep.subr.bf16.mxu0 0
  %79 = vmatpush1.bf16.msra.mxu0 0
  %80 = vmatprep.subr.bf16.mxu0 0
  %81 = vmatpush1.bf16.msra.mxu0 0
  %82 = vmatprep.subr.bf16.mxu0 0
  %83 = vmatpush1.bf16.msra.mxu0 0
  %84 = vmatprep.subr.bf16.mxu0 0
  %85 = vmatpush1.bf16.msra.mxu0 0
  %86 = vmatprep.subr.bf16.mxu0 0
  %87 = vmatpush1.bf16.msra.mxu0 0
  %88 = vmatprep.subr.bf16.mxu0 0
  %89 = vmatpush1.bf16.msra.mxu0 0
  %90 = vmatprep.subr.bf16.mxu0 0
  %91 = vmatpush1.bf16.msra.mxu0 0
  %92 = vmatprep.subr.bf16.mxu0 0
  %93 = vmatpush1.bf16.msra.mxu0 0
  %94 = vmatprep.subr.bf16.mxu0 0
  %95 = vmatpush1.bf16.msra.mxu0 0
  %96 = vmatprep.subr.bf16.mxu0 0
  %97 = vmatpush1.bf16.msra.mxu0 0
  %98 = vmatprep.mubr.bf16.mxu0 0
  %99 = vmatmul.mubr.bf16.gmra.mrb[0].mxu0 %v61
  %v100 = vpop.f32.mrb[0].mxu0
  %v101 = vadd.f32 %v43, %v100
  %v102 = vpop.f32.mrb[0].mxu0
  %v103 = vpop.f32.mrb[0].mxu0
  %v104 = vadd.f32 %v43, %v103
  %v105 = vpop.f32.mrb[0].mxu0
  %106 = vmatprep.mubr.bf16.mxu0 0
  %107 = vmatmul.mubr.bf16.gmra.mrb[0].mxu0 %v64
  %v108 = vpop.f32.mrb[0].mxu0
  %v109 = vadd.f32 %v43, %v108
  %v110 = vpop.f32.mrb[0].mxu0
  %v111 = vpop.f32.mrb[0].mxu0
  %v112 = vpop.f32.mrb[0].mxu0
  %113 = vdwg.mxu0
  %v114 = vld [vmem:[%s3] sm:$0xf]
  %v115 = vld [vmem:[%s3 + $0x4] sm:$0xf]
  %v116 = vld [vmem:[%s3 + $0x8] sm:$0xf]
  %v120 = vunpack.c.l.b16 %v114
  %v121 = vunpack.c.l.b16 %v115
  %v122 = vunpack.c.l.b16 %v116
  %v123 = vpack.c.b16 %v121, %v120
  %v124 = vpack.c.b16 %v122, %v122
  %v126 = vsel %vm59, %v123, 0
  %v129 = vsel %vm59, %v124, 0
  %131 = vmatprep.subr.bf16.mxu0 0
  %132 = vmatpush1.bf16.msra.mxu0 %v57
  %133 = vmatprep.subr.bf16.mxu0 0
  %134 = vmatpush1.bf16.msra.mxu0 0
  %135 = vmatprep.subr.bf16.mxu0 0
  %136 = vmatpush1.bf16.msra.mxu0 0
  %137 = vmatprep.subr.bf16.mxu0 0
  %138 = vmatpush1.bf16.msra.mxu0 0
  %139 = vmatprep.subr.bf16.mxu0 0
  %140 = vmatpush1.bf16.msra.mxu0 0
  %141 = vmatprep.subr.bf16.mxu0 0
  %142 = vmatpush1.bf16.msra.mxu0 0
  %143 = vmatprep.subr.bf16.mxu0 0
  %144 = vmatpush1.bf16.msra.mxu0 0
  %145 = vmatprep.subr.bf16.mxu0 0
  %146 = vmatpush1.bf16.msra.mxu0 0
  %147 = vmatprep.subr.bf16.mxu0 0
  %148 = vmatpush1.bf16.msra.mxu0 0
  %149 = vmatprep.subr.bf16.mxu0 0
  %150 = vmatpush1.bf16.msra.mxu0 0
  %151 = vmatprep.subr.bf16.mxu0 0
  %152 = vmatpush1.bf16.msra.mxu0 0
  %153 = vmatprep.subr.bf16.mxu0 0
  %154 = vmatpush1.bf16.msra.mxu0 0
  %155 = vmatprep.subr.bf16.mxu0 0
  %156 = vmatpush1.bf16.msra.mxu0 0
  %157 = vmatprep.subr.bf16.mxu0 0
  %158 = vmatpush1.bf16.msra.mxu0 0
  %159 = vmatprep.subr.bf16.mxu0 0
  %160 = vmatpush1.bf16.msra.mxu0 0
  %161 = vmatprep.subr.bf16.mxu0 0
  %162 = vmatpush1.bf16.msra.mxu0 0
  %163 = vmatprep.mubr.bf16.mxu0 0
  %164 = vmatmul.mubr.bf16.gmra.mrb[0].mxu0 %v126
  %v165 = vpop.f32.mrb[0].mxu0
  %v166 = vadd.f32 %v43, %v165
  %v167 = vpop.f32.mrb[0].mxu0
  %v168 = vpop.f32.mrb[0].mxu0
  %v169 = vadd.f32 %v43, %v168
  %v170 = vpop.f32.mrb[0].mxu0
  %171 = vmatprep.mubr.bf16.mxu0 0
  %172 = vmatmul.mubr.bf16.gmra.mrb[0].mxu0 %v129
  %v173 = vpop.f32.mrb[0].mxu0
  %v174 = vadd.f32 %v43, %v173
  %v175 = vpop.f32.mrb[0].mxu0
  %v176 = vpop.f32.mrb[0].mxu0
  %v177 = vpop.f32.mrb[0].mxu0
  %178 = vdwg.mxu0
  %v179 = vld [vmem:[%s0] sm:$0xff]
  %v180 = vld [vmem:[%s0 + $0x8] sm:$0xff]
  %v181 = vlaneseq
  %v182 = vand.u32 %v181, 127
  %183 = vset.pattern.permute.xlu0 0
  %184 = vperm.xlu0 %183, %v179
  %v185 = vpop.permute.xlu0 %184
  %186 = vset.pattern.permute.xlu0 0
  %187 = vperm.xlu0 %186, %v180
  %v188 = vpop.permute.xlu0 %187
  %vm189 = vcmp.eq.s32.totalorder %v185, %v182
  %vm190 = vcmp.eq.s32.totalorder %v188, %v182
  %v191 = vsel %vm189, 1.0, 0.0
  %v192 = vsel %vm190, 1.0, 0.0
  %v193 = vpack.c.bf16 %v192, %v191
  %v194 = vpack.c.bf16 %v104, %v101
  %v195 = vpack.c.bf16 %v109, %v109
  %vm196 = vcmask 162816
  %v198 = vsel %vm196, %v193, 0
  %vm200 = vcmask 1041408
  %v202 = vsel %vm200, %v195, 0
  %204 = vmatprep.subr.bf16.mxu0 0
  %205 = vmatpush1.bf16.msra.mxu0 %v194
  %206 = vmatprep.subr.bf16.mxu0 0
  %207 = vmatpush1.bf16.msra.mxu0 %v202
  %208 = vmatprep.subr.bf16.mxu0 0
  %209 = vmatpush1.bf16.msra.mxu0 0
  %210 = vmatprep.subr.bf16.mxu0 0
  %211 = vmatpush1.bf16.msra.mxu0 0
  %212 = vmatprep.subr.bf16.mxu0 0
  %213 = vmatpush1.bf16.msra.mxu0 0
  %214 = vmatprep.subr.bf16.mxu0 0
  %215 = vmatpush1.bf16.msra.mxu0 0
  %216 = vmatprep.subr.bf16.mxu0 0
  %217 = vmatpush1.bf16.msra.mxu0 0
  %218 = vmatprep.subr.bf16.mxu0 0
  %219 = vmatpush1.bf16.msra.mxu0 0
  %220 = vmatprep.subr.bf16.mxu0 0
  %221 = vmatpush1.bf16.msra.mxu0 0
  %222 = vmatprep.subr.bf16.mxu0 0
  %223 = vmatpush1.bf16.msra.mxu0 0
  %224 = vmatprep.subr.bf16.mxu0 0
  %225 = vmatpush1.bf16.msra.mxu0 0
  %226 = vmatprep.subr.bf16.mxu0 0
  %227 = vmatpush1.bf16.msra.mxu0 0
  %228 = vmatprep.subr.bf16.mxu0 0
  %229 = vmatpush1.bf16.msra.mxu0 0
  %230 = vmatprep.subr.bf16.mxu0 0
  %231 = vmatpush1.bf16.msra.mxu0 0
  %232 = vmatprep.subr.bf16.mxu0 0
  %233 = vmatpush1.bf16.msra.mxu0 0
  %234 = vmatprep.subr.bf16.mxu0 0
  %235 = vmatpush1.bf16.msra.mxu0 0
  %236 = vmatprep.mubr.bf16.mxu0 0
  %237 = vmatmul.mubr.bf16.gmra.mrb[0].mxu0 %v198
  %v238 = vpop.f32.mrb[0].mxu0
  %v239 = vadd.f32 0.0, %v238
  %v240 = vpop.f32.mrb[0].mxu0
  %v241 = vpop.f32.mrb[0].mxu0
  %v242 = vadd.f32 0.0, %v241
  %v243 = vpop.f32.mrb[0].mxu0
  %244 = vdwg.mxu0
  %v245 = vld [vmem:[%s1] sm:$0xff]
  %v246 = vld [vmem:[%s1 + $0x8] sm:$0xf]
  %247 = vset.pattern.permute.xlu0 0
  %248 = vperm.xlu0 %247, %v245
  %v249 = vpop.permute.xlu0 %248
  %250 = vset.pattern.permute.xlu0 0
  %251 = vperm.xlu0 %250, %v246
  %v252 = vpop.permute.xlu0 %251
  %vm253 = vcmp.eq.s32.totalorder %v249, %v182
  %vm254 = vcmp.eq.s32.totalorder %v252, %v182
  %v255 = vsel %vm253, 1.0, 0.0
  %v256 = vsel %vm254, 1.0, 0.0
  %v257 = vpack.c.bf16 %v256, %v255
  %v258 = vpack.c.bf16 %v169, %v166
  %v259 = vpack.c.bf16 %v174, %v174
  %vm260 = vcmask 195584
  %v262 = vsel %vm260, %v257, 0
  %vm264 = vcmask 1043456
  %v266 = vsel %vm264, %v259, 0
  %268 = vmatprep.subr.bf16.mxu0 0
  %269 = vmatpush1.bf16.msra.mxu0 %v258
  %270 = vmatprep.subr.bf16.mxu0 0
  %271 = vmatpush1.bf16.msra.mxu0 %v266
  %272 = vmatprep.subr.bf16.mxu0 0
  %273 = vmatpush1.bf16.msra.mxu0 0
  %274 = vmatprep.subr.bf16.mxu0 0
  %275 = vmatpush1.bf16.msra.mxu0 0
  %276 = vmatprep.subr.bf16.mxu0 0
  %277 = vmatpush1.bf16.msra.mxu0 0
  %278 = vmatprep.subr.bf16.mxu0 0
  %279 = vmatpush1.bf16.msra.mxu0 0
  %280 = vmatprep.subr.bf16.mxu0 0
  %281 = vmatpush1.bf16.msra.mxu0 0
  %282 = vmatprep.subr.bf16.mxu0 0
  %283 = vmatpush1.bf16.msra.mxu0 0
  %284 = vmatprep.subr.bf16.mxu0 0
  %285 = vmatpush1.bf16.msra.mxu0 0
  %286 = vmatprep.subr.bf16.mxu0 0
  %287 = vmatpush1.bf16.msra.mxu0 0
  %288 = vmatprep.subr.bf16.mxu0 0
  %289 = vmatpush1.bf16.msra.mxu0 0
  %290 = vmatprep.subr.bf16.mxu0 0
  %291 = vmatpush1.bf16.msra.mxu0 0
  %292 = vmatprep.subr.bf16.mxu0 0
  %293 = vmatpush1.bf16.msra.mxu0 0
  %294 = vmatprep.subr.bf16.mxu0 0
  %295 = vmatpush1.bf16.msra.mxu0 0
  %296 = vmatprep.subr.bf16.mxu0 0
  %297 = vmatpush1.bf16.msra.mxu0 0
  %298 = vmatprep.subr.bf16.mxu0 0
  %299 = vmatpush1.bf16.msra.mxu0 0
  %300 = vmatprep.mubr.bf16.mxu0 0
  %301 = vmatmul.mubr.bf16.gmra.mrb[0].mxu0 %v262
  %v302 = vpop.f32.mrb[0].mxu0
  %v303 = vadd.f32 0.0, %v302
  %v304 = vpop.f32.mrb[0].mxu0
  %v305 = vpop.f32.mrb[0].mxu0
  %v306 = vadd.f32 0.0, %v305
  %v307 = vpop.f32.mrb[0].mxu0
  %308 = vdwg.mxu0
  %v309 = vld [vmem:[%s5] sm:$0xf]
  %v310 = vld [vmem:[%s5 + $0x4] sm:$0xf]
  %v311 = vld [vmem:[%s5 + $0x8] sm:$0xf]
  %v312 = vld [vmem:[%s5 + $0xc] sm:$0xf]
  %s313 = scalar_lea.vmem %s5, 16
  %v314 = vld [vmem:[%s313] sm:$0xf]
  %v315 = vld [vmem:[%s313 + $0x4] sm:$0xf]
  %v316 = vld [vmem:[%s313 + $0x8] sm:$0xf]
  %v317 = vld [vmem:[%s313 + $0xc] sm:$0xf]
  %s318 = scalar_lea.vmem %s5, 32
  %v319 = vld [vmem:[%s318] sm:$0xf]
  %v320 = vld [vmem:[%s318 + $0x4] sm:$0xf]
  %v321 = vld [vmem:[%s318 + $0x8] sm:$0xf]
  %v322 = vld [vmem:[%s318 + $0xc] sm:$0xf]
  %s323 = scalar_lea.vmem %s5, 48
  %v324 = vld [vmem:[%s323] sm:$0xf]
  %v325 = vld [vmem:[%s323 + $0x4] sm:$0xf]
  %v326 = vld [vmem:[%s323 + $0x8] sm:$0xf]
  %v327 = vld [vmem:[%s323 + $0xc] sm:$0xf]
  %v332 = vunpack.c.l.b16 %v309
  %v333 = vunpack.c.l.b16 %v310
  %v334 = vunpack.c.l.b16 %v311
  %v335 = vunpack.c.l.b16 %v312
  %v336 = vpack.c.b16 %v333, %v332
  %v337 = vpack.c.b16 %v335, %v334
  %vm340 = vcmask 261120
  %v342 = vsel %vm340, 0, 0
  %344 = vmatprep.subr.bf16.mxu0 0
  %345 = vmatpush1.bf16.msra.mxu0 %v336
  %346 = vmatprep.subr.bf16.mxu0 0
  %347 = vmatpush1.bf16.msra.mxu0 %v337
  %348 = vmatprep.subr.bf16.mxu0 0
  %349 = vmatpush1.bf16.msra.mxu0 0
  %350 = vmatprep.subr.bf16.mxu0 0
  %351 = vmatpush1.bf16.msra.mxu0 0
  %352 = vmatprep.subr.bf16.mxu0 0
  %353 = vmatpush1.bf16.msra.mxu0 0
  %354 = vmatprep.subr.bf16.mxu0 0
  %355 = vmatpush1.bf16.msra.mxu0 0
  %356 = vmatprep.subr.bf16.mxu0 0
  %357 = vmatpush1.bf16.msra.mxu0 0
  %358 = vmatprep.subr.bf16.mxu0 0
  %359 = vmatpush1.bf16.msra.mxu0 0
  %360 = vmatprep.subr.bf16.mxu0 0
  %361 = vmatpush1.bf16.msra.mxu0 0
  %362 = vmatprep.subr.bf16.mxu0 0
  %363 = vmatpush1.bf16.msra.mxu0 0
  %364 = vmatprep.subr.bf16.mxu0 0
  %365 = vmatpush1.bf16.msra.mxu0 0
  %366 = vmatprep.subr.bf16.mxu0 0
  %367 = vmatpush1.bf16.msra.mxu0 0
  %368 = vmatprep.subr.bf16.mxu0 0
  %369 = vmatpush1.bf16.msra.mxu0 0
  %370 = vmatprep.subr.bf16.mxu0 0
  %371 = vmatpush1.bf16.msra.mxu0 0
  %372 = vmatprep.subr.bf16.mxu0 0
  %373 = vmatpush1.bf16.msra.mxu0 0
  %374 = vmatprep.subr.bf16.mxu0 0
  %375 = vmatpush1.bf16.msra.mxu0 0
  %376 = vmatprep.mubr.bf16.mxu0 0
  %377 = vmatmul.mubr.bf16.gmra.mrb[0].mxu0 %v342
  %v378 = vpop.f32.mrb[0].mxu0
  %v379 = vadd.f32 0.0, %v378
  %v380 = vpop.f32.mrb[0].mxu0
  %v381 = vpop.f32.mrb[0].mxu0
  %v382 = vpop.f32.mrb[0].mxu0
  %383 = vdwg.mxu0
  %v384 = vadd.f32 %v239, %v379
  %v385 = vxor.u32 %v384, 2147483648
  %v386 = vmul.f32 %v385, 1.442695
  %v387 = vpow.pop %v386
  %v388 = vadd.f32 %v387, 1.0
  %v389 = vrcp.pop %v388
  %v390 = vmul.f32 1.0, %v389
  %v395 = vunpack.c.l.b16 %v314
  %v396 = vunpack.c.l.b16 %v315
  %v397 = vunpack.c.l.b16 %v316
  %v398 = vunpack.c.l.b16 %v317
  %v399 = vpack.c.b16 %v396, %v395
  %v400 = vpack.c.b16 %v398, %v397
  %403 = vmatprep.subr.bf16.mxu0 0
  %404 = vmatpush1.bf16.msra.mxu0 %v399
  %405 = vmatprep.subr.bf16.mxu0 0
  %406 = vmatpush1.bf16.msra.mxu0 %v400
  %407 = vmatprep.subr.bf16.mxu0 0
  %408 = vmatpush1.bf16.msra.mxu0 0
  %409 = vmatprep.subr.bf16.mxu0 0
  %410 = vmatpush1.bf16.msra.mxu0 0
  %411 = vmatprep.subr.bf16.mxu0 0
  %412 = vmatpush1.bf16.msra.mxu0 0
  %413 = vmatprep.subr.bf16.mxu0 0
  %414 = vmatpush1.bf16.msra.mxu0 0
  %415 = vmatprep.subr.bf16.mxu0 0
  %416 = vmatpush1.bf16.msra.mxu0 0
  %417 = vmatprep.subr.bf16.mxu0 0
  %418 = vmatpush1.bf16.msra.mxu0 0
  %419 = vmatprep.subr.bf16.mxu0 0
  %420 = vmatpush1.bf16.msra.mxu0 0
  %421 = vmatprep.subr.bf16.mxu0 0
  %422 = vmatpush1.bf16.msra.mxu0 0
  %423 = vmatprep.subr.bf16.mxu0 0
  %424 = vmatpush1.bf16.msra.mxu0 0
  %425 = vmatprep.subr.bf16.mxu0 0
  %426 = vmatpush1.bf16.msra.mxu0 0
  %427 = vmatprep.subr.bf16.mxu0 0
  %428 = vmatpush1.bf16.msra.mxu0 0
  %429 = vmatprep.subr.bf16.mxu0 0
  %430 = vmatpush1.bf16.msra.mxu0 0
  %431 = vmatprep.subr.bf16.mxu0 0
  %432 = vmatpush1.bf16.msra.mxu0 0
  %433 = vmatprep.subr.bf16.mxu0 0
  %434 = vmatpush1.bf16.msra.mxu0 0
  %435 = vmatprep.mubr.bf16.mxu0 0
  %436 = vmatmul.mubr.bf16.gmra.mrb[0].mxu0 %v342
  %v437 = vpop.f32.mrb[0].mxu0
  %v438 = vadd.f32 0.0, %v437
  %v439 = vpop.f32.mrb[0].mxu0
  %v440 = vpop.f32.mrb[0].mxu0
  %v441 = vpop.f32.mrb[0].mxu0
  %442 = vdwg.mxu0
  %444 = vrot.lane.b32.xlu0 %v438, 32
  %v445 = vpop.permute.xlu0 %444
  %v447 = vadd.f32 %v239, %v445
  %v448 = vxor.u32 %v447, 2147483648
  %v449 = vmul.f32 %v448, 1.442695
  %v450 = vpow.pop %v449
  %v451 = vadd.f32 %v450, 1.0
  %v452 = vrcp.pop %v451
  %v453 = vmul.f32 1.0, %v452
  %v458 = vunpack.c.l.b16 %v319
  %v459 = vunpack.c.l.b16 %v320
  %v460 = vunpack.c.l.b16 %v321
  %v461 = vunpack.c.l.b16 %v322
  %v462 = vpack.c.b16 %v459, %v458
  %v463 = vpack.c.b16 %v461, %v460
  %466 = vmatprep.subr.bf16.mxu0 0
  %467 = vmatpush1.bf16.msra.mxu0 %v462
  %468 = vmatprep.subr.bf16.mxu0 0
  %469 = vmatpush1.bf16.msra.mxu0 %v463
  %470 = vmatprep.subr.bf16.mxu0 0
  %471 = vmatpush1.bf16.msra.mxu0 0
  %472 = vmatprep.subr.bf16.mxu0 0
  %473 = vmatpush1.bf16.msra.mxu0 0
  %474 = vmatprep.subr.bf16.mxu0 0
  %475 = vmatpush1.bf16.msra.mxu0 0
  %476 = vmatprep.subr.bf16.mxu0 0
  %477 = vmatpush1.bf16.msra.mxu0 0
  %478 = vmatprep.subr.bf16.mxu0 0
  %479 = vmatpush1.bf16.msra.mxu0 0
  %480 = vmatprep.subr.bf16.mxu0 0
  %481 = vmatpush1.bf16.msra.mxu0 0
  %482 = vmatprep.subr.bf16.mxu0 0
  %483 = vmatpush1.bf16.msra.mxu0 0
  %484 = vmatprep.subr.bf16.mxu0 0
  %485 = vmatpush1.bf16.msra.mxu0 0
  %486 = vmatprep.subr.bf16.mxu0 0
  %487 = vmatpush1.bf16.msra.mxu0 0
  %488 = vmatprep.subr.bf16.mxu0 0
  %489 = vmatpush1.bf16.msra.mxu0 0
  %490 = vmatprep.subr.bf16.mxu0 0
  %491 = vmatpush1.bf16.msra.mxu0 0
  %492 = vmatprep.subr.bf16.mxu0 0
  %493 = vmatpush1.bf16.msra.mxu0 0
  %494 = vmatprep.subr.bf16.mxu0 0
  %495 = vmatpush1.bf16.msra.mxu0 0
  %496 = vmatprep.subr.bf16.mxu0 0
  %497 = vmatpush1.bf16.msra.mxu0 0
  %498 = vmatprep.mubr.bf16.mxu0 0
  %499 = vmatmul.mubr.bf16.gmra.mrb[0].mxu0 %v342
  %v500 = vpop.f32.mrb[0].mxu0
  %v501 = vadd.f32 0.0, %v500
  %v502 = vpop.f32.mrb[0].mxu0
  %v503 = vpop.f32.mrb[0].mxu0
  %v504 = vpop.f32.mrb[0].mxu0
  %505 = vdwg.mxu0
  %507 = vrot.lane.b32.xlu0 %v501, 64
  %v508 = vpop.permute.xlu0 %507
  %v510 = vadd.f32 %v239, %v508
  %v511 = vtanh.pop %v510
  %v516 = vunpack.c.l.b16 %v324
  %v517 = vunpack.c.l.b16 %v325
  %v518 = vunpack.c.l.b16 %v326
  %v519 = vunpack.c.l.b16 %v327
  %v520 = vpack.c.b16 %v517, %v516
  %v521 = vpack.c.b16 %v519, %v518
  %524 = vmatprep.subr.bf16.mxu0 0
  %525 = vmatpush1.bf16.msra.mxu0 %v520
  %526 = vmatprep.subr.bf16.mxu0 0
  %527 = vmatpush1.bf16.msra.mxu0 %v521
  %528 = vmatprep.subr.bf16.mxu0 0
  %529 = vmatpush1.bf16.msra.mxu0 0
  %530 = vmatprep.subr.bf16.mxu0 0
  %531 = vmatpush1.bf16.msra.mxu0 0
  %532 = vmatprep.subr.bf16.mxu0 0
  %533 = vmatpush1.bf16.msra.mxu0 0
  %534 = vmatprep.subr.bf16.mxu0 0
  %535 = vmatpush1.bf16.msra.mxu0 0
  %536 = vmatprep.subr.bf16.mxu0 0
  %537 = vmatpush1.bf16.msra.mxu0 0
  %538 = vmatprep.subr.bf16.mxu0 0
  %539 = vmatpush1.bf16.msra.mxu0 0
  %540 = vmatprep.subr.bf16.mxu0 0
  %541 = vmatpush1.bf16.msra.mxu0 0
  %542 = vmatprep.subr.bf16.mxu0 0
  %543 = vmatpush1.bf16.msra.mxu0 0
  %544 = vmatprep.subr.bf16.mxu0 0
  %545 = vmatpush1.bf16.msra.mxu0 0
  %546 = vmatprep.subr.bf16.mxu0 0
  %547 = vmatpush1.bf16.msra.mxu0 0
  %548 = vmatprep.subr.bf16.mxu0 0
  %549 = vmatpush1.bf16.msra.mxu0 0
  %550 = vmatprep.subr.bf16.mxu0 0
  %551 = vmatpush1.bf16.msra.mxu0 0
  %552 = vmatprep.subr.bf16.mxu0 0
  %553 = vmatpush1.bf16.msra.mxu0 0
  %554 = vmatprep.subr.bf16.mxu0 0
  %555 = vmatpush1.bf16.msra.mxu0 0
  %556 = vmatprep.mubr.bf16.mxu0 0
  %557 = vmatmul.mubr.bf16.gmra.mrb[0].mxu0 %v342
  %v558 = vpop.f32.mrb[0].mxu0
  %v559 = vadd.f32 0.0, %v558
  %v560 = vpop.f32.mrb[0].mxu0
  %v561 = vpop.f32.mrb[0].mxu0
  %v562 = vpop.f32.mrb[0].mxu0
  %563 = vdwg.mxu0
  %565 = vrot.lane.b32.xlu0 %v559, 96
  %v566 = vpop.permute.xlu0 %565
  %v568 = vadd.f32 %v239, %v566
  %v569 = vxor.u32 %v568, 2147483648
  %v570 = vmul.f32 %v569, 1.442695
  %v571 = vpow.pop %v570
  %v572 = vadd.f32 %v571, 1.0
  %v573 = vrcp.pop %v572
  %v574 = vmul.f32 1.0, %v573
  %v575 = vmul.f32 %v453, 0.0
  %577 = vrot.lane.b32.xlu0 %v511, 64
  %v578 = vpop.permute.xlu0 %577
  %v580 = vmul.f32 %v390, %v578
  %582 = vrot.lane.b32.xlu0 %v580, 32
  %v583 = vpop.permute.xlu0 %582
  %v585 = vadd.f32 %v575, %v583
  %v586 = vtanh.pop %v585
  %588 = vrot.lane.b32.xlu0 %v586, 64
  %v589 = vpop.permute.xlu0 %588
  %v591 = vmul.f32 %v574, %v589
  %v592 = vpack.c.bf16 %v591, %v591
  %594 = vrot.lane.b32.xlu0 %v592, 32
  %v595 = vpop.permute.xlu0 %594
  %v597 = vsel %vm340, %v595, 0
  %599 = vmatprep.subr.bf16.mxu0 0
  %600 = vmatpush1.bf16.msra.mxu0 %v336
  %601 = vmatprep.subr.bf16.mxu0 0
  %602 = vmatpush1.bf16.msra.mxu0 %v337
  %603 = vmatprep.subr.bf16.mxu0 0
  %604 = vmatpush1.bf16.msra.mxu0 0
  %605 = vmatprep.subr.bf16.mxu0 0
  %606 = vmatpush1.bf16.msra.mxu0 0
  %607 = vmatprep.subr.bf16.mxu0 0
  %608 = vmatpush1.bf16.msra.mxu0 0
  %609 = vmatprep.subr.bf16.mxu0 0
  %610 = vmatpush1.bf16.msra.mxu0 0
  %611 = vmatprep.subr.bf16.mxu0 0
  %612 = vmatpush1.bf16.msra.mxu0 0
  %613 = vmatprep.subr.bf16.mxu0 0
  %614 = vmatpush1.bf16.msra.mxu0 0
  %615 = vmatprep.subr.bf16.mxu0 0
  %616 = vmatpush1.bf16.msra.mxu0 0
  %617 = vmatprep.subr.bf16.mxu0 0
  %618 = vmatpush1.bf16.msra.mxu0 0
  %619 = vmatprep.subr.bf16.mxu0 0
  %620 = vmatpush1.bf16.msra.mxu0 0
  %621 = vmatprep.subr.bf16.mxu0 0
  %622 = vmatpush1.bf16.msra.mxu0 0
  %623 = vmatprep.subr.bf16.mxu0 0
  %624 = vmatpush1.bf16.msra.mxu0 0
  %625 = vmatprep.subr.bf16.mxu0 0
  %626 = vmatpush1.bf16.msra.mxu0 0
  %627 = vmatprep.subr.bf16.mxu0 0
  %628 = vmatpush1.bf16.msra.mxu0 0
  %629 = vmatprep.subr.bf16.mxu0 0
  %630 = vmatpush1.bf16.msra.mxu0 0
  %631 = vmatprep.mubr.bf16.mxu0 0
  %632 = vmatmul.mubr.bf16.gmra.mrb[0].mxu0 %v597
  %v633 = vpop.f32.mrb[0].mxu0
  %v634 = vadd.f32 0.0, %v633
  %v635 = vpop.f32.mrb[0].mxu0
  %v636 = vpop.f32.mrb[0].mxu0
  %v637 = vpop.f32.mrb[0].mxu0
  %638 = vdwg.mxu0
  %v640 = vrot.slane %v634, 6
  %v642 = vadd.f32 %v239, %v640
  %v643 = vxor.u32 %v642, 2147483648
  %v644 = vmul.f32 %v643, 1.442695
  %v645 = vpow.pop %v644
  %v646 = vadd.f32 %v645, 1.0
  %v647 = vrcp.pop %v646
  %v648 = vmul.f32 1.0, %v647
  %649 = vmatprep.subr.bf16.mxu0 0
  %650 = vmatpush1.bf16.msra.mxu0 %v399
  %651 = vmatprep.subr.bf16.mxu0 0
  %652 = vmatpush1.bf16.msra.mxu0 %v400
  %653 = vmatprep.subr.bf16.mxu0 0
  %654 = vmatpush1.bf16.msra.mxu0 0
  %655 = vmatprep.subr.bf16.mxu0 0
  %656 = vmatpush1.bf16.msra.mxu0 0
  %657 = vmatprep.subr.bf16.mxu0 0
  %658 = vmatpush1.bf16.msra.mxu0 0
  %659 = vmatprep.subr.bf16.mxu0 0
  %660 = vmatpush1.bf16.msra.mxu0 0
  %661 = vmatprep.subr.bf16.mxu0 0
  %662 = vmatpush1.bf16.msra.mxu0 0
  %663 = vmatprep.subr.bf16.mxu0 0
  %664 = vmatpush1.bf16.msra.mxu0 0
  %665 = vmatprep.subr.bf16.mxu0 0
  %666 = vmatpush1.bf16.msra.mxu0 0
  %667 = vmatprep.subr.bf16.mxu0 0
  %668 = vmatpush1.bf16.msra.mxu0 0
  %669 = vmatprep.subr.bf16.mxu0 0
  %670 = vmatpush1.bf16.msra.mxu0 0
  %671 = vmatprep.subr.bf16.mxu0 0
  %672 = vmatpush1.bf16.msra.mxu0 0
  %673 = vmatprep.subr.bf16.mxu0 0
  %674 = vmatpush1.bf16.msra.mxu0 0
  %675 = vmatprep.subr.bf16.mxu0 0
  %676 = vmatpush1.bf16.msra.mxu0 0
  %677 = vmatprep.subr.bf16.mxu0 0
  %678 = vmatpush1.bf16.msra.mxu0 0
  %679 = vmatprep.subr.bf16.mxu0 0
  %680 = vmatpush1.bf16.msra.mxu0 0
  %681 = vmatprep.mubr.bf16.mxu0 0
  %682 = vmatmul.mubr.bf16.gmra.mrb[0].mxu0 %v597
  %v683 = vpop.f32.mrb[0].mxu0
  %v684 = vadd.f32 0.0, %v683
  %v685 = vpop.f32.mrb[0].mxu0
  %v686 = vpop.f32.mrb[0].mxu0
  %v687 = vpop.f32.mrb[0].mxu0
  %688 = vdwg.mxu0
  %v690 = vrot.slane %v684, 6
  %691 = vrot.lane.b32.xlu0 %v690, 32
  %v692 = vpop.permute.xlu0 %691
  %v694 = vadd.f32 %v239, %v692
  %v695 = vxor.u32 %v694, 2147483648
  %v696 = vmul.f32 %v695, 1.442695
  %v697 = vpow.pop %v696
  %v698 = vadd.f32 %v697, 1.0
  %v699 = vrcp.pop %v698
  %v700 = vmul.f32 1.0, %v699
  %701 = vmatprep.subr.bf16.mxu0 0
  %702 = vmatpush1.bf16.msra.mxu0 %v462
  %703 = vmatprep.subr.bf16.mxu0 0
  %704 = vmatpush1.bf16.msra.mxu0 %v463
  %705 = vmatprep.subr.bf16.mxu0 0
  %706 = vmatpush1.bf16.msra.mxu0 0
  %707 = vmatprep.subr.bf16.mxu0 0
  %708 = vmatpush1.bf16.msra.mxu0 0
  %709 = vmatprep.subr.bf16.mxu0 0
  %710 = vmatpush1.bf16.msra.mxu0 0
  %711 = vmatprep.subr.bf16.mxu0 0
  %712 = vmatpush1.bf16.msra.mxu0 0
  %713 = vmatprep.subr.bf16.mxu0 0
  %714 = vmatpush1.bf16.msra.mxu0 0
  %715 = vmatprep.subr.bf16.mxu0 0
  %716 = vmatpush1.bf16.msra.mxu0 0
  %717 = vmatprep.subr.bf16.mxu0 0
  %718 = vmatpush1.bf16.msra.mxu0 0
  %719 = vmatprep.subr.bf16.mxu0 0
  %720 = vmatpush1.bf16.msra.mxu0 0
  %721 = vmatprep.subr.bf16.mxu0 0
  %722 = vmatpush1.bf16.msra.mxu0 0
  %723 = vmatprep.subr.bf16.mxu0 0
  %724 = vmatpush1.bf16.msra.mxu0 0
  %725 = vmatprep.subr.bf16.mxu0 0
  %726 = vmatpush1.bf16.msra.mxu0 0
  %727 = vmatprep.subr.bf16.mxu0 0
  %728 = vmatpush1.bf16.msra.mxu0 0
  %729 = vmatprep.subr.bf16.mxu0 0
  %730 = vmatpush1.bf16.msra.mxu0 0
  %731 = vmatprep.subr.bf16.mxu0 0
  %732 = vmatpush1.bf16.msra.mxu0 0
  %733 = vmatprep.mubr.bf16.mxu0 0
  %734 = vmatmul.mubr.bf16.gmra.mrb[0].mxu0 %v597
  %v735 = vpop.f32.mrb[0].mxu0
  %v736 = vadd.f32 0.0, %v735
  %v737 = vpop.f32.mrb[0].mxu0
  %v738 = vpop.f32.mrb[0].mxu0
  %v739 = vpop.f32.mrb[0].mxu0
  %740 = vdwg.mxu0
  %v742 = vrot.slane %v736, 6
  %743 = vrot.lane.b32.xlu0 %v742, 64
  %v744 = vpop.permute.xlu0 %743
  %v746 = vadd.f32 %v239, %v744
  %v747 = vtanh.pop %v746
  %748 = vmatprep.subr.bf16.mxu0 0
  %749 = vmatpush1.bf16.msra.mxu0 %v520
  %750 = vmatprep.subr.bf16.mxu0 0
  %751 = vmatpush1.bf16.msra.mxu0 %v521
  %752 = vmatprep.subr.bf16.mxu0 0
  %753 = vmatpush1.bf16.msra.mxu0 0
  %754 = vmatprep.subr.bf16.mxu0 0
  %755 = vmatpush1.bf16.msra.mxu0 0
  %756 = vmatprep.subr.bf16.mxu0 0
  %757 = vmatpush1.bf16.msra.mxu0 0
  %758 = vmatprep.subr.bf16.mxu0 0
  %759 = vmatpush1.bf16.msra.mxu0 0
  %760 = vmatprep.subr.bf16.mxu0 0
  %761 = vmatpush1.bf16.msra.mxu0 0
  %762 = vmatprep.subr.bf16.mxu0 0
  %763 = vmatpush1.bf16.msra.mxu0 0
  %764 = vmatprep.subr.bf16.mxu0 0
  %765 = vmatpush1.bf16.msra.mxu0 0
  %766 = vmatprep.subr.bf16.mxu0 0
  %767 = vmatpush1.bf16.msra.mxu0 0
  %768 = vmatprep.subr.bf16.mxu0 0
  %769 = vmatpush1.bf16.msra.mxu0 0
  %770 = vmatprep.subr.bf16.mxu0 0
  %771 = vmatpush1.bf16.msra.mxu0 0
  %772 = vmatprep.subr.bf16.mxu0 0
  %773 = vmatpush1.bf16.msra.mxu0 0
  %774 = vmatprep.subr.bf16.mxu0 0
  %775 = vmatpush1.bf16.msra.mxu0 0
  %776 = vmatprep.subr.bf16.mxu0 0
  %777 = vmatpush1.bf16.msra.mxu0 0
  %778 = vmatprep.subr.bf16.mxu0 0
  %779 = vmatpush1.bf16.msra.mxu0 0
  %780 = vmatprep.mubr.bf16.mxu0 0
  %781 = vmatmul.mubr.bf16.gmra.mrb[0].mxu0 %v597
  %v782 = vpop.f32.mrb[0].mxu0
  %v783 = vadd.f32 0.0, %v782
  %v784 = vpop.f32.mrb[0].mxu0
  %v785 = vpop.f32.mrb[0].mxu0
  %v786 = vpop.f32.mrb[0].mxu0
  %787 = vdwg.mxu0
  %v789 = vrot.slane %v783, 6
  %790 = vrot.lane.b32.xlu0 %v789, 96
  %v791 = vpop.permute.xlu0 %790
  %v793 = vadd.f32 %v239, %v791
  %v794 = vxor.u32 %v793, 2147483648
  %v795 = vmul.f32 %v794, 1.442695
  %v796 = vpow.pop %v795
  %v797 = vadd.f32 %v796, 1.0
  %v798 = vrcp.pop %v797
  %v799 = vmul.f32 1.0, %v798
  %v801 = vrot.slane %v585, 6
  %v803 = vmul.f32 %v700, %v801
  %805 = vrot.lane.b32.xlu0 %v747, 64
  %v806 = vpop.permute.xlu0 %805
  %v808 = vmul.f32 %v648, %v806
  %810 = vrot.lane.b32.xlu0 %v808, 32
  %v811 = vpop.permute.xlu0 %810
  %v813 = vadd.f32 %v803, %v811
  %v814 = vtanh.pop %v813
  %816 = vrot.lane.b32.xlu0 %v814, 64
  %v817 = vpop.permute.xlu0 %816
  %v819 = vmul.f32 %v799, %v817
  %v820 = vpack.c.bf16 %v819, %v819
  %v822 = vrot.slane %v820, 1
  %823 = vrot.lane.b32.xlu0 %v822, 32
  %v824 = vpop.permute.xlu0 %823
  %v826 = vsel %vm340, %v824, 0
  %828 = vmatprep.subr.bf16.mxu0 0
  %829 = vmatpush1.bf16.msra.mxu0 %v336
  %830 = vmatprep.subr.bf16.mxu0 0
  %831 = vmatpush1.bf16.msra.mxu0 %v337
  %832 = vmatprep.subr.bf16.mxu0 0
  %833 = vmatpush1.bf16.msra.mxu0 0
  %834 = vmatprep.subr.bf16.mxu0 0
  %835 = vmatpush1.bf16.msra.mxu0 0
  %836 = vmatprep.subr.bf16.mxu0 0
  %837 = vmatpush1.bf16.msra.mxu0 0
  %838 = vmatprep.subr.bf16.mxu0 0
  %839 = vmatpush1.bf16.msra.mxu0 0
  %840 = vmatprep.subr.bf16.mxu0 0
  %841 = vmatpush1.bf16.msra.mxu0 0
  %842 = vmatprep.subr.bf16.mxu0 0
  %843 = vmatpush1.bf16.msra.mxu0 0
  %844 = vmatprep.subr.bf16.mxu0 0
  %845 = vmatpush1.bf16.msra.mxu0 0
  %846 = vmatprep.subr.bf16.mxu0 0
  %847 = vmatpush1.bf16.msra.mxu0 0
  %848 = vmatprep.subr.bf16.mxu0 0
  %849 = vmatpush1.bf16.msra.mxu0 0
  %850 = vmatprep.subr.bf16.mxu0 0
  %851 = vmatpush1.bf16.msra.mxu0 0
  %852 = vmatprep.subr.bf16.mxu0 0
  %853 = vmatpush1.bf16.msra.mxu0 0
  %854 = vmatprep.subr.bf16.mxu0 0
  %855 = vmatpush1.bf16.msra.mxu0 0
  %856 = vmatprep.subr.bf16.mxu0 0
  %857 = vmatpush1.bf16.msra.mxu0 0
  %858 = vmatprep.subr.bf16.mxu0 0
  %859 = vmatpush1.bf16.msra.mxu0 0
  %860 = vmatprep.mubr.bf16.mxu0 0
  %861 = vmatmul.mubr.bf16.gmra.mrb[0].mxu0 %v826
  %v862 = vpop.f32.mrb[0].mxu0
  %v863 = vadd.f32 0.0, %v862
  %v864 = vpop.f32.mrb[0].mxu0
  %v865 = vpop.f32.mrb[0].mxu0
  %v866 = vpop.f32.mrb[0].mxu0
  %867 = vdwg.mxu0
  %v869 = vrot.slane %v863, 4
  %v871 = vadd.f32 %v239, %v869
  %v872 = vxor.u32 %v871, 2147483648
  %v873 = vmul.f32 %v872, 1.442695
  %v874 = vpow.pop %v873
  %v875 = vadd.f32 %v874, 1.0
  %v876 = vrcp.pop %v875
  %v877 = vmul.f32 1.0, %v876
  %878 = vmatprep.subr.bf16.mxu0 0
  %879 = vmatpush1.bf16.msra.mxu0 %v399
  %880 = vmatprep.subr.bf16.mxu0 0
  %881 = vmatpush1.bf16.msra.mxu0 %v400
  %882 = vmatprep.subr.bf16.mxu0 0
  %883 = vmatpush1.bf16.msra.mxu0 0
  %884 = vmatprep.subr.bf16.mxu0 0
  %885 = vmatpush1.bf16.msra.mxu0 0
  %886 = vmatprep.subr.bf16.mxu0 0
  %887 = vmatpush1.bf16.msra.mxu0 0
  %888 = vmatprep.subr.bf16.mxu0 0
  %889 = vmatpush1.bf16.msra.mxu0 0
  %890 = vmatprep.subr.bf16.mxu0 0
  %891 = vmatpush1.bf16.msra.mxu0 0
  %892 = vmatprep.subr.bf16.mxu0 0
  %893 = vmatpush1.bf16.msra.mxu0 0
  %894 = vmatprep.subr.bf16.mxu0 0
  %895 = vmatpush1.bf16.msra.mxu0 0
  %896 = vmatprep.subr.bf16.mxu0 0
  %897 = vmatpush1.bf16.msra.mxu0 0
  %898 = vmatprep.subr.bf16.mxu0 0
  %899 = vmatpush1.bf16.msra.mxu0 0
  %900 = vmatprep.subr.bf16.mxu0 0
  %901 = vmatpush1.bf16.msra.mxu0 0
  %902 = vmatprep.subr.bf16.mxu0 0
  %903 = vmatpush1.bf16.msra.mxu0 0
  %904 = vmatprep.subr.bf16.mxu0 0
  %905 = vmatpush1.bf16.msra.mxu0 0
  %906 = vmatprep.subr.bf16.mxu0 0
  %907 = vmatpush1.bf16.msra.mxu0 0
  %908 = vmatprep.subr.bf16.mxu0 0
  %909 = vmatpush1.bf16.msra.mxu0 0
  %910 = vmatprep.mubr.bf16.mxu0 0
  %911 = vmatmul.mubr.bf16.gmra.mrb[0].mxu0 %v826
  %v912 = vpop.f32.mrb[0].mxu0
  %v913 = vadd.f32 0.0, %v912
  %v914 = vpop.f32.mrb[0].mxu0
  %v915 = vpop.f32.mrb[0].mxu0
  %v916 = vpop.f32.mrb[0].mxu0
  %917 = vdwg.mxu0
  %v919 = vrot.slane %v913, 4
  %920 = vrot.lane.b32.xlu0 %v919, 32
  %v921 = vpop.permute.xlu0 %920
  %v923 = vadd.f32 %v239, %v921
  %v924 = vxor.u32 %v923, 2147483648
  %v925 = vmul.f32 %v924, 1.442695
  %v926 = vpow.pop %v925
  %v927 = vadd.f32 %v926, 1.0
  %v928 = vrcp.pop %v927
  %v929 = vmul.f32 1.0, %v928
  %930 = vmatprep.subr.bf16.mxu0 0
  %931 = vmatpush1.bf16.msra.mxu0 %v462
  %932 = vmatprep.subr.bf16.mxu0 0
  %933 = vmatpush1.bf16.msra.mxu0 %v463
  %934 = vmatprep.subr.bf16.mxu0 0
  %935 = vmatpush1.bf16.msra.mxu0 0
  %936 = vmatprep.subr.bf16.mxu0 0
  %937 = vmatpush1.bf16.msra.mxu0 0
  %938 = vmatprep.subr.bf16.mxu0 0
  %939 = vmatpush1.bf16.msra.mxu0 0
  %940 = vmatprep.subr.bf16.mxu0 0
  %941 = vmatpush1.bf16.msra.mxu0 0
  %942 = vmatprep.subr.bf16.mxu0 0
  %943 = vmatpush1.bf16.msra.mxu0 0
  %944 = vmatprep.subr.bf16.mxu0 0
  %945 = vmatpush1.bf16.msra.mxu0 0
  %946 = vmatprep.subr.bf16.mxu0 0
  %947 = vmatpush1.bf16.msra.mxu0 0
  %948 = vmatprep.subr.bf16.mxu0 0
  %949 = vmatpush1.bf16.msra.mxu0 0
  %950 = vmatprep.subr.bf16.mxu0 0
  %951 = vmatpush1.bf16.msra.mxu0 0
  %952 = vmatprep.subr.bf16.mxu0 0
  %953 = vmatpush1.bf16.msra.mxu0 0
  %954 = vmatprep.subr.bf16.mxu0 0
  %955 = vmatpush1.bf16.msra.mxu0 0
  %956 = vmatprep.subr.bf16.mxu0 0
  %957 = vmatpush1.bf16.msra.mxu0 0
  %958 = vmatprep.subr.bf16.mxu0 0
  %959 = vmatpush1.bf16.msra.mxu0 0
  %960 = vmatprep.subr.bf16.mxu0 0
  %961 = vmatpush1.bf16.msra.mxu0 0
  %962 = vmatprep.mubr.bf16.mxu0 0
  %963 = vmatmul.mubr.bf16.gmra.mrb[0].mxu0 %v826
  %v964 = vpop.f32.mrb[0].mxu0
  %v965 = vadd.f32 0.0, %v964
  %v966 = vpop.f32.mrb[0].mxu0
  %v967 = vpop.f32.mrb[0].mxu0
  %v968 = vpop.f32.mrb[0].mxu0
  %969 = vdwg.mxu0
  %v971 = vrot.slane %v965, 4
  %972 = vrot.lane.b32.xlu0 %v971, 64
  %v973 = vpop.permute.xlu0 %972
  %v975 = vadd.f32 %v239, %v973
  %v976 = vtanh.pop %v975
  %977 = vmatprep.subr.bf16.mxu0 0
  %978 = vmatpush1.bf16.msra.mxu0 %v520
  %979 = vmatprep.subr.bf16.mxu0 0
  %980 = vmatpush1.bf16.msra.mxu0 %v521
  %981 = vmatprep.subr.bf16.mxu0 0
  %982 = vmatpush1.bf16.msra.mxu0 0
  %983 = vmatprep.subr.bf16.mxu0 0
  %984 = vmatpush1.bf16.msra.mxu0 0
  %985 = vmatprep.subr.bf16.mxu0 0
  %986 = vmatpush1.bf16.msra.mxu0 0
  %987 = vmatprep.subr.bf16.mxu0 0
  %988 = vmatpush1.bf16.msra.mxu0 0
  %989 = vmatprep.subr.bf16.mxu0 0
  %990 = vmatpush1.bf16.msra.mxu0 0
  %991 = vmatprep.subr.bf16.mxu0 0
  %992 = vmatpush1.bf16.msra.mxu0 0
  %993 = vmatprep.subr.bf16.mxu0 0
  %994 = vmatpush1.bf16.msra.mxu0 0
  %995 = vmatprep.subr.bf16.mxu0 0
  %996 = vmatpush1.bf16.msra.mxu0 0
  %997 = vmatprep.subr.bf16.mxu0 0
  %998 = vmatpush1.bf16.msra.mxu0 0
  %999 = vmatprep.subr.bf16.mxu0 0
  %1000 = vmatpush1.bf16.msra.mxu0 0
  %1001 = vmatprep.subr.bf16.mxu0 0
  %1002 = vmatpush1.bf16.msra.mxu0 0
  %1003 = vmatprep.subr.bf16.mxu0 0
  %1004 = vmatpush1.bf16.msra.mxu0 0
  %1005 = vmatprep.subr.bf16.mxu0 0
  %1006 = vmatpush1.bf16.msra.mxu0 0
  %1007 = vmatprep.subr.bf16.mxu0 0
  %1008 = vmatpush1.bf16.msra.mxu0 0
  %1009 = vmatprep.mubr.bf16.mxu0 0
  %1010 = vmatmul.mubr.bf16.gmra.mrb[0].mxu0 %v826
  %v1011 = vpop.f32.mrb[0].mxu0
  %v1012 = vadd.f32 0.0, %v1011
  %v1013 = vpop.f32.mrb[0].mxu0
  %v1014 = vpop.f32.mrb[0].mxu0
  %v1015 = vpop.f32.mrb[0].mxu0
  %1016 = vdwg.mxu0
  %v1018 = vrot.slane %v1012, 4
  %1019 = vrot.lane.b32.xlu0 %v1018, 96
  %v1020 = vpop.permute.xlu0 %1019
  %v1022 = vadd.f32 %v239, %v1020
  %v1023 = vxor.u32 %v1022, 2147483648
  %v1024 = vmul.f32 %v1023, 1.442695
  %v1025 = vpow.pop %v1024
  %v1026 = vadd.f32 %v1025, 1.0
  %v1027 = vrcp.pop %v1026
  %v1028 = vmul.f32 1.0, %v1027
  %v1030 = vrot.slane %v813, 6
  %v1032 = vmul.f32 %v929, %v1030
  %1034 = vrot.lane.b32.xlu0 %v976, 64
  %v1035 = vpop.permute.xlu0 %1034
  %v1037 = vmul.f32 %v877, %v1035
  %1039 = vrot.lane.b32.xlu0 %v1037, 32
  %v1040 = vpop.permute.xlu0 %1039
  %v1042 = vadd.f32 %v1032, %v1040
  %v1043 = vtanh.pop %v1042
  %1045 = vrot.lane.b32.xlu0 %v1043, 64
  %v1046 = vpop.permute.xlu0 %1045
  %v1048 = vmul.f32 %v1028, %v1046
  %v1049 = vpack.c.bf16 %v1048, %v1048
  %v1051 = vrot.slane %v1049, 2
  %1052 = vrot.lane.b32.xlu0 %v1051, 32
  %v1053 = vpop.permute.xlu0 %1052
  %v1055 = vsel %vm340, %v1053, 0
  %1057 = vmatprep.subr.bf16.mxu0 0
  %1058 = vmatpush1.bf16.msra.mxu0 %v336
  %1059 = vmatprep.subr.bf16.mxu0 0
  %1060 = vmatpush1.bf16.msra.mxu0 %v337
  %1061 = vmatprep.subr.bf16.mxu0 0
  %1062 = vmatpush1.bf16.msra.mxu0 0
  %1063 = vmatprep.subr.bf16.mxu0 0
  %1064 = vmatpush1.bf16.msra.mxu0 0
  %1065 = vmatprep.subr.bf16.mxu0 0
  %1066 = vmatpush1.bf16.msra.mxu0 0
  %1067 = vmatprep.subr.bf16.mxu0 0
  %1068 = vmatpush1.bf16.msra.mxu0 0
  %1069 = vmatprep.subr.bf16.mxu0 0
  %1070 = vmatpush1.bf16.msra.mxu0 0
  %1071 = vmatprep.subr.bf16.mxu0 0
  %1072 = vmatpush1.bf16.msra.mxu0 0
  %1073 = vmatprep.subr.bf16.mxu0 0
  %1074 = vmatpush1.bf16.msra.mxu0 0
  %1075 = vmatprep.subr.bf16.mxu0 0
  %1076 = vmatpush1.bf16.msra.mxu0 0
  %1077 = vmatprep.subr.bf16.mxu0 0
  %1078 = vmatpush1.bf16.msra.mxu0 0
  %1079 = vmatprep.subr.bf16.mxu0 0
  %1080 = vmatpush1.bf16.msra.mxu0 0
  %1081 = vmatprep.subr.bf16.mxu0 0
  %1082 = vmatpush1.bf16.msra.mxu0 0
  %1083 = vmatprep.subr.bf16.mxu0 0
  %1084 = vmatpush1.bf16.msra.mxu0 0
  %1085 = vmatprep.subr.bf16.mxu0 0
  %1086 = vmatpush1.bf16.msra.mxu0 0
  %1087 = vmatprep.subr.bf16.mxu0 0
  %1088 = vmatpush1.bf16.msra.mxu0 0
  %1089 = vmatprep.mubr.bf16.mxu0 0
  %1090 = vmatmul.mubr.bf16.gmra.mrb[0].mxu0 %v1055
  %v1091 = vpop.f32.mrb[0].mxu0
  %v1092 = vadd.f32 0.0, %v1091
  %v1093 = vpop.f32.mrb[0].mxu0
  %v1094 = vpop.f32.mrb[0].mxu0
  %v1095 = vpop.f32.mrb[0].mxu0
  %1096 = vdwg.mxu0
  %v1098 = vrot.slane %v1092, 2
  %v1100 = vadd.f32 %v239, %v1098
  %v1101 = vxor.u32 %v1100, 2147483648
  %v1102 = vmul.f32 %v1101, 1.442695
  %v1103 = vpow.pop %v1102
  %v1104 = vadd.f32 %v1103, 1.0
  %v1105 = vrcp.pop %v1104
  %v1106 = vmul.f32 1.0, %v1105
  %1107 = vmatprep.subr.bf16.mxu0 0
  %1108 = vmatpush1.bf16.msra.mxu0 %v399
  %1109 = vmatprep.subr.bf16.mxu0 0
  %1110 = vmatpush1.bf16.msra.mxu0 %v400
  %1111 = vmatprep.subr.bf16.mxu0 0
  %1112 = vmatpush1.bf16.msra.mxu0 0
  %1113 = vmatprep.subr.bf16.mxu0 0
  %1114 = vmatpush1.bf16.msra.mxu0 0
  %1115 = vmatprep.subr.bf16.mxu0 0
  %1116 = vmatpush1.bf16.msra.mxu0 0
  %1117 = vmatprep.subr.bf16.mxu0 0
  %1118 = vmatpush1.bf16.msra.mxu0 0
  %1119 = vmatprep.subr.bf16.mxu0 0
  %1120 = vmatpush1.bf16.msra.mxu0 0
  %1121 = vmatprep.subr.bf16.mxu0 0
  %1122 = vmatpush1.bf16.msra.mxu0 0
  %1123 = vmatprep.subr.bf16.mxu0 0
  %1124 = vmatpush1.bf16.msra.mxu0 0
  %1125 = vmatprep.subr.bf16.mxu0 0
  %1126 = vmatpush1.bf16.msra.mxu0 0
  %1127 = vmatprep.subr.bf16.mxu0 0
  %1128 = vmatpush1.bf16.msra.mxu0 0
  %1129 = vmatprep.subr.bf16.mxu0 0
  %1130 = vmatpush1.bf16.msra.mxu0 0
  %1131 = vmatprep.subr.bf16.mxu0 0
  %1132 = vmatpush1.bf16.msra.mxu0 0
  %1133 = vmatprep.subr.bf16.mxu0 0
  %1134 = vmatpush1.bf16.msra.mxu0 0
  %1135 = vmatprep.subr.bf16.mxu0 0
  %1136 = vmatpush1.bf16.msra.mxu0 0
  %1137 = vmatprep.subr.bf16.mxu0 0
  %1138 = vmatpush1.bf16.msra.mxu0 0
  %1139 = vmatprep.mubr.bf16.mxu0 0
  %1140 = vmatmul.mubr.bf16.gmra.mrb[0].mxu0 %v1055
  %v1141 = vpop.f32.mrb[0].mxu0
  %v1142 = vadd.f32 0.0, %v1141
  %v1143 = vpop.f32.mrb[0].mxu0
  %v1144 = vpop.f32.mrb[0].mxu0
  %v1145 = vpop.f32.mrb[0].mxu0
  %1146 = vdwg.mxu0
  %v1148 = vrot.slane %v1142, 2
  %1149 = vrot.lane.b32.xlu0 %v1148, 32
  %v1150 = vpop.permute.xlu0 %1149
  %v1152 = vadd.f32 %v239, %v1150
  %v1153 = vxor.u32 %v1152, 2147483648
  %v1154 = vmul.f32 %v1153, 1.442695
  %v1155 = vpow.pop %v1154
  %v1156 = vadd.f32 %v1155, 1.0
  %v1157 = vrcp.pop %v1156
  %v1158 = vmul.f32 1.0, %v1157
  %1159 = vmatprep.subr.bf16.mxu0 0
  %1160 = vmatpush1.bf16.msra.mxu0 %v462
  %1161 = vmatprep.subr.bf16.mxu0 0
  %1162 = vmatpush1.bf16.msra.mxu0 %v463
  %1163 = vmatprep.subr.bf16.mxu0 0
  %1164 = vmatpush1.bf16.msra.mxu0 0
  %1165 = vmatprep.subr.bf16.mxu0 0
  %1166 = vmatpush1.bf16.msra.mxu0 0
  %1167 = vmatprep.subr.bf16.mxu0 0
  %1168 = vmatpush1.bf16.msra.mxu0 0
  %1169 = vmatprep.subr.bf16.mxu0 0
  %1170 = vmatpush1.bf16.msra.mxu0 0
  %1171 = vmatprep.subr.bf16.mxu0 0
  %1172 = vmatpush1.bf16.msra.mxu0 0
  %1173 = vmatprep.subr.bf16.mxu0 0
  %1174 = vmatpush1.bf16.msra.mxu0 0
  %1175 = vmatprep.subr.bf16.mxu0 0
  %1176 = vmatpush1.bf16.msra.mxu0 0
  %1177 = vmatprep.subr.bf16.mxu0 0
  %1178 = vmatpush1.bf16.msra.mxu0 0
  %1179 = vmatprep.subr.bf16.mxu0 0
  %1180 = vmatpush1.bf16.msra.mxu0 0
  %1181 = vmatprep.subr.bf16.mxu0 0
  %1182 = vmatpush1.bf16.msra.mxu0 0
  %1183 = vmatprep.subr.bf16.mxu0 0
  %1184 = vmatpush1.bf16.msra.mxu0 0
  %1185 = vmatprep.subr.bf16.mxu0 0
  %1186 = vmatpush1.bf16.msra.mxu0 0
  %1187 = vmatprep.subr.bf16.mxu0 0
  %1188 = vmatpush1.bf16.msra.mxu0 0
  %1189 = vmatprep.subr.bf16.mxu0 0
  %1190 = vmatpush1.bf16.msra.mxu0 0
  %1191 = vmatprep.mubr.bf16.mxu0 0
  %1192 = vmatmul.mubr.bf16.gmra.mrb[0].mxu0 %v1055
  %v1193 = vpop.f32.mrb[0].mxu0
  %v1194 = vadd.f32 0.0, %v1193
  %v1195 = vpop.f32.mrb[0].mxu0
  %v1196 = vpop.f32.mrb[0].mxu0
  %v1197 = vpop.f32.mrb[0].mxu0
  %1198 = vdwg.mxu0
  %v1200 = vrot.slane %v1194, 2
  %1201 = vrot.lane.b32.xlu0 %v1200, 64
  %v1202 = vpop.permute.xlu0 %1201
  %v1204 = vadd.f32 %v239, %v1202
  %v1205 = vtanh.pop %v1204
  %1206 = vmatprep.subr.bf16.mxu0 0
  %1207 = vmatpush1.bf16.msra.mxu0 %v520
  %1208 = vmatprep.subr.bf16.mxu0 0
  %1209 = vmatpush1.bf16.msra.mxu0 %v521
  %1210 = vmatprep.subr.bf16.mxu0 0
  %1211 = vmatpush1.bf16.msra.mxu0 0
  %1212 = vmatprep.subr.bf16.mxu0 0
  %1213 = vmatpush1.bf16.msra.mxu0 0
  %1214 = vmatprep.subr.bf16.mxu0 0
  %1215 = vmatpush1.bf16.msra.mxu0 0
  %1216 = vmatprep.subr.bf16.mxu0 0
  %1217 = vmatpush1.bf16.msra.mxu0 0
  %1218 = vmatprep.subr.bf16.mxu0 0
  %1219 = vmatpush1.bf16.msra.mxu0 0
  %1220 = vmatprep.subr.bf16.mxu0 0
  %1221 = vmatpush1.bf16.msra.mxu0 0
  %1222 = vmatprep.subr.bf16.mxu0 0
  %1223 = vmatpush1.bf16.msra.mxu0 0
  %1224 = vmatprep.subr.bf16.mxu0 0
  %1225 = vmatpush1.bf16.msra.mxu0 0
  %1226 = vmatprep.subr.bf16.mxu0 0
  %1227 = vmatpush1.bf16.msra.mxu0 0
  %1228 = vmatprep.subr.bf16.mxu0 0
  %1229 = vmatpush1.bf16.msra.mxu0 0
  %1230 = vmatprep.subr.bf16.mxu0 0
  %1231 = vmatpush1.bf16.msra.mxu0 0
  %1232 = vmatprep.subr.bf16.mxu0 0
  %1233 = vmatpush1.bf16.msra.mxu0 0
  %1234 = vmatprep.subr.bf16.mxu0 0
  %1235 = vmatpush1.bf16.msra.mxu0 0
  %1236 = vmatprep.subr.bf16.mxu0 0
  %1237 = vmatpush1.bf16.msra.mxu0 0
  %1238 = vmatprep.mubr.bf16.mxu0 0
  %1239 = vmatmul.mubr.bf16.gmra.mrb[0].mxu0 %v1055
  %v1240 = vpop.f32.mrb[0].mxu0
  %v1241 = vadd.f32 0.0, %v1240
  %v1242 = vpop.f32.mrb[0].mxu0
  %v1243 = vpop.f32.mrb[0].mxu0
  %v1244 = vpop.f32.mrb[0].mxu0
  %1245 = vdwg.mxu0
  %v1247 = vrot.slane %v1241, 2
  %1248 = vrot.lane.b32.xlu0 %v1247, 96
  %v1249 = vpop.permute.xlu0 %1248
  %v1251 = vadd.f32 %v239, %v1249
  %v1252 = vxor.u32 %v1251, 2147483648
  %v1253 = vmul.f32 %v1252, 1.442695
  %v1254 = vpow.pop %v1253
  %v1255 = vadd.f32 %v1254, 1.0
  %v1256 = vrcp.pop %v1255
  %v1257 = vmul.f32 1.0, %v1256
  %v1259 = vrot.slane %v1042, 6
  %v1261 = vmul.f32 %v1158, %v1259
  %1263 = vrot.lane.b32.xlu0 %v1205, 64
  %v1264 = vpop.permute.xlu0 %1263
  %v1266 = vmul.f32 %v1106, %v1264
  %1268 = vrot.lane.b32.xlu0 %v1266, 32
  %v1269 = vpop.permute.xlu0 %1268
  %v1271 = vadd.f32 %v1261, %v1269
  %v1272 = vtanh.pop %v1271
  %1274 = vrot.lane.b32.xlu0 %v1272, 64
  %v1275 = vpop.permute.xlu0 %1274
  %v1277 = vmul.f32 %v1257, %v1275
  %v1278 = vpack.c.bf16 %v1277, %v1277
  %v1280 = vrot.slane %v1278, 3
  %1281 = vrot.lane.b32.xlu0 %v1280, 32
  %v1282 = vpop.permute.xlu0 %1281
  %v1284 = vsel %vm340, %v1282, 0
  %1286 = vmatprep.subr.bf16.mxu0 0
  %1287 = vmatpush1.bf16.msra.mxu0 %v336
  %1288 = vmatprep.subr.bf16.mxu0 0
  %1289 = vmatpush1.bf16.msra.mxu0 %v337
  %1290 = vmatprep.subr.bf16.mxu0 0
  %1291 = vmatpush1.bf16.msra.mxu0 0
  %1292 = vmatprep.subr.bf16.mxu0 0
  %1293 = vmatpush1.bf16.msra.mxu0 0
  %1294 = vmatprep.subr.bf16.mxu0 0
  %1295 = vmatpush1.bf16.msra.mxu0 0
  %1296 = vmatprep.subr.bf16.mxu0 0
  %1297 = vmatpush1.bf16.msra.mxu0 0
  %1298 = vmatprep.subr.bf16.mxu0 0
  %1299 = vmatpush1.bf16.msra.mxu0 0
  %1300 = vmatprep.subr.bf16.mxu0 0
  %1301 = vmatpush1.bf16.msra.mxu0 0
  %1302 = vmatprep.subr.bf16.mxu0 0
  %1303 = vmatpush1.bf16.msra.mxu0 0
  %1304 = vmatprep.subr.bf16.mxu0 0
  %1305 = vmatpush1.bf16.msra.mxu0 0
  %1306 = vmatprep.subr.bf16.mxu0 0
  %1307 = vmatpush1.bf16.msra.mxu0 0
  %1308 = vmatprep.subr.bf16.mxu0 0
  %1309 = vmatpush1.bf16.msra.mxu0 0
  %1310 = vmatprep.subr.bf16.mxu0 0
  %1311 = vmatpush1.bf16.msra.mxu0 0
  %1312 = vmatprep.subr.bf16.mxu0 0
  %1313 = vmatpush1.bf16.msra.mxu0 0
  %1314 = vmatprep.subr.bf16.mxu0 0
  %1315 = vmatpush1.bf16.msra.mxu0 0
  %1316 = vmatprep.subr.bf16.mxu0 0
  %1317 = vmatpush1.bf16.msra.mxu0 0
  %1318 = vmatprep.mubr.bf16.mxu0 0
  %1319 = vmatmul.mubr.bf16.gmra.mrb[0].mxu0 %v1284
  %v1320 = vpop.f32.mrb[0].mxu0
  %v1321 = vadd.f32 0.0, %v1320
  %v1322 = vpop.f32.mrb[0].mxu0
  %v1323 = vpop.f32.mrb[0].mxu0
  %v1324 = vpop.f32.mrb[0].mxu0
  %1325 = vdwg.mxu0
  %v1326 = vadd.f32 %v242, %v1321
  %v1327 = vxor.u32 %v1326, 2147483648
  %v1328 = vmul.f32 %v1327, 1.442695
  %v1329 = vpow.pop %v1328
  %v1330 = vadd.f32 %v1329, 1.0
  %v1331 = vrcp.pop %v1330
  %v1332 = vmul.f32 1.0, %v1331
  %1333 = vmatprep.subr.bf16.mxu0 0
  %1334 = vmatpush1.bf16.msra.mxu0 %v399
  %1335 = vmatprep.subr.bf16.mxu0 0
  %1336 = vmatpush1.bf16.msra.mxu0 %v400
  %1337 = vmatprep.subr.bf16.mxu0 0
  %1338 = vmatpush1.bf16.msra.mxu0 0
  %1339 = vmatprep.subr.bf16.mxu0 0
  %1340 = vmatpush1.bf16.msra.mxu0 0
  %1341 = vmatprep.subr.bf16.mxu0 0
  %1342 = vmatpush1.bf16.msra.mxu0 0
  %1343 = vmatprep.subr.bf16.mxu0 0
  %1344 = vmatpush1.bf16.msra.mxu0 0
  %1345 = vmatprep.subr.bf16.mxu0 0
  %1346 = vmatpush1.bf16.msra.mxu0 0
  %1347 = vmatprep.subr.bf16.mxu0 0
  %1348 = vmatpush1.bf16.msra.mxu0 0
  %1349 = vmatprep.subr.bf16.mxu0 0
  %1350 = vmatpush1.bf16.msra.mxu0 0
  %1351 = vmatprep.subr.bf16.mxu0 0
  %1352 = vmatpush1.bf16.msra.mxu0 0
  %1353 = vmatprep.subr.bf16.mxu0 0
  %1354 = vmatpush1.bf16.msra.mxu0 0
  %1355 = vmatprep.subr.bf16.mxu0 0
  %1356 = vmatpush1.bf16.msra.mxu0 0
  %1357 = vmatprep.subr.bf16.mxu0 0
  %1358 = vmatpush1.bf16.msra.mxu0 0
  %1359 = vmatprep.subr.bf16.mxu0 0
  %1360 = vmatpush1.bf16.msra.mxu0 0
  %1361 = vmatprep.subr.bf16.mxu0 0
  %1362 = vmatpush1.bf16.msra.mxu0 0
  %1363 = vmatprep.subr.bf16.mxu0 0
  %1364 = vmatpush1.bf16.msra.mxu0 0
  %1365 = vmatprep.mubr.bf16.mxu0 0
  %1366 = vmatmul.mubr.bf16.gmra.mrb[0].mxu0 %v1284
  %v1367 = vpop.f32.mrb[0].mxu0
  %v1368 = vadd.f32 0.0, %v1367
  %v1369 = vpop.f32.mrb[0].mxu0
  %v1370 = vpop.f32.mrb[0].mxu0
  %v1371 = vpop.f32.mrb[0].mxu0
  %1372 = vdwg.mxu0
  %1374 = vrot.lane.b32.xlu0 %v1368, 32
  %v1375 = vpop.permute.xlu0 %1374
  %v1377 = vadd.f32 %v242, %v1375
  %v1378 = vxor.u32 %v1377, 2147483648
  %v1379 = vmul.f32 %v1378, 1.442695
  %v1380 = vpow.pop %v1379
  %v1381 = vadd.f32 %v1380, 1.0
  %v1382 = vrcp.pop %v1381
  %v1383 = vmul.f32 1.0, %v1382
  %1384 = vmatprep.subr.bf16.mxu0 0
  %1385 = vmatpush1.bf16.msra.mxu0 %v462
  %1386 = vmatprep.subr.bf16.mxu0 0
  %1387 = vmatpush1.bf16.msra.mxu0 %v463
  %1388 = vmatprep.subr.bf16.mxu0 0
  %1389 = vmatpush1.bf16.msra.mxu0 0
  %1390 = vmatprep.subr.bf16.mxu0 0
  %1391 = vmatpush1.bf16.msra.mxu0 0
  %1392 = vmatprep.subr.bf16.mxu0 0
  %1393 = vmatpush1.bf16.msra.mxu0 0
  %1394 = vmatprep.subr.bf16.mxu0 0
  %1395 = vmatpush1.bf16.msra.mxu0 0
  %1396 = vmatprep.subr.bf16.mxu0 0
  %1397 = vmatpush1.bf16.msra.mxu0 0
  %1398 = vmatprep.subr.bf16.mxu0 0
  %1399 = vmatpush1.bf16.msra.mxu0 0
  %1400 = vmatprep.subr.bf16.mxu0 0
  %1401 = vmatpush1.bf16.msra.mxu0 0
  %1402 = vmatprep.subr.bf16.mxu0 0
  %1403 = vmatpush1.bf16.msra.mxu0 0
  %1404 = vmatprep.subr.bf16.mxu0 0
  %1405 = vmatpush1.bf16.msra.mxu0 0
  %1406 = vmatprep.subr.bf16.mxu0 0
  %1407 = vmatpush1.bf16.msra.mxu0 0
  %1408 = vmatprep.subr.bf16.mxu0 0
  %1409 = vmatpush1.bf16.msra.mxu0 0
  %1410 = vmatprep.subr.bf16.mxu0 0
  %1411 = vmatpush1.bf16.msra.mxu0 0
  %1412 = vmatprep.subr.bf16.mxu0 0
  %1413 = vmatpush1.bf16.msra.mxu0 0
  %1414 = vmatprep.subr.bf16.mxu0 0
  %1415 = vmatpush1.bf16.msra.mxu0 0
  %1416 = vmatprep.mubr.bf16.mxu0 0
  %1417 = vmatmul.mubr.bf16.gmra.mrb[0].mxu0 %v1284
  %v1418 = vpop.f32.mrb[0].mxu0
  %v1419 = vadd.f32 0.0, %v1418
  %v1420 = vpop.f32.mrb[0].mxu0
  %v1421 = vpop.f32.mrb[0].mxu0
  %v1422 = vpop.f32.mrb[0].mxu0
  %1423 = vdwg.mxu0
  %1425 = vrot.lane.b32.xlu0 %v1419, 64
  %v1426 = vpop.permute.xlu0 %1425
  %v1428 = vadd.f32 %v242, %v1426
  %v1429 = vtanh.pop %v1428
  %1430 = vmatprep.subr.bf16.mxu0 0
  %1431 = vmatpush1.bf16.msra.mxu0 %v520
  %1432 = vmatprep.subr.bf16.mxu0 0
  %1433 = vmatpush1.bf16.msra.mxu0 %v521
  %1434 = vmatprep.subr.bf16.mxu0 0
  %1435 = vmatpush1.bf16.msra.mxu0 0
  %1436 = vmatprep.subr.bf16.mxu0 0
  %1437 = vmatpush1.bf16.msra.mxu0 0
  %1438 = vmatprep.subr.bf16.mxu0 0
  %1439 = vmatpush1.bf16.msra.mxu0 0
  %1440 = vmatprep.subr.bf16.mxu0 0
  %1441 = vmatpush1.bf16.msra.mxu0 0
  %1442 = vmatprep.subr.bf16.mxu0 0
  %1443 = vmatpush1.bf16.msra.mxu0 0
  %1444 = vmatprep.subr.bf16.mxu0 0
  %1445 = vmatpush1.bf16.msra.mxu0 0
  %1446 = vmatprep.subr.bf16.mxu0 0
  %1447 = vmatpush1.bf16.msra.mxu0 0
  %1448 = vmatprep.subr.bf16.mxu0 0
  %1449 = vmatpush1.bf16.msra.mxu0 0
  %1450 = vmatprep.subr.bf16.mxu0 0
  %1451 = vmatpush1.bf16.msra.mxu0 0
  %1452 = vmatprep.subr.bf16.mxu0 0
  %1453 = vmatpush1.bf16.msra.mxu0 0
  %1454 = vmatprep.subr.bf16.mxu0 0
  %1455 = vmatpush1.bf16.msra.mxu0 0
  %1456 = vmatprep.subr.bf16.mxu0 0
  %1457 = vmatpush1.bf16.msra.mxu0 0
  %1458 = vmatprep.subr.bf16.mxu0 0
  %1459 = vmatpush1.bf16.msra.mxu0 0
  %1460 = vmatprep.subr.bf16.mxu0 0
  %1461 = vmatpush1.bf16.msra.mxu0 0
  %1462 = vmatprep.mubr.bf16.mxu0 0
  %1463 = vmatmul.mubr.bf16.gmra.mrb[0].mxu0 %v1284
  %v1464 = vpop.f32.mrb[0].mxu0
  %v1465 = vadd.f32 0.0, %v1464
  %v1466 = vpop.f32.mrb[0].mxu0
  %v1467 = vpop.f32.mrb[0].mxu0
  %v1468 = vpop.f32.mrb[0].mxu0
  %1469 = vdwg.mxu0
  %1471 = vrot.lane.b32.xlu0 %v1465, 96
  %v1472 = vpop.permute.xlu0 %1471
  %v1474 = vadd.f32 %v242, %v1472
  %v1475 = vxor.u32 %v1474, 2147483648
  %v1476 = vmul.f32 %v1475, 1.442695
  %v1477 = vpow.pop %v1476
  %v1478 = vadd.f32 %v1477, 1.0
  %v1479 = vrcp.pop %v1478
  %v1480 = vmul.f32 1.0, %v1479
  %v1482 = vrot.slane %v1271, 6
  %v1484 = vmul.f32 %v1383, %v1482
  %1486 = vrot.lane.b32.xlu0 %v1429, 64
  %v1487 = vpop.permute.xlu0 %1486
  %v1489 = vmul.f32 %v1332, %v1487
  %1491 = vrot.lane.b32.xlu0 %v1489, 32
  %v1492 = vpop.permute.xlu0 %1491
  %v1494 = vadd.f32 %v1484, %v1492
  %v1495 = vtanh.pop %v1494
  %1497 = vrot.lane.b32.xlu0 %v1495, 64
  %v1498 = vpop.permute.xlu0 %1497
  %v1500 = vmul.f32 %v1480, %v1498
  %v1501 = vpack.c.bf16 %v1500, %v1500
  %1503 = vrot.lane.b32.xlu0 %v1501, 32
  %v1504 = vpop.permute.xlu0 %1503
  %v1506 = vsel %vm340, %v1504, 0
  %1508 = vmatprep.subr.bf16.mxu0 0
  %1509 = vmatpush1.bf16.msra.mxu0 %v336
  %1510 = vmatprep.subr.bf16.mxu0 0
  %1511 = vmatpush1.bf16.msra.mxu0 %v337
  %1512 = vmatprep.subr.bf16.mxu0 0
  %1513 = vmatpush1.bf16.msra.mxu0 0
  %1514 = vmatprep.subr.bf16.mxu0 0
  %1515 = vmatpush1.bf16.msra.mxu0 0
  %1516 = vmatprep.subr.bf16.mxu0 0
  %1517 = vmatpush1.bf16.msra.mxu0 0
  %1518 = vmatprep.subr.bf16.mxu0 0
  %1519 = vmatpush1.bf16.msra.mxu0 0
  %1520 = vmatprep.subr.bf16.mxu0 0
  %1521 = vmatpush1.bf16.msra.mxu0 0
  %1522 = vmatprep.subr.bf16.mxu0 0
  %1523 = vmatpush1.bf16.msra.mxu0 0
  %1524 = vmatprep.subr.bf16.mxu0 0
  %1525 = vmatpush1.bf16.msra.mxu0 0
  %1526 = vmatprep.subr.bf16.mxu0 0
  %1527 = vmatpush1.bf16.msra.mxu0 0
  %1528 = vmatprep.subr.bf16.mxu0 0
  %1529 = vmatpush1.bf16.msra.mxu0 0
  %1530 = vmatprep.subr.bf16.mxu0 0
  %1531 = vmatpush1.bf16.msra.mxu0 0
  %1532 = vmatprep.subr.bf16.mxu0 0
  %1533 = vmatpush1.bf16.msra.mxu0 0
  %1534 = vmatprep.subr.bf16.mxu0 0
  %1535 = vmatpush1.bf16.msra.mxu0 0
  %1536 = vmatprep.subr.bf16.mxu0 0
  %1537 = vmatpush1.bf16.msra.mxu0 0
  %1538 = vmatprep.subr.bf16.mxu0 0
  %1539 = vmatpush1.bf16.msra.mxu0 0
  %1540 = vmatprep.mubr.bf16.mxu0 0
  %1541 = vmatmul.mubr.bf16.gmra.mrb[0].mxu0 %v1506
  %v1542 = vpop.f32.mrb[0].mxu0
  %v1543 = vadd.f32 0.0, %v1542
  %v1544 = vpop.f32.mrb[0].mxu0
  %v1545 = vpop.f32.mrb[0].mxu0
  %v1546 = vpop.f32.mrb[0].mxu0
  %1547 = vdwg.mxu0
  %v1549 = vrot.slane %v1543, 6
  %v1551 = vadd.f32 %v242, %v1549
  %v1552 = vxor.u32 %v1551, 2147483648
  %v1553 = vmul.f32 %v1552, 1.442695
  %v1554 = vpow.pop %v1553
  %v1555 = vadd.f32 %v1554, 1.0
  %v1556 = vrcp.pop %v1555
  %v1557 = vmul.f32 1.0, %v1556
  %1558 = vmatprep.subr.bf16.mxu0 0
  %1559 = vmatpush1.bf16.msra.mxu0 %v399
  %1560 = vmatprep.subr.bf16.mxu0 0
  %1561 = vmatpush1.bf16.msra.mxu0 %v400
  %1562 = vmatprep.subr.bf16.mxu0 0
  %1563 = vmatpush1.bf16.msra.mxu0 0
  %1564 = vmatprep.subr.bf16.mxu0 0
  %1565 = vmatpush1.bf16.msra.mxu0 0
  %1566 = vmatprep.subr.bf16.mxu0 0
  %1567 = vmatpush1.bf16.msra.mxu0 0
  %1568 = vmatprep.subr.bf16.mxu0 0
  %1569 = vmatpush1.bf16.msra.mxu0 0
  %1570 = vmatprep.subr.bf16.mxu0 0
  %1571 = vmatpush1.bf16.msra.mxu0 0
  %1572 = vmatprep.subr.bf16.mxu0 0
  %1573 = vmatpush1.bf16.msra.mxu0 0
  %1574 = vmatprep.subr.bf16.mxu0 0
  %1575 = vmatpush1.bf16.msra.mxu0 0
  %1576 = vmatprep.subr.bf16.mxu0 0
  %1577 = vmatpush1.bf16.msra.mxu0 0
  %1578 = vmatprep.subr.bf16.mxu0 0
  %1579 = vmatpush1.bf16.msra.mxu0 0
  %1580 = vmatprep.subr.bf16.mxu0 0
  %1581 = vmatpush1.bf16.msra.mxu0 0
  %1582 = vmatprep.subr.bf16.mxu0 0
  %1583 = vmatpush1.bf16.msra.mxu0 0
  %1584 = vmatprep.subr.bf16.mxu0 0
  %1585 = vmatpush1.bf16.msra.mxu0 0
  %1586 = vmatprep.subr.bf16.mxu0 0
  %1587 = vmatpush1.bf16.msra.mxu0 0
  %1588 = vmatprep.subr.bf16.mxu0 0
  %1589 = vmatpush1.bf16.msra.mxu0 0
  %1590 = vmatprep.mubr.bf16.mxu0 0
  %1591 = vmatmul.mubr.bf16.gmra.mrb[0].mxu0 %v1506
  %v1592 = vpop.f32.mrb[0].mxu0
  %v1593 = vadd.f32 0.0, %v1592
  %v1594 = vpop.f32.mrb[0].mxu0
  %v1595 = vpop.f32.mrb[0].mxu0
  %v1596 = vpop.f32.mrb[0].mxu0
  %1597 = vdwg.mxu0
  %v1599 = vrot.slane %v1593, 6
  %1600 = vrot.lane.b32.xlu0 %v1599, 32
  %v1601 = vpop.permute.xlu0 %1600
  %v1603 = vadd.f32 %v242, %v1601
  %v1604 = vxor.u32 %v1603, 2147483648
  %v1605 = vmul.f32 %v1604, 1.442695
  %v1606 = vpow.pop %v1605
  %v1607 = vadd.f32 %v1606, 1.0
  %v1608 = vrcp.pop %v1607
  %v1609 = vmul.f32 1.0, %v1608
  %1610 = vmatprep.subr.bf16.mxu0 0
  %1611 = vmatpush1.bf16.msra.mxu0 %v462
  %1612 = vmatprep.subr.bf16.mxu0 0
  %1613 = vmatpush1.bf16.msra.mxu0 %v463
  %1614 = vmatprep.subr.bf16.mxu0 0
  %1615 = vmatpush1.bf16.msra.mxu0 0
  %1616 = vmatprep.subr.bf16.mxu0 0
  %1617 = vmatpush1.bf16.msra.mxu0 0
  %1618 = vmatprep.subr.bf16.mxu0 0
  %1619 = vmatpush1.bf16.msra.mxu0 0
  %1620 = vmatprep.subr.bf16.mxu0 0
  %1621 = vmatpush1.bf16.msra.mxu0 0
  %1622 = vmatprep.subr.bf16.mxu0 0
  %1623 = vmatpush1.bf16.msra.mxu0 0
  %1624 = vmatprep.subr.bf16.mxu0 0
  %1625 = vmatpush1.bf16.msra.mxu0 0
  %1626 = vmatprep.subr.bf16.mxu0 0
  %1627 = vmatpush1.bf16.msra.mxu0 0
  %1628 = vmatprep.subr.bf16.mxu0 0
  %1629 = vmatpush1.bf16.msra.mxu0 0
  %1630 = vmatprep.subr.bf16.mxu0 0
  %1631 = vmatpush1.bf16.msra.mxu0 0
  %1632 = vmatprep.subr.bf16.mxu0 0
  %1633 = vmatpush1.bf16.msra.mxu0 0
  %1634 = vmatprep.subr.bf16.mxu0 0
  %1635 = vmatpush1.bf16.msra.mxu0 0
  %1636 = vmatprep.subr.bf16.mxu0 0
  %1637 = vmatpush1.bf16.msra.mxu0 0
  %1638 = vmatprep.subr.bf16.mxu0 0
  %1639 = vmatpush1.bf16.msra.mxu0 0
  %1640 = vmatprep.subr.bf16.mxu0 0
  %1641 = vmatpush1.bf16.msra.mxu0 0
  %1642 = vmatprep.mubr.bf16.mxu0 0
  %1643 = vmatmul.mubr.bf16.gmra.mrb[0].mxu0 %v1506
  %v1644 = vpop.f32.mrb[0].mxu0
  %v1645 = vadd.f32 0.0, %v1644
  %v1646 = vpop.f32.mrb[0].mxu0
  %v1647 = vpop.f32.mrb[0].mxu0
  %v1648 = vpop.f32.mrb[0].mxu0
  %1649 = vdwg.mxu0
  %v1651 = vrot.slane %v1645, 6
  %1652 = vrot.lane.b32.xlu0 %v1651, 64
  %v1653 = vpop.permute.xlu0 %1652
  %v1655 = vadd.f32 %v242, %v1653
  %v1656 = vtanh.pop %v1655
  %1657 = vmatprep.subr.bf16.mxu0 0
  %1658 = vmatpush1.bf16.msra.mxu0 %v520
  %1659 = vmatprep.subr.bf16.mxu0 0
  %1660 = vmatpush1.bf16.msra.mxu0 %v521
  %1661 = vmatprep.subr.bf16.mxu0 0
  %1662 = vmatpush1.bf16.msra.mxu0 0
  %1663 = vmatprep.subr.bf16.mxu0 0
  %1664 = vmatpush1.bf16.msra.mxu0 0
  %1665 = vmatprep.subr.bf16.mxu0 0
  %1666 = vmatpush1.bf16.msra.mxu0 0
  %1667 = vmatprep.subr.bf16.mxu0 0
  %1668 = vmatpush1.bf16.msra.mxu0 0
  %1669 = vmatprep.subr.bf16.mxu0 0
  %1670 = vmatpush1.bf16.msra.mxu0 0
  %1671 = vmatprep.subr.bf16.mxu0 0
  %1672 = vmatpush1.bf16.msra.mxu0 0
  %1673 = vmatprep.subr.bf16.mxu0 0
  %1674 = vmatpush1.bf16.msra.mxu0 0
  %1675 = vmatprep.subr.bf16.mxu0 0
  %1676 = vmatpush1.bf16.msra.mxu0 0
  %1677 = vmatprep.subr.bf16.mxu0 0
  %1678 = vmatpush1.bf16.msra.mxu0 0
  %1679 = vmatprep.subr.bf16.mxu0 0
  %1680 = vmatpush1.bf16.msra.mxu0 0
  %1681 = vmatprep.subr.bf16.mxu0 0
  %1682 = vmatpush1.bf16.msra.mxu0 0
  %1683 = vmatprep.subr.bf16.mxu0 0
  %1684 = vmatpush1.bf16.msra.mxu0 0
  %1685 = vmatprep.subr.bf16.mxu0 0
  %1686 = vmatpush1.bf16.msra.mxu0 0
  %1687 = vmatprep.subr.bf16.mxu0 0
  %1688 = vmatpush1.bf16.msra.mxu0 0
  %1689 = vmatprep.mubr.bf16.mxu0 0
  %1690 = vmatmul.mubr.bf16.gmra.mrb[0].mxu0 %v1506
  %v1691 = vpop.f32.mrb[0].mxu0
  %v1692 = vadd.f32 0.0, %v1691
  %v1693 = vpop.f32.mrb[0].mxu0
  %v1694 = vpop.f32.mrb[0].mxu0
  %v1695 = vpop.f32.mrb[0].mxu0
  %1696 = vdwg.mxu0
  %v1698 = vrot.slane %v1692, 6
  %1699 = vrot.lane.b32.xlu0 %v1698, 96
  %v1700 = vpop.permute.xlu0 %1699
  %v1702 = vadd.f32 %v242, %v1700
  %v1703 = vxor.u32 %v1702, 2147483648
  %v1704 = vmul.f32 %v1703, 1.442695
  %v1705 = vpow.pop %v1704
  %v1706 = vadd.f32 %v1705, 1.0
  %v1707 = vrcp.pop %v1706
  %v1708 = vmul.f32 1.0, %v1707
  %v1710 = vrot.slane %v1494, 6
  %v1712 = vmul.f32 %v1609, %v1710
  %1714 = vrot.lane.b32.xlu0 %v1656, 64
  %v1715 = vpop.permute.xlu0 %1714
  %v1717 = vmul.f32 %v1557, %v1715
  %1719 = vrot.lane.b32.xlu0 %v1717, 32
  %v1720 = vpop.permute.xlu0 %1719
  %v1722 = vadd.f32 %v1712, %v1720
  %v1723 = vtanh.pop %v1722
  %1725 = vrot.lane.b32.xlu0 %v1723, 64
  %v1726 = vpop.permute.xlu0 %1725
  %v1728 = vmul.f32 %v1708, %v1726
  %v1729 = vpack.c.bf16 %v1728, %v1728
  %v1731 = vrot.slane %v1729, 1
  %1732 = vrot.lane.b32.xlu0 %v1731, 32
  %v1733 = vpop.permute.xlu0 %1732
  %v1735 = vsel %vm340, %v1733, 0
  %1737 = vmatprep.subr.bf16.mxu0 0
  %1738 = vmatpush1.bf16.msra.mxu0 %v336
  %1739 = vmatprep.subr.bf16.mxu0 0
  %1740 = vmatpush1.bf16.msra.mxu0 %v337
  %1741 = vmatprep.subr.bf16.mxu0 0
  %1742 = vmatpush1.bf16.msra.mxu0 0
  %1743 = vmatprep.subr.bf16.mxu0 0
  %1744 = vmatpush1.bf16.msra.mxu0 0
  %1745 = vmatprep.subr.bf16.mxu0 0
  %1746 = vmatpush1.bf16.msra.mxu0 0
  %1747 = vmatprep.subr.bf16.mxu0 0
  %1748 = vmatpush1.bf16.msra.mxu0 0
  %1749 = vmatprep.subr.bf16.mxu0 0
  %1750 = vmatpush1.bf16.msra.mxu0 0
  %1751 = vmatprep.subr.bf16.mxu0 0
  %1752 = vmatpush1.bf16.msra.mxu0 0
  %1753 = vmatprep.subr.bf16.mxu0 0
  %1754 = vmatpush1.bf16.msra.mxu0 0
  %1755 = vmatprep.subr.bf16.mxu0 0
  %1756 = vmatpush1.bf16.msra.mxu0 0
  %1757 = vmatprep.subr.bf16.mxu0 0
  %1758 = vmatpush1.bf16.msra.mxu0 0
  %1759 = vmatprep.subr.bf16.mxu0 0
  %1760 = vmatpush1.bf16.msra.mxu0 0
  %1761 = vmatprep.subr.bf16.mxu0 0
  %1762 = vmatpush1.bf16.msra.mxu0 0
  %1763 = vmatprep.subr.bf16.mxu0 0
  %1764 = vmatpush1.bf16.msra.mxu0 0
  %1765 = vmatprep.subr.bf16.mxu0 0
  %1766 = vmatpush1.bf16.msra.mxu0 0
  %1767 = vmatprep.subr.bf16.mxu0 0
  %1768 = vmatpush1.bf16.msra.mxu0 0
  %1769 = vmatprep.mubr.bf16.mxu0 0
  %1770 = vmatmul.mubr.bf16.gmra.mrb[0].mxu0 %v1735
  %v1771 = vpop.f32.mrb[0].mxu0
  %v1772 = vadd.f32 0.0, %v1771
  %v1773 = vpop.f32.mrb[0].mxu0
  %v1774 = vpop.f32.mrb[0].mxu0
  %v1775 = vpop.f32.mrb[0].mxu0
  %1776 = vdwg.mxu0
  %v1778 = vrot.slane %v1772, 4
  %v1780 = vadd.f32 %v242, %v1778
  %v1781 = vxor.u32 %v1780, 2147483648
  %v1782 = vmul.f32 %v1781, 1.442695
  %v1783 = vpow.pop %v1782
  %v1784 = vadd.f32 %v1783, 1.0
  %v1785 = vrcp.pop %v1784
  %v1786 = vmul.f32 1.0, %v1785
  %1787 = vmatprep.subr.bf16.mxu0 0
  %1788 = vmatpush1.bf16.msra.mxu0 %v399
  %1789 = vmatprep.subr.bf16.mxu0 0
  %1790 = vmatpush1.bf16.msra.mxu0 %v400
  %1791 = vmatprep.subr.bf16.mxu0 0
  %1792 = vmatpush1.bf16.msra.mxu0 0
  %1793 = vmatprep.subr.bf16.mxu0 0
  %1794 = vmatpush1.bf16.msra.mxu0 0
  %1795 = vmatprep.subr.bf16.mxu0 0
  %1796 = vmatpush1.bf16.msra.mxu0 0
  %1797 = vmatprep.subr.bf16.mxu0 0
  %1798 = vmatpush1.bf16.msra.mxu0 0
  %1799 = vmatprep.subr.bf16.mxu0 0
  %1800 = vmatpush1.bf16.msra.mxu0 0
  %1801 = vmatprep.subr.bf16.mxu0 0
  %1802 = vmatpush1.bf16.msra.mxu0 0
  %1803 = vmatprep.subr.bf16.mxu0 0
  %1804 = vmatpush1.bf16.msra.mxu0 0
  %1805 = vmatprep.subr.bf16.mxu0 0
  %1806 = vmatpush1.bf16.msra.mxu0 0
  %1807 = vmatprep.subr.bf16.mxu0 0
  %1808 = vmatpush1.bf16.msra.mxu0 0
  %1809 = vmatprep.subr.bf16.mxu0 0
  %1810 = vmatpush1.bf16.msra.mxu0 0
  %1811 = vmatprep.subr.bf16.mxu0 0
  %1812 = vmatpush1.bf16.msra.mxu0 0
  %1813 = vmatprep.subr.bf16.mxu0 0
  %1814 = vmatpush1.bf16.msra.mxu0 0
  %1815 = vmatprep.subr.bf16.mxu0 0
  %1816 = vmatpush1.bf16.msra.mxu0 0
  %1817 = vmatprep.subr.bf16.mxu0 0
  %1818 = vmatpush1.bf16.msra.mxu0 0
  %1819 = vmatprep.mubr.bf16.mxu0 0
  %1820 = vmatmul.mubr.bf16.gmra.mrb[0].mxu0 %v1735
  %v1821 = vpop.f32.mrb[0].mxu0
  %v1822 = vadd.f32 0.0, %v1821
  %v1823 = vpop.f32.mrb[0].mxu0
  %v1824 = vpop.f32.mrb[0].mxu0
  %v1825 = vpop.f32.mrb[0].mxu0
  %1826 = vdwg.mxu0
  %v1828 = vrot.slane %v1822, 4
  %1829 = vrot.lane.b32.xlu0 %v1828, 32
  %v1830 = vpop.permute.xlu0 %1829
  %v1832 = vadd.f32 %v242, %v1830
  %v1833 = vxor.u32 %v1832, 2147483648
  %v1834 = vmul.f32 %v1833, 1.442695
  %v1835 = vpow.pop %v1834
  %v1836 = vadd.f32 %v1835, 1.0
  %v1837 = vrcp.pop %v1836
  %v1838 = vmul.f32 1.0, %v1837
  %1839 = vmatprep.subr.bf16.mxu0 0
  %1840 = vmatpush1.bf16.msra.mxu0 %v462
  %1841 = vmatprep.subr.bf16.mxu0 0
  %1842 = vmatpush1.bf16.msra.mxu0 %v463
  %1843 = vmatprep.subr.bf16.mxu0 0
  %1844 = vmatpush1.bf16.msra.mxu0 0
  %1845 = vmatprep.subr.bf16.mxu0 0
  %1846 = vmatpush1.bf16.msra.mxu0 0
  %1847 = vmatprep.subr.bf16.mxu0 0
  %1848 = vmatpush1.bf16.msra.mxu0 0
  %1849 = vmatprep.subr.bf16.mxu0 0
  %1850 = vmatpush1.bf16.msra.mxu0 0
  %1851 = vmatprep.subr.bf16.mxu0 0
  %1852 = vmatpush1.bf16.msra.mxu0 0
  %1853 = vmatprep.subr.bf16.mxu0 0
  %1854 = vmatpush1.bf16.msra.mxu0 0
  %1855 = vmatprep.subr.bf16.mxu0 0
  %1856 = vmatpush1.bf16.msra.mxu0 0
  %1857 = vmatprep.subr.bf16.mxu0 0
  %1858 = vmatpush1.bf16.msra.mxu0 0
  %1859 = vmatprep.subr.bf16.mxu0 0
  %1860 = vmatpush1.bf16.msra.mxu0 0
  %1861 = vmatprep.subr.bf16.mxu0 0
  %1862 = vmatpush1.bf16.msra.mxu0 0
  %1863 = vmatprep.subr.bf16.mxu0 0
  %1864 = vmatpush1.bf16.msra.mxu0 0
  %1865 = vmatprep.subr.bf16.mxu0 0
  %1866 = vmatpush1.bf16.msra.mxu0 0
  %1867 = vmatprep.subr.bf16.mxu0 0
  %1868 = vmatpush1.bf16.msra.mxu0 0
  %1869 = vmatprep.subr.bf16.mxu0 0
  %1870 = vmatpush1.bf16.msra.mxu0 0
  %1871 = vmatprep.mubr.bf16.mxu0 0
  %1872 = vmatmul.mubr.bf16.gmra.mrb[0].mxu0 %v1735
  %v1873 = vpop.f32.mrb[0].mxu0
  %v1874 = vadd.f32 0.0, %v1873
  %v1875 = vpop.f32.mrb[0].mxu0
  %v1876 = vpop.f32.mrb[0].mxu0
  %v1877 = vpop.f32.mrb[0].mxu0
  %1878 = vdwg.mxu0
  %v1880 = vrot.slane %v1874, 4
  %1881 = vrot.lane.b32.xlu0 %v1880, 64
  %v1882 = vpop.permute.xlu0 %1881
  %v1884 = vadd.f32 %v242, %v1882
  %v1885 = vtanh.pop %v1884
  %1886 = vmatprep.subr.bf16.mxu0 0
  %1887 = vmatpush1.bf16.msra.mxu0 %v520
  %1888 = vmatprep.subr.bf16.mxu0 0
  %1889 = vmatpush1.bf16.msra.mxu0 %v521
  %1890 = vmatprep.subr.bf16.mxu0 0
  %1891 = vmatpush1.bf16.msra.mxu0 0
  %1892 = vmatprep.subr.bf16.mxu0 0
  %1893 = vmatpush1.bf16.msra.mxu0 0
  %1894 = vmatprep.subr.bf16.mxu0 0
  %1895 = vmatpush1.bf16.msra.mxu0 0
  %1896 = vmatprep.subr.bf16.mxu0 0
  %1897 = vmatpush1.bf16.msra.mxu0 0
  %1898 = vmatprep.subr.bf16.mxu0 0
  %1899 = vmatpush1.bf16.msra.mxu0 0
  %1900 = vmatprep.subr.bf16.mxu0 0
  %1901 = vmatpush1.bf16.msra.mxu0 0
  %1902 = vmatprep.subr.bf16.mxu0 0
  %1903 = vmatpush1.bf16.msra.mxu0 0
  %1904 = vmatprep.subr.bf16.mxu0 0
  %1905 = vmatpush1.bf16.msra.mxu0 0
  %1906 = vmatprep.subr.bf16.mxu0 0
  %1907 = vmatpush1.bf16.msra.mxu0 0
  %1908 = vmatprep.subr.bf16.mxu0 0
  %1909 = vmatpush1.bf16.msra.mxu0 0
  %1910 = vmatprep.subr.bf16.mxu0 0
  %1911 = vmatpush1.bf16.msra.mxu0 0
  %1912 = vmatprep.subr.bf16.mxu0 0
  %1913 = vmatpush1.bf16.msra.mxu0 0
  %1914 = vmatprep.subr.bf16.mxu0 0
  %1915 = vmatpush1.bf16.msra.mxu0 0
  %1916 = vmatprep.subr.bf16.mxu0 0
  %1917 = vmatpush1.bf16.msra.mxu0 0
  %1918 = vmatprep.mubr.bf16.mxu0 0
  %1919 = vmatmul.mubr.bf16.gmra.mrb[0].mxu0 %v1735
  %v1920 = vpop.f32.mrb[0].mxu0
  %v1921 = vadd.f32 0.0, %v1920
  %v1922 = vpop.f32.mrb[0].mxu0
  %v1923 = vpop.f32.mrb[0].mxu0
  %v1924 = vpop.f32.mrb[0].mxu0
  %1925 = vdwg.mxu0
  %v1927 = vrot.slane %v1921, 4
  %1928 = vrot.lane.b32.xlu0 %v1927, 96
  %v1929 = vpop.permute.xlu0 %1928
  %v1931 = vadd.f32 %v242, %v1929
  %v1932 = vxor.u32 %v1931, 2147483648
  %v1933 = vmul.f32 %v1932, 1.442695
  %v1934 = vpow.pop %v1933
  %v1935 = vadd.f32 %v1934, 1.0
  %v1936 = vrcp.pop %v1935
  %v1937 = vmul.f32 1.0, %v1936
  %v1939 = vrot.slane %v1722, 6
  %v1941 = vmul.f32 %v1838, %v1939
  %1943 = vrot.lane.b32.xlu0 %v1885, 64
  %v1944 = vpop.permute.xlu0 %1943
  %v1946 = vmul.f32 %v1786, %v1944
  %1948 = vrot.lane.b32.xlu0 %v1946, 32
  %v1949 = vpop.permute.xlu0 %1948
  %v1951 = vadd.f32 %v1941, %v1949
  %v1952 = vtanh.pop %v1951
  %1954 = vrot.lane.b32.xlu0 %v1952, 64
  %v1955 = vpop.permute.xlu0 %1954
  %v1957 = vmul.f32 %v1937, %v1955
  %v1958 = vpack.c.bf16 %v1957, %v1957
  %v1960 = vrot.slane %v1958, 2
  %1961 = vrot.lane.b32.xlu0 %v1960, 32
  %v1962 = vpop.permute.xlu0 %1961
  %v1964 = vsel %vm340, %v1962, 0
  %1966 = vmatprep.subr.bf16.mxu0 0
  %1967 = vmatpush1.bf16.msra.mxu0 %v336
  %1968 = vmatprep.subr.bf16.mxu0 0
  %1969 = vmatpush1.bf16.msra.mxu0 %v337
  %1970 = vmatprep.subr.bf16.mxu0 0
  %1971 = vmatpush1.bf16.msra.mxu0 0
  %1972 = vmatprep.subr.bf16.mxu0 0
  %1973 = vmatpush1.bf16.msra.mxu0 0
  %1974 = vmatprep.subr.bf16.mxu0 0
  %1975 = vmatpush1.bf16.msra.mxu0 0
  %1976 = vmatprep.subr.bf16.mxu0 0
  %1977 = vmatpush1.bf16.msra.mxu0 0
  %1978 = vmatprep.subr.bf16.mxu0 0
  %1979 = vmatpush1.bf16.msra.mxu0 0
  %1980 = vmatprep.subr.bf16.mxu0 0
  %1981 = vmatpush1.bf16.msra.mxu0 0
  %1982 = vmatprep.subr.bf16.mxu0 0
  %1983 = vmatpush1.bf16.msra.mxu0 0
  %1984 = vmatprep.subr.bf16.mxu0 0
  %1985 = vmatpush1.bf16.msra.mxu0 0
  %1986 = vmatprep.subr.bf16.mxu0 0
  %1987 = vmatpush1.bf16.msra.mxu0 0
  %1988 = vmatprep.subr.bf16.mxu0 0
  %1989 = vmatpush1.bf16.msra.mxu0 0
  %1990 = vmatprep.subr.bf16.mxu0 0
  %1991 = vmatpush1.bf16.msra.mxu0 0
  %1992 = vmatprep.subr.bf16.mxu0 0
  %1993 = vmatpush1.bf16.msra.mxu0 0
  %1994 = vmatprep.subr.bf16.mxu0 0
  %1995 = vmatpush1.bf16.msra.mxu0 0
  %1996 = vmatprep.subr.bf16.mxu0 0
  %1997 = vmatpush1.bf16.msra.mxu0 0
  %1998 = vmatprep.mubr.bf16.mxu0 0
  %1999 = vmatmul.mubr.bf16.gmra.mrb[0].mxu0 %v1964
  %v2000 = vpop.f32.mrb[0].mxu0
  %v2001 = vadd.f32 0.0, %v2000
  %v2002 = vpop.f32.mrb[0].mxu0
  %v2003 = vpop.f32.mrb[0].mxu0
  %v2004 = vpop.f32.mrb[0].mxu0
  %2005 = vdwg.mxu0
  %v2007 = vrot.slane %v2001, 2
  %v2009 = vadd.f32 %v242, %v2007
  %v2010 = vxor.u32 %v2009, 2147483648
  %v2011 = vmul.f32 %v2010, 1.442695
  %v2012 = vpow.pop %v2011
  %v2013 = vadd.f32 %v2012, 1.0
  %v2014 = vrcp.pop %v2013
  %v2015 = vmul.f32 1.0, %v2014
  %2016 = vmatprep.subr.bf16.mxu0 0
  %2017 = vmatpush1.bf16.msra.mxu0 %v399
  %2018 = vmatprep.subr.bf16.mxu0 0
  %2019 = vmatpush1.bf16.msra.mxu0 %v400
  %2020 = vmatprep.subr.bf16.mxu0 0
  %2021 = vmatpush1.bf16.msra.mxu0 0
  %2022 = vmatprep.subr.bf16.mxu0 0
  %2023 = vmatpush1.bf16.msra.mxu0 0
  %2024 = vmatprep.subr.bf16.mxu0 0
  %2025 = vmatpush1.bf16.msra.mxu0 0
  %2026 = vmatprep.subr.bf16.mxu0 0
  %2027 = vmatpush1.bf16.msra.mxu0 0
  %2028 = vmatprep.subr.bf16.mxu0 0
  %2029 = vmatpush1.bf16.msra.mxu0 0
  %2030 = vmatprep.subr.bf16.mxu0 0
  %2031 = vmatpush1.bf16.msra.mxu0 0
  %2032 = vmatprep.subr.bf16.mxu0 0
  %2033 = vmatpush1.bf16.msra.mxu0 0
  %2034 = vmatprep.subr.bf16.mxu0 0
  %2035 = vmatpush1.bf16.msra.mxu0 0
  %2036 = vmatprep.subr.bf16.mxu0 0
  %2037 = vmatpush1.bf16.msra.mxu0 0
  %2038 = vmatprep.subr.bf16.mxu0 0
  %2039 = vmatpush1.bf16.msra.mxu0 0
  %2040 = vmatprep.subr.bf16.mxu0 0
  %2041 = vmatpush1.bf16.msra.mxu0 0
  %2042 = vmatprep.subr.bf16.mxu0 0
  %2043 = vmatpush1.bf16.msra.mxu0 0
  %2044 = vmatprep.subr.bf16.mxu0 0
  %2045 = vmatpush1.bf16.msra.mxu0 0
  %2046 = vmatprep.subr.bf16.mxu0 0
  %2047 = vmatpush1.bf16.msra.mxu0 0
  %2048 = vmatprep.mubr.bf16.mxu0 0
  %2049 = vmatmul.mubr.bf16.gmra.mrb[0].mxu0 %v1964
  %v2050 = vpop.f32.mrb[0].mxu0
  %v2051 = vadd.f32 0.0, %v2050
  %v2052 = vpop.f32.mrb[0].mxu0
  %v2053 = vpop.f32.mrb[0].mxu0
  %v2054 = vpop.f32.mrb[0].mxu0
  %2055 = vdwg.mxu0
  %v2057 = vrot.slane %v2051, 2
  %2058 = vrot.lane.b32.xlu0 %v2057, 32
  %v2059 = vpop.permute.xlu0 %2058
  %v2061 = vadd.f32 %v242, %v2059
  %v2062 = vxor.u32 %v2061, 2147483648
  %v2063 = vmul.f32 %v2062, 1.442695
  %v2064 = vpow.pop %v2063
  %v2065 = vadd.f32 %v2064, 1.0
  %v2066 = vrcp.pop %v2065
  %v2067 = vmul.f32 1.0, %v2066
  %2068 = vmatprep.subr.bf16.mxu0 0
  %2069 = vmatpush1.bf16.msra.mxu0 %v462
  %2070 = vmatprep.subr.bf16.mxu0 0
  %2071 = vmatpush1.bf16.msra.mxu0 %v463
  %2072 = vmatprep.subr.bf16.mxu0 0
  %2073 = vmatpush1.bf16.msra.mxu0 0
  %2074 = vmatprep.subr.bf16.mxu0 0
  %2075 = vmatpush1.bf16.msra.mxu0 0
  %2076 = vmatprep.subr.bf16.mxu0 0
  %2077 = vmatpush1.bf16.msra.mxu0 0
  %2078 = vmatprep.subr.bf16.mxu0 0
  %2079 = vmatpush1.bf16.msra.mxu0 0
  %2080 = vmatprep.subr.bf16.mxu0 0
  %2081 = vmatpush1.bf16.msra.mxu0 0
  %2082 = vmatprep.subr.bf16.mxu0 0
  %2083 = vmatpush1.bf16.msra.mxu0 0
  %2084 = vmatprep.subr.bf16.mxu0 0
  %2085 = vmatpush1.bf16.msra.mxu0 0
  %2086 = vmatprep.subr.bf16.mxu0 0
  %2087 = vmatpush1.bf16.msra.mxu0 0
  %2088 = vmatprep.subr.bf16.mxu0 0
  %2089 = vmatpush1.bf16.msra.mxu0 0
  %2090 = vmatprep.subr.bf16.mxu0 0
  %2091 = vmatpush1.bf16.msra.mxu0 0
  %2092 = vmatprep.subr.bf16.mxu0 0
  %2093 = vmatpush1.bf16.msra.mxu0 0
  %2094 = vmatprep.subr.bf16.mxu0 0
  %2095 = vmatpush1.bf16.msra.mxu0 0
  %2096 = vmatprep.subr.bf16.mxu0 0
  %2097 = vmatpush1.bf16.msra.mxu0 0
  %2098 = vmatprep.subr.bf16.mxu0 0
  %2099 = vmatpush1.bf16.msra.mxu0 0
  %2100 = vmatprep.mubr.bf16.mxu0 0
  %2101 = vmatmul.mubr.bf16.gmra.mrb[0].mxu0 %v1964
  %v2102 = vpop.f32.mrb[0].mxu0
  %v2103 = vadd.f32 0.0, %v2102
  %v2104 = vpop.f32.mrb[0].mxu0
  %v2105 = vpop.f32.mrb[0].mxu0
  %v2106 = vpop.f32.mrb[0].mxu0
  %2107 = vdwg.mxu0
  %v2109 = vrot.slane %v2103, 2
  %2110 = vrot.lane.b32.xlu0 %v2109, 64
  %v2111 = vpop.permute.xlu0 %2110
  %v2113 = vadd.f32 %v242, %v2111
  %v2114 = vtanh.pop %v2113
  %2115 = vmatprep.subr.bf16.mxu0 0
  %2116 = vmatpush1.bf16.msra.mxu0 %v520
  %2117 = vmatprep.subr.bf16.mxu0 0
  %2118 = vmatpush1.bf16.msra.mxu0 %v521
  %2119 = vmatprep.subr.bf16.mxu0 0
  %2120 = vmatpush1.bf16.msra.mxu0 0
  %2121 = vmatprep.subr.bf16.mxu0 0
  %2122 = vmatpush1.bf16.msra.mxu0 0
  %2123 = vmatprep.subr.bf16.mxu0 0
  %2124 = vmatpush1.bf16.msra.mxu0 0
  %2125 = vmatprep.subr.bf16.mxu0 0
  %2126 = vmatpush1.bf16.msra.mxu0 0
  %2127 = vmatprep.subr.bf16.mxu0 0
  %2128 = vmatpush1.bf16.msra.mxu0 0
  %2129 = vmatprep.subr.bf16.mxu0 0
  %2130 = vmatpush1.bf16.msra.mxu0 0
  %2131 = vmatprep.subr.bf16.mxu0 0
  %2132 = vmatpush1.bf16.msra.mxu0 0
  %2133 = vmatprep.subr.bf16.mxu0 0
  %2134 = vmatpush1.bf16.msra.mxu0 0
  %2135 = vmatprep.subr.bf16.mxu0 0
  %2136 = vmatpush1.bf16.msra.mxu0 0
  %2137 = vmatprep.subr.bf16.mxu0 0
  %2138 = vmatpush1.bf16.msra.mxu0 0
  %2139 = vmatprep.subr.bf16.mxu0 0
  %2140 = vmatpush1.bf16.msra.mxu0 0
  %2141 = vmatprep.subr.bf16.mxu0 0
  %2142 = vmatpush1.bf16.msra.mxu0 0
  %2143 = vmatprep.subr.bf16.mxu0 0
  %2144 = vmatpush1.bf16.msra.mxu0 0
  %2145 = vmatprep.subr.bf16.mxu0 0
  %2146 = vmatpush1.bf16.msra.mxu0 0
  %2147 = vmatprep.mubr.bf16.mxu0 0
  %2148 = vmatmul.mubr.bf16.gmra.mrb[0].mxu0 %v1964
  %v2149 = vpop.f32.mrb[0].mxu0
  %v2150 = vadd.f32 0.0, %v2149
  %v2151 = vpop.f32.mrb[0].mxu0
  %v2152 = vpop.f32.mrb[0].mxu0
  %v2153 = vpop.f32.mrb[0].mxu0
  %2154 = vdwg.mxu0
  %v2156 = vrot.slane %v2150, 2
  %2157 = vrot.lane.b32.xlu0 %v2156, 96
  %v2158 = vpop.permute.xlu0 %2157
  %v2160 = vadd.f32 %v242, %v2158
  %v2161 = vxor.u32 %v2160, 2147483648
  %v2162 = vmul.f32 %v2161, 1.442695
  %v2163 = vpow.pop %v2162
  %v2164 = vadd.f32 %v2163, 1.0
  %v2165 = vrcp.pop %v2164
  %v2166 = vmul.f32 1.0, %v2165
  %v2168 = vrot.slane %v1951, 6
  %v2170 = vmul.f32 %v2067, %v2168
  %2172 = vrot.lane.b32.xlu0 %v2114, 64
  %v2173 = vpop.permute.xlu0 %2172
  %v2175 = vmul.f32 %v2015, %v2173
  %2177 = vrot.lane.b32.xlu0 %v2175, 32
  %v2178 = vpop.permute.xlu0 %2177
  %v2180 = vadd.f32 %v2170, %v2178
  %v2181 = vtanh.pop %v2180
  %2183 = vrot.lane.b32.xlu0 %v2181, 64
  %v2184 = vpop.permute.xlu0 %2183
  %v2186 = vmul.f32 %v2166, %v2184
  %v2187 = vpack.c.bf16 %v2186, %v2186
  %v2189 = vrot.slane %v2187, 3
  %2190 = vrot.lane.b32.xlu0 %v2189, 32
  %v2191 = vpop.permute.xlu0 %2190
  %v2193 = vsel %vm340, %v2191, 0
  %2195 = vmatprep.subr.bf16.mxu0 0
  %2196 = vmatpush1.bf16.msra.mxu0 %v336
  %2197 = vmatprep.subr.bf16.mxu0 0
  %2198 = vmatpush1.bf16.msra.mxu0 %v337
  %2199 = vmatprep.subr.bf16.mxu0 0
  %2200 = vmatpush1.bf16.msra.mxu0 0
  %2201 = vmatprep.subr.bf16.mxu0 0
  %2202 = vmatpush1.bf16.msra.mxu0 0
  %2203 = vmatprep.subr.bf16.mxu0 0
  %2204 = vmatpush1.bf16.msra.mxu0 0
  %2205 = vmatprep.subr.bf16.mxu0 0
  %2206 = vmatpush1.bf16.msra.mxu0 0
  %2207 = vmatprep.subr.bf16.mxu0 0
  %2208 = vmatpush1.bf16.msra.mxu0 0
  %2209 = vmatprep.subr.bf16.mxu0 0
  %2210 = vmatpush1.bf16.msra.mxu0 0
  %2211 = vmatprep.subr.bf16.mxu0 0
  %2212 = vmatpush1.bf16.msra.mxu0 0
  %2213 = vmatprep.subr.bf16.mxu0 0
  %2214 = vmatpush1.bf16.msra.mxu0 0
  %2215 = vmatprep.subr.bf16.mxu0 0
  %2216 = vmatpush1.bf16.msra.mxu0 0
  %2217 = vmatprep.subr.bf16.mxu0 0
  %2218 = vmatpush1.bf16.msra.mxu0 0
  %2219 = vmatprep.subr.bf16.mxu0 0
  %2220 = vmatpush1.bf16.msra.mxu0 0
  %2221 = vmatprep.subr.bf16.mxu0 0
  %2222 = vmatpush1.bf16.msra.mxu0 0
  %2223 = vmatprep.subr.bf16.mxu0 0
  %2224 = vmatpush1.bf16.msra.mxu0 0
  %2225 = vmatprep.subr.bf16.mxu0 0
  %2226 = vmatpush1.bf16.msra.mxu0 0
  %2227 = vmatprep.mubr.bf16.mxu0 0
  %2228 = vmatmul.mubr.bf16.gmra.mrb[0].mxu0 %v2193
  %v2229 = vpop.f32.mrb[0].mxu0
  %v2230 = vadd.f32 0.0, %v2229
  %v2231 = vpop.f32.mrb[0].mxu0
  %v2232 = vpop.f32.mrb[0].mxu0
  %v2233 = vpop.f32.mrb[0].mxu0
  %2234 = vdwg.mxu0
  %v2235 = vadd.f32 %v303, %v2230
  %v2236 = vxor.u32 %v2235, 2147483648
  %v2237 = vmul.f32 %v2236, 1.442695
  %v2238 = vpow.pop %v2237
  %v2239 = vadd.f32 %v2238, 1.0
  %v2240 = vrcp.pop %v2239
  %v2241 = vmul.f32 1.0, %v2240
  %2242 = vmatprep.subr.bf16.mxu0 0
  %2243 = vmatpush1.bf16.msra.mxu0 %v399
  %2244 = vmatprep.subr.bf16.mxu0 0
  %2245 = vmatpush1.bf16.msra.mxu0 %v400
  %2246 = vmatprep.subr.bf16.mxu0 0
  %2247 = vmatpush1.bf16.msra.mxu0 0
  %2248 = vmatprep.subr.bf16.mxu0 0
  %2249 = vmatpush1.bf16.msra.mxu0 0
  %2250 = vmatprep.subr.bf16.mxu0 0
  %2251 = vmatpush1.bf16.msra.mxu0 0
  %2252 = vmatprep.subr.bf16.mxu0 0
  %2253 = vmatpush1.bf16.msra.mxu0 0
  %2254 = vmatprep.subr.bf16.mxu0 0
  %2255 = vmatpush1.bf16.msra.mxu0 0
  %2256 = vmatprep.subr.bf16.mxu0 0
  %2257 = vmatpush1.bf16.msra.mxu0 0
  %2258 = vmatprep.subr.bf16.mxu0 0
  %2259 = vmatpush1.bf16.msra.mxu0 0
  %2260 = vmatprep.subr.bf16.mxu0 0
  %2261 = vmatpush1.bf16.msra.mxu0 0
  %2262 = vmatprep.subr.bf16.mxu0 0
  %2263 = vmatpush1.bf16.msra.mxu0 0
  %2264 = vmatprep.subr.bf16.mxu0 0
  %2265 = vmatpush1.bf16.msra.mxu0 0
  %2266 = vmatprep.subr.bf16.mxu0 0
  %2267 = vmatpush1.bf16.msra.mxu0 0
  %2268 = vmatprep.subr.bf16.mxu0 0
  %2269 = vmatpush1.bf16.msra.mxu0 0
  %2270 = vmatprep.subr.bf16.mxu0 0
  %2271 = vmatpush1.bf16.msra.mxu0 0
  %2272 = vmatprep.subr.bf16.mxu0 0
  %2273 = vmatpush1.bf16.msra.mxu0 0
  %2274 = vmatprep.mubr.bf16.mxu0 0
  %2275 = vmatmul.mubr.bf16.gmra.mrb[0].mxu0 %v2193
  %v2276 = vpop.f32.mrb[0].mxu0
  %v2277 = vadd.f32 0.0, %v2276
  %v2278 = vpop.f32.mrb[0].mxu0
  %v2279 = vpop.f32.mrb[0].mxu0
  %v2280 = vpop.f32.mrb[0].mxu0
  %2281 = vdwg.mxu0
  %2283 = vrot.lane.b32.xlu0 %v2277, 32
  %v2284 = vpop.permute.xlu0 %2283
  %v2286 = vadd.f32 %v303, %v2284
  %v2287 = vxor.u32 %v2286, 2147483648
  %v2288 = vmul.f32 %v2287, 1.442695
  %v2289 = vpow.pop %v2288
  %v2290 = vadd.f32 %v2289, 1.0
  %v2291 = vrcp.pop %v2290
  %v2292 = vmul.f32 1.0, %v2291
  %2293 = vmatprep.subr.bf16.mxu0 0
  %2294 = vmatpush1.bf16.msra.mxu0 %v462
  %2295 = vmatprep.subr.bf16.mxu0 0
  %2296 = vmatpush1.bf16.msra.mxu0 %v463
  %2297 = vmatprep.subr.bf16.mxu0 0
  %2298 = vmatpush1.bf16.msra.mxu0 0
  %2299 = vmatprep.subr.bf16.mxu0 0
  %2300 = vmatpush1.bf16.msra.mxu0 0
  %2301 = vmatprep.subr.bf16.mxu0 0
  %2302 = vmatpush1.bf16.msra.mxu0 0
  %2303 = vmatprep.subr.bf16.mxu0 0
  %2304 = vmatpush1.bf16.msra.mxu0 0
  %2305 = vmatprep.subr.bf16.mxu0 0
  %2306 = vmatpush1.bf16.msra.mxu0 0
  %2307 = vmatprep.subr.bf16.mxu0 0
  %2308 = vmatpush1.bf16.msra.mxu0 0
  %2309 = vmatprep.subr.bf16.mxu0 0
  %2310 = vmatpush1.bf16.msra.mxu0 0
  %2311 = vmatprep.subr.bf16.mxu0 0
  %2312 = vmatpush1.bf16.msra.mxu0 0
  %2313 = vmatprep.subr.bf16.mxu0 0
  %2314 = vmatpush1.bf16.msra.mxu0 0
  %2315 = vmatprep.subr.bf16.mxu0 0
  %2316 = vmatpush1.bf16.msra.mxu0 0
  %2317 = vmatprep.subr.bf16.mxu0 0
  %2318 = vmatpush1.bf16.msra.mxu0 0
  %2319 = vmatprep.subr.bf16.mxu0 0
  %2320 = vmatpush1.bf16.msra.mxu0 0
  %2321 = vmatprep.subr.bf16.mxu0 0
  %2322 = vmatpush1.bf16.msra.mxu0 0
  %2323 = vmatprep.subr.bf16.mxu0 0
  %2324 = vmatpush1.bf16.msra.mxu0 0
  %2325 = vmatprep.mubr.bf16.mxu0 0
  %2326 = vmatmul.mubr.bf16.gmra.mrb[0].mxu0 %v2193
  %v2327 = vpop.f32.mrb[0].mxu0
  %v2328 = vadd.f32 0.0, %v2327
  %v2329 = vpop.f32.mrb[0].mxu0
  %v2330 = vpop.f32.mrb[0].mxu0
  %v2331 = vpop.f32.mrb[0].mxu0
  %2332 = vdwg.mxu0
  %2334 = vrot.lane.b32.xlu0 %v2328, 64
  %v2335 = vpop.permute.xlu0 %2334
  %v2337 = vadd.f32 %v303, %v2335
  %v2338 = vtanh.pop %v2337
  %2339 = vmatprep.subr.bf16.mxu0 0
  %2340 = vmatpush1.bf16.msra.mxu0 %v520
  %2341 = vmatprep.subr.bf16.mxu0 0
  %2342 = vmatpush1.bf16.msra.mxu0 %v521
  %2343 = vmatprep.subr.bf16.mxu0 0
  %2344 = vmatpush1.bf16.msra.mxu0 0
  %2345 = vmatprep.subr.bf16.mxu0 0
  %2346 = vmatpush1.bf16.msra.mxu0 0
  %2347 = vmatprep.subr.bf16.mxu0 0
  %2348 = vmatpush1.bf16.msra.mxu0 0
  %2349 = vmatprep.subr.bf16.mxu0 0
  %2350 = vmatpush1.bf16.msra.mxu0 0
  %2351 = vmatprep.subr.bf16.mxu0 0
  %2352 = vmatpush1.bf16.msra.mxu0 0
  %2353 = vmatprep.subr.bf16.mxu0 0
  %2354 = vmatpush1.bf16.msra.mxu0 0
  %2355 = vmatprep.subr.bf16.mxu0 0
  %2356 = vmatpush1.bf16.msra.mxu0 0
  %2357 = vmatprep.subr.bf16.mxu0 0
  %2358 = vmatpush1.bf16.msra.mxu0 0
  %2359 = vmatprep.subr.bf16.mxu0 0
  %2360 = vmatpush1.bf16.msra.mxu0 0
  %2361 = vmatprep.subr.bf16.mxu0 0
  %2362 = vmatpush1.bf16.msra.mxu0 0
  %2363 = vmatprep.subr.bf16.mxu0 0
  %2364 = vmatpush1.bf16.msra.mxu0 0
  %2365 = vmatprep.subr.bf16.mxu0 0
  %2366 = vmatpush1.bf16.msra.mxu0 0
  %2367 = vmatprep.subr.bf16.mxu0 0
  %2368 = vmatpush1.bf16.msra.mxu0 0
  %2369 = vmatprep.subr.bf16.mxu0 0
  %2370 = vmatpush1.bf16.msra.mxu0 0
  %2371 = vmatprep.mubr.bf16.mxu0 0
  %2372 = vmatmul.mubr.bf16.gmra.mrb[0].mxu0 %v2193
  %v2373 = vpop.f32.mrb[0].mxu0
  %v2374 = vadd.f32 0.0, %v2373
  %v2375 = vpop.f32.mrb[0].mxu0
  %v2376 = vpop.f32.mrb[0].mxu0
  %v2377 = vpop.f32.mrb[0].mxu0
  %2378 = vdwg.mxu0
  %2380 = vrot.lane.b32.xlu0 %v2374, 96
  %v2381 = vpop.permute.xlu0 %2380
  %v2383 = vadd.f32 %v303, %v2381
  %v2384 = vxor.u32 %v2383, 2147483648
  %v2385 = vmul.f32 %v2384, 1.442695
  %v2386 = vpow.pop %v2385
  %v2387 = vadd.f32 %v2386, 1.0
  %v2388 = vrcp.pop %v2387
  %v2389 = vmul.f32 1.0, %v2388
  %v2391 = vrot.slane %v2180, 6
  %v2393 = vmul.f32 %v2292, %v2391
  %2395 = vrot.lane.b32.xlu0 %v2338, 64
  %v2396 = vpop.permute.xlu0 %2395
  %v2398 = vmul.f32 %v2241, %v2396
  %2400 = vrot.lane.b32.xlu0 %v2398, 32
  %v2401 = vpop.permute.xlu0 %2400
  %v2403 = vadd.f32 %v2393, %v2401
  %v2404 = vtanh.pop %v2403
  %2406 = vrot.lane.b32.xlu0 %v2404, 64
  %v2407 = vpop.permute.xlu0 %2406
  %v2409 = vmul.f32 %v2389, %v2407
  %2411 = vrot.lane.b32.xlu0 %v2409, 32
  %v2412 = vpop.permute.xlu0 %2411
  %vm2414 = vcmask 254976
  %2415 = vst.msk [vmem:[#allocation2] sm:$0x3] %vm2414, %v2412
  %v2416 = vpack.c.bf16 %v2409, %v2409
  %2418 = vrot.lane.b32.xlu0 %v2416, 32
  %v2419 = vpop.permute.xlu0 %2418
  %v2421 = vsel %vm340, %v2419, 0
  %2423 = vmatprep.subr.bf16.mxu0 0
  %2424 = vmatpush1.bf16.msra.mxu0 %v336
  %2425 = vmatprep.subr.bf16.mxu0 0
  %2426 = vmatpush1.bf16.msra.mxu0 %v337
  %2427 = vmatprep.subr.bf16.mxu0 0
  %2428 = vmatpush1.bf16.msra.mxu0 0
  %2429 = vmatprep.subr.bf16.mxu0 0
  %2430 = vmatpush1.bf16.msra.mxu0 0
  %2431 = vmatprep.subr.bf16.mxu0 0
  %2432 = vmatpush1.bf16.msra.mxu0 0
  %2433 = vmatprep.subr.bf16.mxu0 0
  %2434 = vmatpush1.bf16.msra.mxu0 0
  %2435 = vmatprep.subr.bf16.mxu0 0
  %2436 = vmatpush1.bf16.msra.mxu0 0
  %2437 = vmatprep.subr.bf16.mxu0 0
  %2438 = vmatpush1.bf16.msra.mxu0 0
  %2439 = vmatprep.subr.bf16.mxu0 0
  %2440 = vmatpush1.bf16.msra.mxu0 0
  %2441 = vmatprep.subr.bf16.mxu0 0
  %2442 = vmatpush1.bf16.msra.mxu0 0
  %2443 = vmatprep.subr.bf16.mxu0 0
  %2444 = vmatpush1.bf16.msra.mxu0 0
  %2445 = vmatprep.subr.bf16.mxu0 0
  %2446 = vmatpush1.bf16.msra.mxu0 0
  %2447 = vmatprep.subr.bf16.mxu0 0
  %2448 = vmatpush1.bf16.msra.mxu0 0
  %2449 = vmatprep.subr.bf16.mxu0 0
  %2450 = vmatpush1.bf16.msra.mxu0 0
  %2451 = vmatprep.subr.bf16.mxu0 0
  %2452 = vmatpush1.bf16.msra.mxu0 0
  %2453 = vmatprep.subr.bf16.mxu0 0
  %2454 = vmatpush1.bf16.msra.mxu0 0
  %2455 = vmatprep.mubr.bf16.mxu0 0
  %2456 = vmatmul.mubr.bf16.gmra.mrb[0].mxu0 %v2421
  %v2457 = vpop.f32.mrb[0].mxu0
  %v2458 = vadd.f32 0.0, %v2457
  %v2459 = vpop.f32.mrb[0].mxu0
  %v2460 = vpop.f32.mrb[0].mxu0
  %v2461 = vpop.f32.mrb[0].mxu0
  %2462 = vdwg.mxu0
  %v2464 = vrot.slane %v2458, 6
  %v2466 = vadd.f32 %v303, %v2464
  %v2467 = vxor.u32 %v2466, 2147483648
  %v2468 = vmul.f32 %v2467, 1.442695
  %v2469 = vpow.pop %v2468
  %v2470 = vadd.f32 %v2469, 1.0
  %v2471 = vrcp.pop %v2470
  %v2472 = vmul.f32 1.0, %v2471
  %2473 = vmatprep.subr.bf16.mxu0 0
  %2474 = vmatpush1.bf16.msra.mxu0 %v399
  %2475 = vmatprep.subr.bf16.mxu0 0
  %2476 = vmatpush1.bf16.msra.mxu0 %v400
  %2477 = vmatprep.subr.bf16.mxu0 0
  %2478 = vmatpush1.bf16.msra.mxu0 0
  %2479 = vmatprep.subr.bf16.mxu0 0
  %2480 = vmatpush1.bf16.msra.mxu0 0
  %2481 = vmatprep.subr.bf16.mxu0 0
  %2482 = vmatpush1.bf16.msra.mxu0 0
  %2483 = vmatprep.subr.bf16.mxu0 0
  %2484 = vmatpush1.bf16.msra.mxu0 0
  %2485 = vmatprep.subr.bf16.mxu0 0
  %2486 = vmatpush1.bf16.msra.mxu0 0
  %2487 = vmatprep.subr.bf16.mxu0 0
  %2488 = vmatpush1.bf16.msra.mxu0 0
  %2489 = vmatprep.subr.bf16.mxu0 0
  %2490 = vmatpush1.bf16.msra.mxu0 0
  %2491 = vmatprep.subr.bf16.mxu0 0
  %2492 = vmatpush1.bf16.msra.mxu0 0
  %2493 = vmatprep.subr.bf16.mxu0 0
  %2494 = vmatpush1.bf16.msra.mxu0 0
  %2495 = vmatprep.subr.bf16.mxu0 0
  %2496 = vmatpush1.bf16.msra.mxu0 0
  %2497 = vmatprep.subr.bf16.mxu0 0
  %2498 = vmatpush1.bf16.msra.mxu0 0
  %2499 = vmatprep.subr.bf16.mxu0 0
  %2500 = vmatpush1.bf16.msra.mxu0 0
  %2501 = vmatprep.subr.bf16.mxu0 0
  %2502 = vmatpush1.bf16.msra.mxu0 0
  %2503 = vmatprep.subr.bf16.mxu0 0
  %2504 = vmatpush1.bf16.msra.mxu0 0
  %2505 = vmatprep.mubr.bf16.mxu0 0
  %2506 = vmatmul.mubr.bf16.gmra.mrb[0].mxu0 %v2421
  %v2507 = vpop.f32.mrb[0].mxu0
  %v2508 = vadd.f32 0.0, %v2507
  %v2509 = vpop.f32.mrb[0].mxu0
  %v2510 = vpop.f32.mrb[0].mxu0
  %v2511 = vpop.f32.mrb[0].mxu0
  %2512 = vdwg.mxu0
  %v2514 = vrot.slane %v2508, 6
  %2515 = vrot.lane.b32.xlu0 %v2514, 32
  %v2516 = vpop.permute.xlu0 %2515
  %v2518 = vadd.f32 %v303, %v2516
  %v2519 = vxor.u32 %v2518, 2147483648
  %v2520 = vmul.f32 %v2519, 1.442695
  %v2521 = vpow.pop %v2520
  %v2522 = vadd.f32 %v2521, 1.0
  %v2523 = vrcp.pop %v2522
  %v2524 = vmul.f32 1.0, %v2523
  %2525 = vmatprep.subr.bf16.mxu0 0
  %2526 = vmatpush1.bf16.msra.mxu0 %v462
  %2527 = vmatprep.subr.bf16.mxu0 0
  %2528 = vmatpush1.bf16.msra.mxu0 %v463
  %2529 = vmatprep.subr.bf16.mxu0 0
  %2530 = vmatpush1.bf16.msra.mxu0 0
  %2531 = vmatprep.subr.bf16.mxu0 0
  %2532 = vmatpush1.bf16.msra.mxu0 0
  %2533 = vmatprep.subr.bf16.mxu0 0
  %2534 = vmatpush1.bf16.msra.mxu0 0
  %2535 = vmatprep.subr.bf16.mxu0 0
  %2536 = vmatpush1.bf16.msra.mxu0 0
  %2537 = vmatprep.subr.bf16.mxu0 0
  %2538 = vmatpush1.bf16.msra.mxu0 0
  %2539 = vmatprep.subr.bf16.mxu0 0
  %2540 = vmatpush1.bf16.msra.mxu0 0
  %2541 = vmatprep.subr.bf16.mxu0 0
  %2542 = vmatpush1.bf16.msra.mxu0 0
  %2543 = vmatprep.subr.bf16.mxu0 0
  %2544 = vmatpush1.bf16.msra.mxu0 0
  %2545 = vmatprep.subr.bf16.mxu0 0
  %2546 = vmatpush1.bf16.msra.mxu0 0
  %2547 = vmatprep.subr.bf16.mxu0 0
  %2548 = vmatpush1.bf16.msra.mxu0 0
  %2549 = vmatprep.subr.bf16.mxu0 0
  %2550 = vmatpush1.bf16.msra.mxu0 0
  %2551 = vmatprep.subr.bf16.mxu0 0
  %2552 = vmatpush1.bf16.msra.mxu0 0
  %2553 = vmatprep.subr.bf16.mxu0 0
  %2554 = vmatpush1.bf16.msra.mxu0 0
  %2555 = vmatprep.subr.bf16.mxu0 0
  %2556 = vmatpush1.bf16.msra.mxu0 0
  %2557 = vmatprep.mubr.bf16.mxu0 0
  %2558 = vmatmul.mubr.bf16.gmra.mrb[0].mxu0 %v2421
  %v2559 = vpop.f32.mrb[0].mxu0
  %v2560 = vadd.f32 0.0, %v2559
  %v2561 = vpop.f32.mrb[0].mxu0
  %v2562 = vpop.f32.mrb[0].mxu0
  %v2563 = vpop.f32.mrb[0].mxu0
  %2564 = vdwg.mxu0
  %v2566 = vrot.slane %v2560, 6
  %2567 = vrot.lane.b32.xlu0 %v2566, 64
  %v2568 = vpop.permute.xlu0 %2567
  %v2570 = vadd.f32 %v303, %v2568
  %v2571 = vtanh.pop %v2570
  %2572 = vmatprep.subr.bf16.mxu0 0
  %2573 = vmatpush1.bf16.msra.mxu0 %v520
  %2574 = vmatprep.subr.bf16.mxu0 0
  %2575 = vmatpush1.bf16.msra.mxu0 %v521
  %2576 = vmatprep.subr.bf16.mxu0 0
  %2577 = vmatpush1.bf16.msra.mxu0 0
  %2578 = vmatprep.subr.bf16.mxu0 0
  %2579 = vmatpush1.bf16.msra.mxu0 0
  %2580 = vmatprep.subr.bf16.mxu0 0
  %2581 = vmatpush1.bf16.msra.mxu0 0
  %2582 = vmatprep.subr.bf16.mxu0 0
  %2583 = vmatpush1.bf16.msra.mxu0 0
  %2584 = vmatprep.subr.bf16.mxu0 0
  %2585 = vmatpush1.bf16.msra.mxu0 0
  %2586 = vmatprep.subr.bf16.mxu0 0
  %2587 = vmatpush1.bf16.msra.mxu0 0
  %2588 = vmatprep.subr.bf16.mxu0 0
  %2589 = vmatpush1.bf16.msra.mxu0 0
  %2590 = vmatprep.subr.bf16.mxu0 0
  %2591 = vmatpush1.bf16.msra.mxu0 0
  %2592 = vmatprep.subr.bf16.mxu0 0
  %2593 = vmatpush1.bf16.msra.mxu0 0
  %2594 = vmatprep.subr.bf16.mxu0 0
  %2595 = vmatpush1.bf16.msra.mxu0 0
  %2596 = vmatprep.subr.bf16.mxu0 0
  %2597 = vmatpush1.bf16.msra.mxu0 0
  %2598 = vmatprep.subr.bf16.mxu0 0
  %2599 = vmatpush1.bf16.msra.mxu0 0
  %2600 = vmatprep.subr.bf16.mxu0 0
  %2601 = vmatpush1.bf16.msra.mxu0 0
  %2602 = vmatprep.subr.bf16.mxu0 0
  %2603 = vmatpush1.bf16.msra.mxu0 0
  %2604 = vmatprep.mubr.bf16.mxu0 0
  %2605 = vmatmul.mubr.bf16.gmra.mrb[0].mxu0 %v2421
  %v2606 = vpop.f32.mrb[0].mxu0
  %v2607 = vadd.f32 0.0, %v2606
  %v2608 = vpop.f32.mrb[0].mxu0
  %v2609 = vpop.f32.mrb[0].mxu0
  %v2610 = vpop.f32.mrb[0].mxu0
  %2611 = vdwg.mxu0
  %v2613 = vrot.slane %v2607, 6
  %2614 = vrot.lane.b32.xlu0 %v2613, 96
  %v2615 = vpop.permute.xlu0 %2614
  %v2617 = vadd.f32 %v303, %v2615
  %v2618 = vxor.u32 %v2617, 2147483648
  %v2619 = vmul.f32 %v2618, 1.442695
  %v2620 = vpow.pop %v2619
  %v2621 = vadd.f32 %v2620, 1.0
  %v2622 = vrcp.pop %v2621
  %v2623 = vmul.f32 1.0, %v2622
  %v2625 = vrot.slane %v2403, 6
  %v2627 = vmul.f32 %v2524, %v2625
  %2629 = vrot.lane.b32.xlu0 %v2571, 64
  %v2630 = vpop.permute.xlu0 %2629
  %v2632 = vmul.f32 %v2472, %v2630
  %2634 = vrot.lane.b32.xlu0 %v2632, 32
  %v2635 = vpop.permute.xlu0 %2634
  %v2637 = vadd.f32 %v2627, %v2635
  %v2638 = vtanh.pop %v2637
  %2640 = vrot.lane.b32.xlu0 %v2638, 64
  %v2641 = vpop.permute.xlu0 %2640
  %v2643 = vmul.f32 %v2623, %v2641
  %2645 = vrot.lane.b32.xlu0 %v2643, 32
  %v2646 = vpop.permute.xlu0 %2645
  %vm2648 = vcmask 257026
  %2649 = vst.msk [vmem:[#allocation2] sm:$0xc] %vm2648, %v2646
  %v2650 = vpack.c.bf16 %v2643, %v2643
  %v2652 = vrot.slane %v2650, 1
  %2653 = vrot.lane.b32.xlu0 %v2652, 32
  %v2654 = vpop.permute.xlu0 %2653
  %v2656 = vsel %vm340, %v2654, 0
  %2658 = vmatprep.subr.bf16.mxu0 0
  %2659 = vmatpush1.bf16.msra.mxu0 %v336
  %2660 = vmatprep.subr.bf16.mxu0 0
  %2661 = vmatpush1.bf16.msra.mxu0 %v337
  %2662 = vmatprep.subr.bf16.mxu0 0
  %2663 = vmatpush1.bf16.msra.mxu0 0
  %2664 = vmatprep.subr.bf16.mxu0 0
  %2665 = vmatpush1.bf16.msra.mxu0 0
  %2666 = vmatprep.subr.bf16.mxu0 0
  %2667 = vmatpush1.bf16.msra.mxu0 0
  %2668 = vmatprep.subr.bf16.mxu0 0
  %2669 = vmatpush1.bf16.msra.mxu0 0
  %2670 = vmatprep.subr.bf16.mxu0 0
  %2671 = vmatpush1.bf16.msra.mxu0 0
  %2672 = vmatprep.subr.bf16.mxu0 0
  %2673 = vmatpush1.bf16.msra.mxu0 0
  %2674 = vmatprep.subr.bf16.mxu0 0
  %2675 = vmatpush1.bf16.msra.mxu0 0
  %2676 = vmatprep.subr.bf16.mxu0 0
  %2677 = vmatpush1.bf16.msra.mxu0 0
  %2678 = vmatprep.subr.bf16.mxu0 0
  %2679 = vmatpush1.bf16.msra.mxu0 0
  %2680 = vmatprep.subr.bf16.mxu0 0
  %2681 = vmatpush1.bf16.msra.mxu0 0
  %2682 = vmatprep.subr.bf16.mxu0 0
  %2683 = vmatpush1.bf16.msra.mxu0 0
  %2684 = vmatprep.subr.bf16.mxu0 0
  %2685 = vmatpush1.bf16.msra.mxu0 0
  %2686 = vmatprep.subr.bf16.mxu0 0
  %2687 = vmatpush1.bf16.msra.mxu0 0
  %2688 = vmatprep.subr.bf16.mxu0 0
  %2689 = vmatpush1.bf16.msra.mxu0 0
  %2690 = vmatprep.mubr.bf16.mxu0 0
  %2691 = vmatmul.mubr.bf16.gmra.mrb[0].mxu0 %v2656
  %v2692 = vpop.f32.mrb[0].mxu0
  %v2693 = vadd.f32 0.0, %v2692
  %v2694 = vpop.f32.mrb[0].mxu0
  %v2695 = vpop.f32.mrb[0].mxu0
  %v2696 = vpop.f32.mrb[0].mxu0
  %2697 = vdwg.mxu0
  %v2699 = vrot.slane %v2693, 4
  %v2701 = vadd.f32 %v303, %v2699
  %v2702 = vxor.u32 %v2701, 2147483648
  %v2703 = vmul.f32 %v2702, 1.442695
  %v2704 = vpow.pop %v2703
  %v2705 = vadd.f32 %v2704, 1.0
  %v2706 = vrcp.pop %v2705
  %v2707 = vmul.f32 1.0, %v2706
  %2708 = vmatprep.subr.bf16.mxu0 0
  %2709 = vmatpush1.bf16.msra.mxu0 %v399
  %2710 = vmatprep.subr.bf16.mxu0 0
  %2711 = vmatpush1.bf16.msra.mxu0 %v400
  %2712 = vmatprep.subr.bf16.mxu0 0
  %2713 = vmatpush1.bf16.msra.mxu0 0
  %2714 = vmatprep.subr.bf16.mxu0 0
  %2715 = vmatpush1.bf16.msra.mxu0 0
  %2716 = vmatprep.subr.bf16.mxu0 0
  %2717 = vmatpush1.bf16.msra.mxu0 0
  %2718 = vmatprep.subr.bf16.mxu0 0
  %2719 = vmatpush1.bf16.msra.mxu0 0
  %2720 = vmatprep.subr.bf16.mxu0 0
  %2721 = vmatpush1.bf16.msra.mxu0 0
  %2722 = vmatprep.subr.bf16.mxu0 0
  %2723 = vmatpush1.bf16.msra.mxu0 0
  %2724 = vmatprep.subr.bf16.mxu0 0
  %2725 = vmatpush1.bf16.msra.mxu0 0
  %2726 = vmatprep.subr.bf16.mxu0 0
  %2727 = vmatpush1.bf16.msra.mxu0 0
  %2728 = vmatprep.subr.bf16.mxu0 0
  %2729 = vmatpush1.bf16.msra.mxu0 0
  %2730 = vmatprep.subr.bf16.mxu0 0
  %2731 = vmatpush1.bf16.msra.mxu0 0
  %2732 = vmatprep.subr.bf16.mxu0 0
  %2733 = vmatpush1.bf16.msra.mxu0 0
  %2734 = vmatprep.subr.bf16.mxu0 0
  %2735 = vmatpush1.bf16.msra.mxu0 0
  %2736 = vmatprep.subr.bf16.mxu0 0
  %2737 = vmatpush1.bf16.msra.mxu0 0
  %2738 = vmatprep.subr.bf16.mxu0 0
  %2739 = vmatpush1.bf16.msra.mxu0 0
  %2740 = vmatprep.mubr.bf16.mxu0 0
  %2741 = vmatmul.mubr.bf16.gmra.mrb[0].mxu0 %v2656
  %v2742 = vpop.f32.mrb[0].mxu0
  %v2743 = vadd.f32 0.0, %v2742
  %v2744 = vpop.f32.mrb[0].mxu0
  %v2745 = vpop.f32.mrb[0].mxu0
  %v2746 = vpop.f32.mrb[0].mxu0
  %2747 = vdwg.mxu0
  %v2749 = vrot.slane %v2743, 4
  %2750 = vrot.lane.b32.xlu0 %v2749, 32
  %v2751 = vpop.permute.xlu0 %2750
  %v2753 = vadd.f32 %v303, %v2751
  %v2754 = vxor.u32 %v2753, 2147483648
  %v2755 = vmul.f32 %v2754, 1.442695
  %v2756 = vpow.pop %v2755
  %v2757 = vadd.f32 %v2756, 1.0
  %v2758 = vrcp.pop %v2757
  %v2759 = vmul.f32 1.0, %v2758
  %2760 = vmatprep.subr.bf16.mxu0 0
  %2761 = vmatpush1.bf16.msra.mxu0 %v462
  %2762 = vmatprep.subr.bf16.mxu0 0
  %2763 = vmatpush1.bf16.msra.mxu0 %v463
  %2764 = vmatprep.subr.bf16.mxu0 0
  %2765 = vmatpush1.bf16.msra.mxu0 0
  %2766 = vmatprep.subr.bf16.mxu0 0
  %2767 = vmatpush1.bf16.msra.mxu0 0
  %2768 = vmatprep.subr.bf16.mxu0 0
  %2769 = vmatpush1.bf16.msra.mxu0 0
  %2770 = vmatprep.subr.bf16.mxu0 0
  %2771 = vmatpush1.bf16.msra.mxu0 0
  %2772 = vmatprep.subr.bf16.mxu0 0
  %2773 = vmatpush1.bf16.msra.mxu0 0
  %2774 = vmatprep.subr.bf16.mxu0 0
  %2775 = vmatpush1.bf16.msra.mxu0 0
  %2776 = vmatprep.subr.bf16.mxu0 0
  %2777 = vmatpush1.bf16.msra.mxu0 0
  %2778 = vmatprep.subr.bf16.mxu0 0
  %2779 = vmatpush1.bf16.msra.mxu0 0
  %2780 = vmatprep.subr.bf16.mxu0 0
  %2781 = vmatpush1.bf16.msra.mxu0 0
  %2782 = vmatprep.subr.bf16.mxu0 0
  %2783 = vmatpush1.bf16.msra.mxu0 0
  %2784 = vmatprep.subr.bf16.mxu0 0
  %2785 = vmatpush1.bf16.msra.mxu0 0
  %2786 = vmatprep.subr.bf16.mxu0 0
  %2787 = vmatpush1.bf16.msra.mxu0 0
  %2788 = vmatprep.subr.bf16.mxu0 0
  %2789 = vmatpush1.bf16.msra.mxu0 0
  %2790 = vmatprep.subr.bf16.mxu0 0
  %2791 = vmatpush1.bf16.msra.mxu0 0
  %2792 = vmatprep.mubr.bf16.mxu0 0
  %2793 = vmatmul.mubr.bf16.gmra.mrb[0].mxu0 %v2656
  %v2794 = vpop.f32.mrb[0].mxu0
  %v2795 = vadd.f32 0.0, %v2794
  %v2796 = vpop.f32.mrb[0].mxu0
  %v2797 = vpop.f32.mrb[0].mxu0
  %v2798 = vpop.f32.mrb[0].mxu0
  %2799 = vdwg.mxu0
  %v2801 = vrot.slane %v2795, 4
  %2802 = vrot.lane.b32.xlu0 %v2801, 64
  %v2803 = vpop.permute.xlu0 %2802
  %v2805 = vadd.f32 %v303, %v2803
  %v2806 = vtanh.pop %v2805
  %2807 = vmatprep.subr.bf16.mxu0 0
  %2808 = vmatpush1.bf16.msra.mxu0 %v520
  %2809 = vmatprep.subr.bf16.mxu0 0
  %2810 = vmatpush1.bf16.msra.mxu0 %v521
  %2811 = vmatprep.subr.bf16.mxu0 0
  %2812 = vmatpush1.bf16.msra.mxu0 0
  %2813 = vmatprep.subr.bf16.mxu0 0
  %2814 = vmatpush1.bf16.msra.mxu0 0
  %2815 = vmatprep.subr.bf16.mxu0 0
  %2816 = vmatpush1.bf16.msra.mxu0 0
  %2817 = vmatprep.subr.bf16.mxu0 0
  %2818 = vmatpush1.bf16.msra.mxu0 0
  %2819 = vmatprep.subr.bf16.mxu0 0
  %2820 = vmatpush1.bf16.msra.mxu0 0
  %2821 = vmatprep.subr.bf16.mxu0 0
  %2822 = vmatpush1.bf16.msra.mxu0 0
  %2823 = vmatprep.subr.bf16.mxu0 0
  %2824 = vmatpush1.bf16.msra.mxu0 0
  %2825 = vmatprep.subr.bf16.mxu0 0
  %2826 = vmatpush1.bf16.msra.mxu0 0
  %2827 = vmatprep.subr.bf16.mxu0 0
  %2828 = vmatpush1.bf16.msra.mxu0 0
  %2829 = vmatprep.subr.bf16.mxu0 0
  %2830 = vmatpush1.bf16.msra.mxu0 0
  %2831 = vmatprep.subr.bf16.mxu0 0
  %2832 = vmatpush1.bf16.msra.mxu0 0
  %2833 = vmatprep.subr.bf16.mxu0 0
  %2834 = vmatpush1.bf16.msra.mxu0 0
  %2835 = vmatprep.subr.bf16.mxu0 0
  %2836 = vmatpush1.bf16.msra.mxu0 0
  %2837 = vmatprep.subr.bf16.mxu0 0
  %2838 = vmatpush1.bf16.msra.mxu0 0
  %2839 = vmatprep.mubr.bf16.mxu0 0
  %2840 = vmatmul.mubr.bf16.gmra.mrb[0].mxu0 %v2656
  %v2841 = vpop.f32.mrb[0].mxu0
  %v2842 = vadd.f32 0.0, %v2841
  %v2843 = vpop.f32.mrb[0].mxu0
  %v2844 = vpop.f32.mrb[0].mxu0
  %v2845 = vpop.f32.mrb[0].mxu0
  %2846 = vdwg.mxu0
  %v2848 = vrot.slane %v2842, 4
  %2849 = vrot.lane.b32.xlu0 %v2848, 96
  %v2850 = vpop.permute.xlu0 %2849
  %v2852 = vadd.f32 %v303, %v2850
  %v2853 = vxor.u32 %v2852, 2147483648
  %v2854 = vmul.f32 %v2853, 1.442695
  %v2855 = vpow.pop %v2854
  %v2856 = vadd.f32 %v2855, 1.0
  %v2857 = vrcp.pop %v2856
  %v2858 = vmul.f32 1.0, %v2857
  %v2860 = vrot.slane %v2637, 6
  %v2862 = vmul.f32 %v2759, %v2860
  %2864 = vrot.lane.b32.xlu0 %v2806, 64
  %v2865 = vpop.permute.xlu0 %2864
  %v2867 = vmul.f32 %v2707, %v2865
  %2869 = vrot.lane.b32.xlu0 %v2867, 32
  %v2870 = vpop.permute.xlu0 %2869
  %v2872 = vadd.f32 %v2862, %v2870
  %v2873 = vtanh.pop %v2872
  %2875 = vrot.lane.b32.xlu0 %v2873, 64
  %v2876 = vpop.permute.xlu0 %2875
  %v2878 = vmul.f32 %v2858, %v2876
  %2880 = vrot.lane.b32.xlu0 %v2878, 32
  %v2881 = vpop.permute.xlu0 %2880
  %vm2883 = vcmask 259076
  %2884 = vst.msk [vmem:[#allocation2] sm:$0x30] %vm2883, %v2881
  %v2885 = vpack.c.bf16 %v2878, %v2878
  %v2887 = vrot.slane %v2885, 2
  %2888 = vrot.lane.b32.xlu0 %v2887, 32
  %v2889 = vpop.permute.xlu0 %2888
  %v2891 = vsel %vm340, %v2889, 0
  %2893 = vmatprep.subr.bf16.mxu0 0
  %2894 = vmatpush1.bf16.msra.mxu0 %v336
  %2895 = vmatprep.subr.bf16.mxu0 0
  %2896 = vmatpush1.bf16.msra.mxu0 %v337
  %2897 = vmatprep.subr.bf16.mxu0 0
  %2898 = vmatpush1.bf16.msra.mxu0 0
  %2899 = vmatprep.subr.bf16.mxu0 0
  %2900 = vmatpush1.bf16.msra.mxu0 0
  %2901 = vmatprep.subr.bf16.mxu0 0
  %2902 = vmatpush1.bf16.msra.mxu0 0
  %2903 = vmatprep.subr.bf16.mxu0 0
  %2904 = vmatpush1.bf16.msra.mxu0 0
  %2905 = vmatprep.subr.bf16.mxu0 0
  %2906 = vmatpush1.bf16.msra.mxu0 0
  %2907 = vmatprep.subr.bf16.mxu0 0
  %2908 = vmatpush1.bf16.msra.mxu0 0
  %2909 = vmatprep.subr.bf16.mxu0 0
  %2910 = vmatpush1.bf16.msra.mxu0 0
  %2911 = vmatprep.subr.bf16.mxu0 0
  %2912 = vmatpush1.bf16.msra.mxu0 0
  %2913 = vmatprep.subr.bf16.mxu0 0
  %2914 = vmatpush1.bf16.msra.mxu0 0
  %2915 = vmatprep.subr.bf16.mxu0 0
  %2916 = vmatpush1.bf16.msra.mxu0 0
  %2917 = vmatprep.subr.bf16.mxu0 0
  %2918 = vmatpush1.bf16.msra.mxu0 0
  %2919 = vmatprep.subr.bf16.mxu0 0
  %2920 = vmatpush1.bf16.msra.mxu0 0
  %2921 = vmatprep.subr.bf16.mxu0 0
  %2922 = vmatpush1.bf16.msra.mxu0 0
  %2923 = vmatprep.subr.bf16.mxu0 0
  %2924 = vmatpush1.bf16.msra.mxu0 0
  %2925 = vmatprep.mubr.bf16.mxu0 0
  %2926 = vmatmul.mubr.bf16.gmra.mrb[0].mxu0 %v2891
  %v2927 = vpop.f32.mrb[0].mxu0
  %v2928 = vadd.f32 0.0, %v2927
  %v2929 = vpop.f32.mrb[0].mxu0
  %v2930 = vpop.f32.mrb[0].mxu0
  %v2931 = vpop.f32.mrb[0].mxu0
  %2932 = vdwg.mxu0
  %v2934 = vrot.slane %v2928, 2
  %v2936 = vadd.f32 %v303, %v2934
  %v2937 = vxor.u32 %v2936, 2147483648
  %v2938 = vmul.f32 %v2937, 1.442695
  %v2939 = vpow.pop %v2938
  %v2940 = vadd.f32 %v2939, 1.0
  %v2941 = vrcp.pop %v2940
  %v2942 = vmul.f32 1.0, %v2941
  %2943 = vmatprep.subr.bf16.mxu0 0
  %2944 = vmatpush1.bf16.msra.mxu0 %v399
  %2945 = vmatprep.subr.bf16.mxu0 0
  %2946 = vmatpush1.bf16.msra.mxu0 %v400
  %2947 = vmatprep.subr.bf16.mxu0 0
  %2948 = vmatpush1.bf16.msra.mxu0 0
  %2949 = vmatprep.subr.bf16.mxu0 0
  %2950 = vmatpush1.bf16.msra.mxu0 0
  %2951 = vmatprep.subr.bf16.mxu0 0
  %2952 = vmatpush1.bf16.msra.mxu0 0
  %2953 = vmatprep.subr.bf16.mxu0 0
  %2954 = vmatpush1.bf16.msra.mxu0 0
  %2955 = vmatprep.subr.bf16.mxu0 0
  %2956 = vmatpush1.bf16.msra.mxu0 0
  %2957 = vmatprep.subr.bf16.mxu0 0
  %2958 = vmatpush1.bf16.msra.mxu0 0
  %2959 = vmatprep.subr.bf16.mxu0 0
  %2960 = vmatpush1.bf16.msra.mxu0 0
  %2961 = vmatprep.subr.bf16.mxu0 0
  %2962 = vmatpush1.bf16.msra.mxu0 0
  %2963 = vmatprep.subr.bf16.mxu0 0
  %2964 = vmatpush1.bf16.msra.mxu0 0
  %2965 = vmatprep.subr.bf16.mxu0 0
  %2966 = vmatpush1.bf16.msra.mxu0 0
  %2967 = vmatprep.subr.bf16.mxu0 0
  %2968 = vmatpush1.bf16.msra.mxu0 0
  %2969 = vmatprep.subr.bf16.mxu0 0
  %2970 = vmatpush1.bf16.msra.mxu0 0
  %2971 = vmatprep.subr.bf16.mxu0 0
  %2972 = vmatpush1.bf16.msra.mxu0 0
  %2973 = vmatprep.subr.bf16.mxu0 0
  %2974 = vmatpush1.bf16.msra.mxu0 0
  %2975 = vmatprep.mubr.bf16.mxu0 0
  %2976 = vmatmul.mubr.bf16.gmra.mrb[0].mxu0 %v2891
  %v2977 = vpop.f32.mrb[0].mxu0
  %v2978 = vadd.f32 0.0, %v2977
  %v2979 = vpop.f32.mrb[0].mxu0
  %v2980 = vpop.f32.mrb[0].mxu0
  %v2981 = vpop.f32.mrb[0].mxu0
  %2982 = vdwg.mxu0
  %v2984 = vrot.slane %v2978, 2
  %2985 = vrot.lane.b32.xlu0 %v2984, 32
  %v2986 = vpop.permute.xlu0 %2985
  %v2988 = vadd.f32 %v303, %v2986
  %v2989 = vxor.u32 %v2988, 2147483648
  %v2990 = vmul.f32 %v2989, 1.442695
  %v2991 = vpow.pop %v2990
  %v2992 = vadd.f32 %v2991, 1.0
  %v2993 = vrcp.pop %v2992
  %v2994 = vmul.f32 1.0, %v2993
  %2995 = vmatprep.subr.bf16.mxu0 0
  %2996 = vmatpush1.bf16.msra.mxu0 %v462
  %2997 = vmatprep.subr.bf16.mxu0 0
  %2998 = vmatpush1.bf16.msra.mxu0 %v463
  %2999 = vmatprep.subr.bf16.mxu0 0
  %3000 = vmatpush1.bf16.msra.mxu0 0
  %3001 = vmatprep.subr.bf16.mxu0 0
  %3002 = vmatpush1.bf16.msra.mxu0 0
  %3003 = vmatprep.subr.bf16.mxu0 0
  %3004 = vmatpush1.bf16.msra.mxu0 0
  %3005 = vmatprep.subr.bf16.mxu0 0
  %3006 = vmatpush1.bf16.msra.mxu0 0
  %3007 = vmatprep.subr.bf16.mxu0 0
  %3008 = vmatpush1.bf16.msra.mxu0 0
  %3009 = vmatprep.subr.bf16.mxu0 0
  %3010 = vmatpush1.bf16.msra.mxu0 0
  %3011 = vmatprep.subr.bf16.mxu0 0
  %3012 = vmatpush1.bf16.msra.mxu0 0
  %3013 = vmatprep.subr.bf16.mxu0 0
  %3014 = vmatpush1.bf16.msra.mxu0 0
  %3015 = vmatprep.subr.bf16.mxu0 0
  %3016 = vmatpush1.bf16.msra.mxu0 0
  %3017 = vmatprep.subr.bf16.mxu0 0
  %3018 = vmatpush1.bf16.msra.mxu0 0
  %3019 = vmatprep.subr.bf16.mxu0 0
  %3020 = vmatpush1.bf16.msra.mxu0 0
  %3021 = vmatprep.subr.bf16.mxu0 0
  %3022 = vmatpush1.bf16.msra.mxu0 0
  %3023 = vmatprep.subr.bf16.mxu0 0
  %3024 = vmatpush1.bf16.msra.mxu0 0
  %3025 = vmatprep.subr.bf16.mxu0 0
  %3026 = vmatpush1.bf16.msra.mxu0 0
  %3027 = vmatprep.mubr.bf16.mxu0 0
  %3028 = vmatmul.mubr.bf16.gmra.mrb[0].mxu0 %v2891
  %v3029 = vpop.f32.mrb[0].mxu0
  %v3030 = vadd.f32 0.0, %v3029
  %v3031 = vpop.f32.mrb[0].mxu0
  %v3032 = vpop.f32.mrb[0].mxu0
  %v3033 = vpop.f32.mrb[0].mxu0
  %3034 = vdwg.mxu0
  %v3036 = vrot.slane %v3030, 2
  %3037 = vrot.lane.b32.xlu0 %v3036, 64
  %v3038 = vpop.permute.xlu0 %3037
  %v3040 = vadd.f32 %v303, %v3038
  %v3041 = vtanh.pop %v3040
  %3042 = vmatprep.subr.bf16.mxu0 0
  %3043 = vmatpush1.bf16.msra.mxu0 %v520
  %3044 = vmatprep.subr.bf16.mxu0 0
  %3045 = vmatpush1.bf16.msra.mxu0 %v521
  %3046 = vmatprep.subr.bf16.mxu0 0
  %3047 = vmatpush1.bf16.msra.mxu0 0
  %3048 = vmatprep.subr.bf16.mxu0 0
  %3049 = vmatpush1.bf16.msra.mxu0 0
  %3050 = vmatprep.subr.bf16.mxu0 0
  %3051 = vmatpush1.bf16.msra.mxu0 0
  %3052 = vmatprep.subr.bf16.mxu0 0
  %3053 = vmatpush1.bf16.msra.mxu0 0
  %3054 = vmatprep.subr.bf16.mxu0 0
  %3055 = vmatpush1.bf16.msra.mxu0 0
  %3056 = vmatprep.subr.bf16.mxu0 0
  %3057 = vmatpush1.bf16.msra.mxu0 0
  %3058 = vmatprep.subr.bf16.mxu0 0
  %3059 = vmatpush1.bf16.msra.mxu0 0
  %3060 = vmatprep.subr.bf16.mxu0 0
  %3061 = vmatpush1.bf16.msra.mxu0 0
  %3062 = vmatprep.subr.bf16.mxu0 0
  %3063 = vmatpush1.bf16.msra.mxu0 0
  %3064 = vmatprep.subr.bf16.mxu0 0
  %3065 = vmatpush1.bf16.msra.mxu0 0
  %3066 = vmatprep.subr.bf16.mxu0 0
  %3067 = vmatpush1.bf16.msra.mxu0 0
  %3068 = vmatprep.subr.bf16.mxu0 0
  %3069 = vmatpush1.bf16.msra.mxu0 0
  %3070 = vmatprep.subr.bf16.mxu0 0
  %3071 = vmatpush1.bf16.msra.mxu0 0
  %3072 = vmatprep.subr.bf16.mxu0 0
  %3073 = vmatpush1.bf16.msra.mxu0 0
  %3074 = vmatprep.mubr.bf16.mxu0 0
  %3075 = vmatmul.mubr.bf16.gmra.mrb[0].mxu0 %v2891
  %v3076 = vpop.f32.mrb[0].mxu0
  %v3077 = vadd.f32 0.0, %v3076
  %v3078 = vpop.f32.mrb[0].mxu0
  %v3079 = vpop.f32.mrb[0].mxu0
  %v3080 = vpop.f32.mrb[0].mxu0
  %3081 = vdwg.mxu0
  %v3083 = vrot.slane %v3077, 2
  %3084 = vrot.lane.b32.xlu0 %v3083, 96
  %v3085 = vpop.permute.xlu0 %3084
  %v3087 = vadd.f32 %v303, %v3085
  %v3088 = vxor.u32 %v3087, 2147483648
  %v3089 = vmul.f32 %v3088, 1.442695
  %v3090 = vpow.pop %v3089
  %v3091 = vadd.f32 %v3090, 1.0
  %v3092 = vrcp.pop %v3091
  %v3093 = vmul.f32 1.0, %v3092
  %v3095 = vrot.slane %v2872, 6
  %v3097 = vmul.f32 %v2994, %v3095
  %3099 = vrot.lane.b32.xlu0 %v3041, 64
  %v3100 = vpop.permute.xlu0 %3099
  %v3102 = vmul.f32 %v2942, %v3100
  %3104 = vrot.lane.b32.xlu0 %v3102, 32
  %v3105 = vpop.permute.xlu0 %3104
  %v3107 = vadd.f32 %v3097, %v3105
  %v3108 = vtanh.pop %v3107
  %3110 = vrot.lane.b32.xlu0 %v3108, 64
  %v3111 = vpop.permute.xlu0 %3110
  %v3113 = vmul.f32 %v3093, %v3111
  %3115 = vrot.lane.b32.xlu0 %v3113, 32
  %v3116 = vpop.permute.xlu0 %3115
  %vm3118 = vcmask 261126
  %3119 = vst.msk [vmem:[#allocation2] sm:$0xc0] %vm3118, %v3116
  %v3120 = vpack.c.bf16 %v3113, %v3113
  %v3122 = vrot.slane %v3120, 3
  %3123 = vrot.lane.b32.xlu0 %v3122, 32
  %v3124 = vpop.permute.xlu0 %3123
  %v3126 = vsel %vm340, %v3124, 0
  %3128 = vmatprep.subr.bf16.mxu0 0
  %3129 = vmatpush1.bf16.msra.mxu0 %v336
  %3130 = vmatprep.subr.bf16.mxu0 0
  %3131 = vmatpush1.bf16.msra.mxu0 %v337
  %3132 = vmatprep.subr.bf16.mxu0 0
  %3133 = vmatpush1.bf16.msra.mxu0 0
  %3134 = vmatprep.subr.bf16.mxu0 0
  %3135 = vmatpush1.bf16.msra.mxu0 0
  %3136 = vmatprep.subr.bf16.mxu0 0
  %3137 = vmatpush1.bf16.msra.mxu0 0
  %3138 = vmatprep.subr.bf16.mxu0 0
  %3139 = vmatpush1.bf16.msra.mxu0 0
  %3140 = vmatprep.subr.bf16.mxu0 0
  %3141 = vmatpush1.bf16.msra.mxu0 0
  %3142 = vmatprep.subr.bf16.mxu0 0
  %3143 = vmatpush1.bf16.msra.mxu0 0
  %3144 = vmatprep.subr.bf16.mxu0 0
  %3145 = vmatpush1.bf16.msra.mxu0 0
  %3146 = vmatprep.subr.bf16.mxu0 0
  %3147 = vmatpush1.bf16.msra.mxu0 0
  %3148 = vmatprep.subr.bf16.mxu0 0
  %3149 = vmatpush1.bf16.msra.mxu0 0
  %3150 = vmatprep.subr.bf16.mxu0 0
  %3151 = vmatpush1.bf16.msra.mxu0 0
  %3152 = vmatprep.subr.bf16.mxu0 0
  %3153 = vmatpush1.bf16.msra.mxu0 0
  %3154 = vmatprep.subr.bf16.mxu0 0
  %3155 = vmatpush1.bf16.msra.mxu0 0
  %3156 = vmatprep.subr.bf16.mxu0 0
  %3157 = vmatpush1.bf16.msra.mxu0 0
  %3158 = vmatprep.subr.bf16.mxu0 0
  %3159 = vmatpush1.bf16.msra.mxu0 0
  %3160 = vmatprep.mubr.bf16.mxu0 0
  %3161 = vmatmul.mubr.bf16.gmra.mrb[0].mxu0 %v3126
  %v3162 = vpop.f32.mrb[0].mxu0
  %v3163 = vadd.f32 0.0, %v3162
  %v3164 = vpop.f32.mrb[0].mxu0
  %v3165 = vpop.f32.mrb[0].mxu0
  %v3166 = vpop.f32.mrb[0].mxu0
  %3167 = vdwg.mxu0
  %v3168 = vadd.f32 %v306, %v3163
  %v3169 = vxor.u32 %v3168, 2147483648
  %v3170 = vmul.f32 %v3169, 1.442695
  %v3171 = vpow.pop %v3170
  %v3172 = vadd.f32 %v3171, 1.0
  %v3173 = vrcp.pop %v3172
  %v3174 = vmul.f32 1.0, %v3173
  %3175 = vmatprep.subr.bf16.mxu0 0
  %3176 = vmatpush1.bf16.msra.mxu0 %v399
  %3177 = vmatprep.subr.bf16.mxu0 0
  %3178 = vmatpush1.bf16.msra.mxu0 %v400
  %3179 = vmatprep.subr.bf16.mxu0 0
  %3180 = vmatpush1.bf16.msra.mxu0 0
  %3181 = vmatprep.subr.bf16.mxu0 0
  %3182 = vmatpush1.bf16.msra.mxu0 0
  %3183 = vmatprep.subr.bf16.mxu0 0
  %3184 = vmatpush1.bf16.msra.mxu0 0
  %3185 = vmatprep.subr.bf16.mxu0 0
  %3186 = vmatpush1.bf16.msra.mxu0 0
  %3187 = vmatprep.subr.bf16.mxu0 0
  %3188 = vmatpush1.bf16.msra.mxu0 0
  %3189 = vmatprep.subr.bf16.mxu0 0
  %3190 = vmatpush1.bf16.msra.mxu0 0
  %3191 = vmatprep.subr.bf16.mxu0 0
  %3192 = vmatpush1.bf16.msra.mxu0 0
  %3193 = vmatprep.subr.bf16.mxu0 0
  %3194 = vmatpush1.bf16.msra.mxu0 0
  %3195 = vmatprep.subr.bf16.mxu0 0
  %3196 = vmatpush1.bf16.msra.mxu0 0
  %3197 = vmatprep.subr.bf16.mxu0 0
  %3198 = vmatpush1.bf16.msra.mxu0 0
  %3199 = vmatprep.subr.bf16.mxu0 0
  %3200 = vmatpush1.bf16.msra.mxu0 0
  %3201 = vmatprep.subr.bf16.mxu0 0
  %3202 = vmatpush1.bf16.msra.mxu0 0
  %3203 = vmatprep.subr.bf16.mxu0 0
  %3204 = vmatpush1.bf16.msra.mxu0 0
  %3205 = vmatprep.subr.bf16.mxu0 0
  %3206 = vmatpush1.bf16.msra.mxu0 0
  %3207 = vmatprep.mubr.bf16.mxu0 0
  %3208 = vmatmul.mubr.bf16.gmra.mrb[0].mxu0 %v3126
  %v3209 = vpop.f32.mrb[0].mxu0
  %v3210 = vadd.f32 0.0, %v3209
  %v3211 = vpop.f32.mrb[0].mxu0
  %v3212 = vpop.f32.mrb[0].mxu0
  %v3213 = vpop.f32.mrb[0].mxu0
  %3214 = vdwg.mxu0
  %3216 = vrot.lane.b32.xlu0 %v3210, 32
  %v3217 = vpop.permute.xlu0 %3216
  %v3219 = vadd.f32 %v306, %v3217
  %v3220 = vxor.u32 %v3219, 2147483648
  %v3221 = vmul.f32 %v3220, 1.442695
  %v3222 = vpow.pop %v3221
  %v3223 = vadd.f32 %v3222, 1.0
  %v3224 = vrcp.pop %v3223
  %v3225 = vmul.f32 1.0, %v3224
  %3226 = vmatprep.subr.bf16.mxu0 0
  %3227 = vmatpush1.bf16.msra.mxu0 %v462
  %3228 = vmatprep.subr.bf16.mxu0 0
  %3229 = vmatpush1.bf16.msra.mxu0 %v463
  %3230 = vmatprep.subr.bf16.mxu0 0
  %3231 = vmatpush1.bf16.msra.mxu0 0
  %3232 = vmatprep.subr.bf16.mxu0 0
  %3233 = vmatpush1.bf16.msra.mxu0 0
  %3234 = vmatprep.subr.bf16.mxu0 0
  %3235 = vmatpush1.bf16.msra.mxu0 0
  %3236 = vmatprep.subr.bf16.mxu0 0
  %3237 = vmatpush1.bf16.msra.mxu0 0
  %3238 = vmatprep.subr.bf16.mxu0 0
  %3239 = vmatpush1.bf16.msra.mxu0 0
  %3240 = vmatprep.subr.bf16.mxu0 0
  %3241 = vmatpush1.bf16.msra.mxu0 0
  %3242 = vmatprep.subr.bf16.mxu0 0
  %3243 = vmatpush1.bf16.msra.mxu0 0
  %3244 = vmatprep.subr.bf16.mxu0 0
  %3245 = vmatpush1.bf16.msra.mxu0 0
  %3246 = vmatprep.subr.bf16.mxu0 0
  %3247 = vmatpush1.bf16.msra.mxu0 0
  %3248 = vmatprep.subr.bf16.mxu0 0
  %3249 = vmatpush1.bf16.msra.mxu0 0
  %3250 = vmatprep.subr.bf16.mxu0 0
  %3251 = vmatpush1.bf16.msra.mxu0 0
  %3252 = vmatprep.subr.bf16.mxu0 0
  %3253 = vmatpush1.bf16.msra.mxu0 0
  %3254 = vmatprep.subr.bf16.mxu0 0
  %3255 = vmatpush1.bf16.msra.mxu0 0
  %3256 = vmatprep.subr.bf16.mxu0 0
  %3257 = vmatpush1.bf16.msra.mxu0 0
  %3258 = vmatprep.mubr.bf16.mxu0 0
  %3259 = vmatmul.mubr.bf16.gmra.mrb[0].mxu0 %v3126
  %v3260 = vpop.f32.mrb[0].mxu0
  %v3261 = vadd.f32 0.0, %v3260
  %v3262 = vpop.f32.mrb[0].mxu0
  %v3263 = vpop.f32.mrb[0].mxu0
  %v3264 = vpop.f32.mrb[0].mxu0
  %3265 = vdwg.mxu0
  %3267 = vrot.lane.b32.xlu0 %v3261, 64
  %v3268 = vpop.permute.xlu0 %3267
  %v3270 = vadd.f32 %v306, %v3268
  %v3271 = vtanh.pop %v3270
  %3272 = vmatprep.subr.bf16.mxu0 0
  %3273 = vmatpush1.bf16.msra.mxu0 %v520
  %3274 = vmatprep.subr.bf16.mxu0 0
  %3275 = vmatpush1.bf16.msra.mxu0 %v521
  %3276 = vmatprep.subr.bf16.mxu0 0
  %3277 = vmatpush1.bf16.msra.mxu0 0
  %3278 = vmatprep.subr.bf16.mxu0 0
  %3279 = vmatpush1.bf16.msra.mxu0 0
  %3280 = vmatprep.subr.bf16.mxu0 0
  %3281 = vmatpush1.bf16.msra.mxu0 0
  %3282 = vmatprep.subr.bf16.mxu0 0
  %3283 = vmatpush1.bf16.msra.mxu0 0
  %3284 = vmatprep.subr.bf16.mxu0 0
  %3285 = vmatpush1.bf16.msra.mxu0 0
  %3286 = vmatprep.subr.bf16.mxu0 0
  %3287 = vmatpush1.bf16.msra.mxu0 0
  %3288 = vmatprep.subr.bf16.mxu0 0
  %3289 = vmatpush1.bf16.msra.mxu0 0
  %3290 = vmatprep.subr.bf16.mxu0 0
  %3291 = vmatpush1.bf16.msra.mxu0 0
  %3292 = vmatprep.subr.bf16.mxu0 0
  %3293 = vmatpush1.bf16.msra.mxu0 0
  %3294 = vmatprep.subr.bf16.mxu0 0
  %3295 = vmatpush1.bf16.msra.mxu0 0
  %3296 = vmatprep.subr.bf16.mxu0 0
  %3297 = vmatpush1.bf16.msra.mxu0 0
  %3298 = vmatprep.subr.bf16.mxu0 0
  %3299 = vmatpush1.bf16.msra.mxu0 0
  %3300 = vmatprep.subr.bf16.mxu0 0
  %3301 = vmatpush1.bf16.msra.mxu0 0
  %3302 = vmatprep.subr.bf16.mxu0 0
  %3303 = vmatpush1.bf16.msra.mxu0 0
  %3304 = vmatprep.mubr.bf16.mxu0 0
  %3305 = vmatmul.mubr.bf16.gmra.mrb[0].mxu0 %v3126
  %v3306 = vpop.f32.mrb[0].mxu0
  %v3307 = vadd.f32 0.0, %v3306
  %v3308 = vpop.f32.mrb[0].mxu0
  %v3309 = vpop.f32.mrb[0].mxu0
  %v3310 = vpop.f32.mrb[0].mxu0
  %3311 = vdwg.mxu0
  %3313 = vrot.lane.b32.xlu0 %v3307, 96
  %v3314 = vpop.permute.xlu0 %3313
  %v3316 = vadd.f32 %v306, %v3314
  %v3317 = vxor.u32 %v3316, 2147483648
  %v3318 = vmul.f32 %v3317, 1.442695
  %v3319 = vpow.pop %v3318
  %v3320 = vadd.f32 %v3319, 1.0
  %v3321 = vrcp.pop %v3320
  %v3322 = vmul.f32 1.0, %v3321
  %v3324 = vrot.slane %v3107, 6
  %v3326 = vmul.f32 %v3225, %v3324
  %3328 = vrot.lane.b32.xlu0 %v3271, 64
  %v3329 = vpop.permute.xlu0 %3328
  %v3331 = vmul.f32 %v3174, %v3329
  %3333 = vrot.lane.b32.xlu0 %v3331, 32
  %v3334 = vpop.permute.xlu0 %3333
  %v3336 = vadd.f32 %v3326, %v3334
  %v3337 = vtanh.pop %v3336
  %3339 = vrot.lane.b32.xlu0 %v3337, 64
  %v3340 = vpop.permute.xlu0 %3339
  %v3342 = vmul.f32 %v3322, %v3340
  %3344 = vrot.lane.b32.xlu0 %v3342, 32
  %v3345 = vpop.permute.xlu0 %3344
  %3347 = vst.msk [vmem:[#allocation2 + $0x8] sm:$0x3] %vm2414, %v3345
  %v3348 = vpack.c.bf16 %v3342, %v3342
  %3350 = vrot.lane.b32.xlu0 %v3348, 32
  %v3351 = vpop.permute.xlu0 %3350
  %v3353 = vsel %vm340, %v3351, 0
  %3355 = vmatprep.subr.bf16.mxu0 0
  %3356 = vmatpush1.bf16.msra.mxu0 %v336
  %3357 = vmatprep.subr.bf16.mxu0 0
  %3358 = vmatpush1.bf16.msra.mxu0 %v337
  %3359 = vmatprep.subr.bf16.mxu0 0
  %3360 = vmatpush1.bf16.msra.mxu0 0
  %3361 = vmatprep.subr.bf16.mxu0 0
  %3362 = vmatpush1.bf16.msra.mxu0 0
  %3363 = vmatprep.subr.bf16.mxu0 0
  %3364 = vmatpush1.bf16.msra.mxu0 0
  %3365 = vmatprep.subr.bf16.mxu0 0
  %3366 = vmatpush1.bf16.msra.mxu0 0
  %3367 = vmatprep.subr.bf16.mxu0 0
  %3368 = vmatpush1.bf16.msra.mxu0 0
  %3369 = vmatprep.subr.bf16.mxu0 0
  %3370 = vmatpush1.bf16.msra.mxu0 0
  %3371 = vmatprep.subr.bf16.mxu0 0
  %3372 = vmatpush1.bf16.msra.mxu0 0
  %3373 = vmatprep.subr.bf16.mxu0 0
  %3374 = vmatpush1.bf16.msra.mxu0 0
  %3375 = vmatprep.subr.bf16.mxu0 0
  %3376 = vmatpush1.bf16.msra.mxu0 0
  %3377 = vmatprep.subr.bf16.mxu0 0
  %3378 = vmatpush1.bf16.msra.mxu0 0
  %3379 = vmatprep.subr.bf16.mxu0 0
  %3380 = vmatpush1.bf16.msra.mxu0 0
  %3381 = vmatprep.subr.bf16.mxu0 0
  %3382 = vmatpush1.bf16.msra.mxu0 0
  %3383 = vmatprep.subr.bf16.mxu0 0
  %3384 = vmatpush1.bf16.msra.mxu0 0
  %3385 = vmatprep.subr.bf16.mxu0 0
  %3386 = vmatpush1.bf16.msra.mxu0 0
  %3387 = vmatprep.mubr.bf16.mxu0 0
  %3388 = vmatmul.mubr.bf16.gmra.mrb[0].mxu0 %v3353
  %v3389 = vpop.f32.mrb[0].mxu0
  %v3390 = vadd.f32 0.0, %v3389
  %v3391 = vpop.f32.mrb[0].mxu0
  %v3392 = vpop.f32.mrb[0].mxu0
  %v3393 = vpop.f32.mrb[0].mxu0
  %3394 = vdwg.mxu0
  %v3396 = vrot.slane %v3390, 6
  %v3398 = vadd.f32 %v306, %v3396
  %v3399 = vxor.u32 %v3398, 2147483648
  %v3400 = vmul.f32 %v3399, 1.442695
  %v3401 = vpow.pop %v3400
  %v3402 = vadd.f32 %v3401, 1.0
  %v3403 = vrcp.pop %v3402
  %v3404 = vmul.f32 1.0, %v3403
  %3405 = vmatprep.subr.bf16.mxu0 0
  %3406 = vmatpush1.bf16.msra.mxu0 %v399
  %3407 = vmatprep.subr.bf16.mxu0 0
  %3408 = vmatpush1.bf16.msra.mxu0 %v400
  %3409 = vmatprep.subr.bf16.mxu0 0
  %3410 = vmatpush1.bf16.msra.mxu0 0
  %3411 = vmatprep.subr.bf16.mxu0 0
  %3412 = vmatpush1.bf16.msra.mxu0 0
  %3413 = vmatprep.subr.bf16.mxu0 0
  %3414 = vmatpush1.bf16.msra.mxu0 0
  %3415 = vmatprep.subr.bf16.mxu0 0
  %3416 = vmatpush1.bf16.msra.mxu0 0
  %3417 = vmatprep.subr.bf16.mxu0 0
  %3418 = vmatpush1.bf16.msra.mxu0 0
  %3419 = vmatprep.subr.bf16.mxu0 0
  %3420 = vmatpush1.bf16.msra.mxu0 0
  %3421 = vmatprep.subr.bf16.mxu0 0
  %3422 = vmatpush1.bf16.msra.mxu0 0
  %3423 = vmatprep.subr.bf16.mxu0 0
  %3424 = vmatpush1.bf16.msra.mxu0 0
  %3425 = vmatprep.subr.bf16.mxu0 0
  %3426 = vmatpush1.bf16.msra.mxu0 0
  %3427 = vmatprep.subr.bf16.mxu0 0
  %3428 = vmatpush1.bf16.msra.mxu0 0
  %3429 = vmatprep.subr.bf16.mxu0 0
  %3430 = vmatpush1.bf16.msra.mxu0 0
  %3431 = vmatprep.subr.bf16.mxu0 0
  %3432 = vmatpush1.bf16.msra.mxu0 0
  %3433 = vmatprep.subr.bf16.mxu0 0
  %3434 = vmatpush1.bf16.msra.mxu0 0
  %3435 = vmatprep.subr.bf16.mxu0 0
  %3436 = vmatpush1.bf16.msra.mxu0 0
  %3437 = vmatprep.mubr.bf16.mxu0 0
  %3438 = vmatmul.mubr.bf16.gmra.mrb[0].mxu0 %v3353
  %v3439 = vpop.f32.mrb[0].mxu0
  %v3440 = vadd.f32 0.0, %v3439
  %v3441 = vpop.f32.mrb[0].mxu0
  %v3442 = vpop.f32.mrb[0].mxu0
  %v3443 = vpop.f32.mrb[0].mxu0
  %3444 = vdwg.mxu0
  %v3446 = vrot.slane %v3440, 6
  %3447 = vrot.lane.b32.xlu0 %v3446, 32
  %v3448 = vpop.permute.xlu0 %3447
  %v3450 = vadd.f32 %v306, %v3448
  %v3451 = vxor.u32 %v3450, 2147483648
  %v3452 = vmul.f32 %v3451, 1.442695
  %v3453 = vpow.pop %v3452
  %v3454 = vadd.f32 %v3453, 1.0
  %v3455 = vrcp.pop %v3454
  %v3456 = vmul.f32 1.0, %v3455
  %3457 = vmatprep.subr.bf16.mxu0 0
  %3458 = vmatpush1.bf16.msra.mxu0 %v462
  %3459 = vmatprep.subr.bf16.mxu0 0
  %3460 = vmatpush1.bf16.msra.mxu0 %v463
  %3461 = vmatprep.subr.bf16.mxu0 0
  %3462 = vmatpush1.bf16.msra.mxu0 0
  %3463 = vmatprep.subr.bf16.mxu0 0
  %3464 = vmatpush1.bf16.msra.mxu0 0
  %3465 = vmatprep.subr.bf16.mxu0 0
  %3466 = vmatpush1.bf16.msra.mxu0 0
  %3467 = vmatprep.subr.bf16.mxu0 0
  %3468 = vmatpush1.bf16.msra.mxu0 0
  %3469 = vmatprep.subr.bf16.mxu0 0
  %3470 = vmatpush1.bf16.msra.mxu0 0
  %3471 = vmatprep.subr.bf16.mxu0 0
  %3472 = vmatpush1.bf16.msra.mxu0 0
  %3473 = vmatprep.subr.bf16.mxu0 0
  %3474 = vmatpush1.bf16.msra.mxu0 0
  %3475 = vmatprep.subr.bf16.mxu0 0
  %3476 = vmatpush1.bf16.msra.mxu0 0
  %3477 = vmatprep.subr.bf16.mxu0 0
  %3478 = vmatpush1.bf16.msra.mxu0 0
  %3479 = vmatprep.subr.bf16.mxu0 0
  %3480 = vmatpush1.bf16.msra.mxu0 0
  %3481 = vmatprep.subr.bf16.mxu0 0
  %3482 = vmatpush1.bf16.msra.mxu0 0
  %3483 = vmatprep.subr.bf16.mxu0 0
  %3484 = vmatpush1.bf16.msra.mxu0 0
  %3485 = vmatprep.subr.bf16.mxu0 0
  %3486 = vmatpush1.bf16.msra.mxu0 0
  %3487 = vmatprep.subr.bf16.mxu0 0
  %3488 = vmatpush1.bf16.msra.mxu0 0
  %3489 = vmatprep.mubr.bf16.mxu0 0
  %3490 = vmatmul.mubr.bf16.gmra.mrb[0].mxu0 %v3353
  %v3491 = vpop.f32.mrb[0].mxu0
  %v3492 = vadd.f32 0.0, %v3491
  %v3493 = vpop.f32.mrb[0].mxu0
  %v3494 = vpop.f32.mrb[0].mxu0
  %v3495 = vpop.f32.mrb[0].mxu0
  %3496 = vdwg.mxu0
  %v3498 = vrot.slane %v3492, 6
  %3499 = vrot.lane.b32.xlu0 %v3498, 64
  %v3500 = vpop.permute.xlu0 %3499
  %v3502 = vadd.f32 %v306, %v3500
  %v3503 = vtanh.pop %v3502
  %3504 = vmatprep.subr.bf16.mxu0 0
  %3505 = vmatpush1.bf16.msra.mxu0 %v520
  %3506 = vmatprep.subr.bf16.mxu0 0
  %3507 = vmatpush1.bf16.msra.mxu0 %v521
  %3508 = vmatprep.subr.bf16.mxu0 0
  %3509 = vmatpush1.bf16.msra.mxu0 0
  %3510 = vmatprep.subr.bf16.mxu0 0
  %3511 = vmatpush1.bf16.msra.mxu0 0
  %3512 = vmatprep.subr.bf16.mxu0 0
  %3513 = vmatpush1.bf16.msra.mxu0 0
  %3514 = vmatprep.subr.bf16.mxu0 0
  %3515 = vmatpush1.bf16.msra.mxu0 0
  %3516 = vmatprep.subr.bf16.mxu0 0
  %3517 = vmatpush1.bf16.msra.mxu0 0
  %3518 = vmatprep.subr.bf16.mxu0 0
  %3519 = vmatpush1.bf16.msra.mxu0 0
  %3520 = vmatprep.subr.bf16.mxu0 0
  %3521 = vmatpush1.bf16.msra.mxu0 0
  %3522 = vmatprep.subr.bf16.mxu0 0
  %3523 = vmatpush1.bf16.msra.mxu0 0
  %3524 = vmatprep.subr.bf16.mxu0 0
  %3525 = vmatpush1.bf16.msra.mxu0 0
  %3526 = vmatprep.subr.bf16.mxu0 0
  %3527 = vmatpush1.bf16.msra.mxu0 0
  %3528 = vmatprep.subr.bf16.mxu0 0
  %3529 = vmatpush1.bf16.msra.mxu0 0
  %3530 = vmatprep.subr.bf16.mxu0 0
  %3531 = vmatpush1.bf16.msra.mxu0 0
  %3532 = vmatprep.subr.bf16.mxu0 0
  %3533 = vmatpush1.bf16.msra.mxu0 0
  %3534 = vmatprep.subr.bf16.mxu0 0
  %3535 = vmatpush1.bf16.msra.mxu0 0
  %3536 = vmatprep.mubr.bf16.mxu0 0
  %3537 = vmatmul.mubr.bf16.gmra.mrb[0].mxu0 %v3353
  %v3538 = vpop.f32.mrb[0].mxu0
  %v3539 = vadd.f32 0.0, %v3538
  %v3540 = vpop.f32.mrb[0].mxu0
  %v3541 = vpop.f32.mrb[0].mxu0
  %v3542 = vpop.f32.mrb[0].mxu0
  %3543 = vdwg.mxu0
  %v3545 = vrot.slane %v3539, 6
  %3546 = vrot.lane.b32.xlu0 %v3545, 96
  %v3547 = vpop.permute.xlu0 %3546
  %v3549 = vadd.f32 %v306, %v3547
  %v3550 = vxor.u32 %v3549, 2147483648
  %v3551 = vmul.f32 %v3550, 1.442695
  %v3552 = vpow.pop %v3551
  %v3553 = vadd.f32 %v3552, 1.0
  %v3554 = vrcp.pop %v3553
  %v3555 = vmul.f32 1.0, %v3554
  %v3557 = vrot.slane %v3336, 6
  %v3559 = vmul.f32 %v3456, %v3557
  %3561 = vrot.lane.b32.xlu0 %v3503, 64
  %v3562 = vpop.permute.xlu0 %3561
  %v3564 = vmul.f32 %v3404, %v3562
  %3566 = vrot.lane.b32.xlu0 %v3564, 32
  %v3567 = vpop.permute.xlu0 %3566
  %v3569 = vadd.f32 %v3559, %v3567
  %v3570 = vtanh.pop %v3569
  %3572 = vrot.lane.b32.xlu0 %v3570, 64
  %v3573 = vpop.permute.xlu0 %3572
  %v3575 = vmul.f32 %v3555, %v3573
  %3577 = vrot.lane.b32.xlu0 %v3575, 32
  %v3578 = vpop.permute.xlu0 %3577
  %3580 = vst.msk [vmem:[#allocation2 + $0x8] sm:$0xc] %vm2648, %v3578
  %v3581 = vld [vmem:[#allocation2] sm:$0xff]
  %v3582 = vld [vmem:[#allocation2 + $0x8] sm:$0xf]
  %v3583 = vpack.c.bf16 %v3582, %v3581
  %v3584 = vld [vmem:[%s7] sm:$0xf]
  %v3585 = vld [vmem:[%s7 + $0x4] sm:$0xf]
  %v3586 = vld [vmem:[%s7 + $0x8] sm:$0xf]
  %v3587 = vld [vmem:[%s7 + $0xc] sm:$0xf]
  %v3588 = vld [vmem:[%s8] sm:$0x1]
  %v3590 = vlaneseq
  %v3591 = vshrl.u32 %v3590, 7
  %v3592 = vsub.s32 0, %v3591
  %v3593 = vrot.slane %v3588, %v3592
  %v3599 = vunpack.c.l.b16 %v3584
  %v3600 = vunpack.c.l.b16 %v3585
  %v3601 = vunpack.c.l.b16 %v3586
  %v3602 = vunpack.c.l.b16 %v3587
  %v3603 = vpack.c.b16 %v3600, %v3599
  %v3604 = vpack.c.b16 %v3602, %v3601
  %v3608 = vsel %vm340, %v3583, 0
  %3610 = vmatprep.subr.bf16.mxu0 0
  %3611 = vmatpush1.bf16.msra.mxu0 %v3603
  %3612 = vmatprep.subr.bf16.mxu0 0
  %3613 = vmatpush1.bf16.msra.mxu0 %v3604
  %3614 = vmatprep.subr.bf16.mxu0 0
  %3615 = vmatpush1.bf16.msra.mxu0 0
  %3616 = vmatprep.subr.bf16.mxu0 0
  %3617 = vmatpush1.bf16.msra.mxu0 0
  %3618 = vmatprep.subr.bf16.mxu0 0
  %3619 = vmatpush1.bf16.msra.mxu0 0
  %3620 = vmatprep.subr.bf16.mxu0 0
  %3621 = vmatpush1.bf16.msra.mxu0 0
  %3622 = vmatprep.subr.bf16.mxu0 0
  %3623 = vmatpush1.bf16.msra.mxu0 0
  %3624 = vmatprep.subr.bf16.mxu0 0
  %3625 = vmatpush1.bf16.msra.mxu0 0
  %3626 = vmatprep.subr.bf16.mxu0 0
  %3627 = vmatpush1.bf16.msra.mxu0 0
  %3628 = vmatprep.subr.bf16.mxu0 0
  %3629 = vmatpush1.bf16.msra.mxu0 0
  %3630 = vmatprep.subr.bf16.mxu0 0
  %3631 = vmatpush1.bf16.msra.mxu0 0
  %3632 = vmatprep.subr.bf16.mxu0 0
  %3633 = vmatpush1.bf16.msra.mxu0 0
  %3634 = vmatprep.subr.bf16.mxu0 0
  %3635 = vmatpush1.bf16.msra.mxu0 0
  %3636 = vmatprep.subr.bf16.mxu0 0
  %3637 = vmatpush1.bf16.msra.mxu0 0
  %3638 = vmatprep.subr.bf16.mxu0 0
  %3639 = vmatpush1.bf16.msra.mxu0 0
  %3640 = vmatprep.subr.bf16.mxu0 0
  %3641 = vmatpush1.bf16.msra.mxu0 0
  %3642 = vmatprep.mubr.bf16.mxu0 0
  %3643 = vmatmul.mubr.bf16.gmra.mrb[0].mxu0 %v3608
  %v3644 = vpop.f32.mrb[0].mxu0
  %v3645 = vadd.f32 %v3593, %v3644
  %v3646 = vpop.f32.mrb[0].mxu0
  %v3647 = vpop.f32.mrb[0].mxu0
  %v3648 = vadd.f32 %v3593, %v3647
  %v3649 = vpop.f32.mrb[0].mxu0
  %3650 = vdwg.mxu0
  %v3653 = vunpack.c.l.s4 1966171168
  %v3654 = vunpack.c.0.s8 %v3653
  %v3655 = vlaneseq
  %v3656 = vshrl.u32 %v3655, 7
  %v3657 = vsub.s32 %v3654, %v3656
  %v3658 = vrot.slane %v3645, %v3657
  %v3659 = vcombine.high %v3658, %v3658
  %v3661 = vunpack.c.l.s4 1966171168
  %v3662 = vunpack.c.0.s8 %v3661
  %v3663 = vlaneseq
  %v3664 = vshrl.u32 %v3663, 7
  %v3665 = vsub.s32 %v3662, %v3664
  %v3666 = vrot.slane %v3658, %v3665
  %v3668 = vunpack.c.l.s4 1966171168
  %v3669 = vunpack.c.0.s8 %v3668
  %v3670 = vlaneseq
  %v3671 = vshrl.u32 %v3670, 7
  %v3672 = vsub.s32 %v3669, %v3671
  %v3673 = vrot.slane %v3659, %v3672
  %3676 = vst [vmem:[%s9] sm:$0x1] %v3666
  %3677 = vst [vmem:[%s9 + $0x8] sm:$0x1] %v3673
  %v3678 = vcombine.high %v3666, %v3666
  %v3679 = vcombine.high %v3673, %v3673
  %3682 = vst [vmem:[%s9 + $0x1] sm:$0x1] %v3678
  %3683 = vst [vmem:[%s9 + $0x9] sm:$0x1] %v3679
  %v3684 = vcombine.high %v3645, %v3645
  %v3686 = vunpack.c.l.s4 1966171168
  %v3687 = vunpack.c.0.s8 %v3686
  %v3688 = vlaneseq
  %v3689 = vshrl.u32 %v3688, 7
  %v3690 = vsub.s32 %v3687, %v3689
  %v3691 = vrot.slane %v3684, %v3690
  %v3692 = vcombine.high %v3691, %v3691
  %v3694 = vunpack.c.l.s4 1966171168
  %v3695 = vunpack.c.0.s8 %v3694
  %v3696 = vlaneseq
  %v3697 = vshrl.u32 %v3696, 7
  %v3698 = vsub.s32 %v3695, %v3697
  %v3699 = vrot.slane %v3691, %v3698
  %v3701 = vunpack.c.l.s4 1966171168
  %v3702 = vunpack.c.0.s8 %v3701
  %v3703 = vlaneseq
  %v3704 = vshrl.u32 %v3703, 7
  %v3705 = vsub.s32 %v3702, %v3704
  %v3706 = vrot.slane %v3692, %v3705
  %3709 = vst [vmem:[%s9 + $0x2] sm:$0x1] %v3699
  %3710 = vst [vmem:[%s9 + $0xa] sm:$0x1] %v3706
  %v3711 = vcombine.high %v3699, %v3699
  %v3712 = vcombine.high %v3706, %v3706
  %3715 = vst [vmem:[%s9 + $0x3] sm:$0x1] %v3711
  %3716 = vst [vmem:[%s9 + $0xb] sm:$0x1] %v3712
  %v3719 = vunpack.c.l.s4 1966171168
  %v3720 = vunpack.c.0.s8 %v3719
  %v3721 = vlaneseq
  %v3722 = vshrl.u32 %v3721, 7
  %v3723 = vsub.s32 %v3720, %v3722
  %v3724 = vrot.slane %v3648, %v3723
  %v3725 = vcombine.high %v3724, %v3724
  %v3727 = vunpack.c.l.s4 1966171168
  %v3728 = vunpack.c.0.s8 %v3727
  %v3729 = vlaneseq
  %v3730 = vshrl.u32 %v3729, 7
  %v3731 = vsub.s32 %v3728, %v3730
  %v3732 = vrot.slane %v3724, %v3731
  %v3734 = vunpack.c.l.s4 1966171168
  %v3735 = vunpack.c.0.s8 %v3734
  %v3736 = vlaneseq
  %v3737 = vshrl.u32 %v3736, 7
  %v3738 = vsub.s32 %v3735, %v3737
  %v3739 = vrot.slane %v3725, %v3738
  %3742 = vst [vmem:[%s9 + $0x4] sm:$0x1] %v3732
  %3743 = vst [vmem:[%s9 + $0xc] sm:$0x1] %v3739
  %v3744 = vcombine.high %v3732, %v3732
  %v3745 = vcombine.high %v3739, %v3739
  %3748 = vst [vmem:[%s9 + $0x5] sm:$0x1] %v3744
  %3749 = vst [vmem:[%s9 + $0xd] sm:$0x1] %v3745
  // Predicated region
  $region38: #{seq2seq_forward.1} parent=0 // pred_check
    _
  $region39: #{seq2seq_forward.1} parent=0 // pred_check_branch
    %3751 = sbr.rel (0) target = $region41
  $region40: #{seq2seq_forward.1} parent=0 // pred_region
    _
  $region41: #{seq2seq_forward.1} parent=0 // pred_fallthru
    _
  // Predicated region
  $region42: #{seq2seq_forward.1} parent=0 // pred_check
    _
  $region43: #{seq2seq_forward.1} parent=0 // pred_check_branch
    %3753 = sbr.rel (0) target = $region45
  $region44: #{seq2seq_forward.1} parent=0 // pred_region
    _
  $region45: #{seq2seq_forward.1} parent=0 // pred_fallthru
    _

</llo_original>
